<compile_context>
chip_gen: v7x
topology: tpu7x:2x2x1
jax: 0.10.0
libtpu: 0.0.40
codegen_flags: <defaults>
</compile_context>

<pallas_src>
import functools

import jax
import jax.numpy as jnp
from jax.experimental import pallas as pl
from jax.experimental.pallas import tpu as pltpu

# Small, self-consistent sizes (module structure preserved: H, 2H, 10H, 5H).
INPUT_SIZE = 1
HIDDEN_SIZE = 64
OUTPUT_SIZE = 1
BATCH = 82          # mirrors x = linspace(1, 82, 82).reshape(82, 1)


def _mlp_kernel(x_ref,
                w1_ref, b1_ref,
                w2_ref, b2_ref,
                w3_ref, b3_ref,
                w4_ref, b4_ref,
                w5_ref, b5_ref,
                o_ref, *, sub_m):
    tile_m = x_ref.shape[0]

    # Process the tile as independent row sub-chains (static Python loop) so
    # the scheduler can overlap chain-B matmuls under chain-A EUP work.
    for start in range(0, tile_m, sub_m):
        size = min(sub_m, tile_m - start)
        x = x_ref[start:start + size, :]                       # (size, 1)

        # fc1 + ReLU  (K=1: pure VPU broadcast outer-product, no MXU pass)
        h = jnp.maximum(x * w1_ref[...] + b1_ref[...], 0.0)    # (size, H)

        # fc2 + Sigmoid  (MXU)
        h = jnp.dot(h, w2_ref[...],
                    preferred_element_type=jnp.float32) + b2_ref[...]
        h = jax.nn.sigmoid(h)

        # fc3 + Tanh  (MXU)
        h = jnp.dot(h, w3_ref[...],
                    preferred_element_type=jnp.float32) + b3_ref[...]
        h = jnp.tanh(h)

        # fc4 + ReLU  (MXU)
        h = jnp.dot(h, w4_ref[...],
                    preferred_element_type=jnp.float32) + b4_ref[...]
        h = jnp.maximum(h, 0.0)

        # fc5  (MXU; the MXU slot has slack and the pop is already (size, 1))
        out = jnp.dot(h, w5_ref[...],
                      preferred_element_type=jnp.float32) + b5_ref[...]
        o_ref[start:start + size, :] = out.astype(o_ref.dtype)


def _full_spec(shape):
    # Whole array resident in VMEM, identical block for every grid step.
    return pl.BlockSpec(shape, lambda i: tuple(0 for _ in shape))


def _round_up8(n):
    return max(8, pl.cdiv(n, 8) * 8)


def _choose_tiling(m):
    """Pick (tile_m, sub_m).  On 2-TensorCore chips (v7x) split the batch
    across cores via a 2-step parallel grid; otherwise use one padded tile."""
    try:
        kind = jax.devices()[0].device_kind.lower()
    except Exception:  # pragma: no cover - defensive; default to single tile
        kind = ""
    n_steps = 2 if ("v7" in kind or "7x" in kind) else 1
    tile_m = _round_up8(pl.cdiv(m, n_steps))   # 88 on v5e/v6e, 48 on v7x
    sub_m = _round_up8(pl.cdiv(tile_m, 2))     # intra-tile ILP split (<=48 rows)
    return tile_m, sub_m


@functools.partial(jax.jit, static_argnames=("tile_m", "sub_m"))
def hz_model_forward(x, params, tile_m=88, sub_m=48):
    (w1, b1), (w2, b2), (w3, b3), (w4, b4), (w5, b5) = params
    m, in_dim = x.shape
    out_dim = b5.shape[1]
    grid_m = pl.cdiv(m, tile_m)

    in_specs = [pl.BlockSpec((tile_m, in_dim), lambda i: (i, 0))]
    args = [x]
    for w, b in ((w1, b1), (w2, b2), (w3, b3), (w4, b4), (w5, b5)):
        in_specs.append(_full_spec(w.shape))
        in_specs.append(_full_spec(b.shape))
        args.append(w)
        args.append(b)

    out = pl.pallas_call(
        functools.partial(_mlp_kernel, sub_m=sub_m),
        out_shape=jax.ShapeDtypeStruct((m, out_dim), jnp.float32),
        grid=(grid_m,),
        in_specs=in_specs,
        out_specs=pl.BlockSpec((tile_m, out_dim), lambda i: (i, 0)),
        compiler_params=pltpu.CompilerParams(
            dimension_semantics=("parallel",),
        ),
    )(*args)
    return out


def init_params(key, input_size=INPUT_SIZE, hidden=HIDDEN_SIZE,
                output_size=OUTPUT_SIZE):
    """PyTorch-style Linear init: U(-1/sqrt(fan_in), 1/sqrt(fan_in)).

    Weights are stored as (in_features, out_features)."""
    dims = [
        (input_size, hidden),
        (hidden, hidden * 2),
        (hidden * 2, hidden * 10),
        (hidden * 10, hidden * 5),
        (hidden * 5, output_size),
    ]
    params = []
    for fan_in, fan_out in dims:
        key, kw, kb = jax.random.split(key, 3)
        bound = 1.0 / jnp.sqrt(float(fan_in))
        w = jax.random.uniform(kw, (fan_in, fan_out), jnp.float32, -bound, bound)
        b = jax.random.uniform(kb, (1, fan_out), jnp.float32, -bound, bound)
        params.append((w, b))
    return params


def reference_forward(x, params):
    (w1, b1), (w2, b2), (w3, b3), (w4, b4), (w5, b5) = params
    h = jnp.maximum(x @ w1 + b1, 0.0)
    h = jax.nn.sigmoid(h @ w2 + b2)
    h = jnp.tanh(h @ w3 + b3)
    h = jnp.maximum(h @ w4 + b4, 0.0)
    return h @ w5 + b5


if __name__ == "__main__":
    key = jax.random.PRNGKey(0)
    params = init_params(key)

    # Deterministic input, analogous to np.linspace(1, 82, 82).reshape(82, 1).
    x = jnp.linspace(1.0, float(BATCH), BATCH, dtype=jnp.float32).reshape(BATCH, 1)

    tile_m, sub_m = _choose_tiling(BATCH)
    y = hz_model_forward(x, params, tile_m=tile_m, sub_m=sub_m)
    y = jax.block_until_ready(y)

    y_ref = reference_forward(x, params)
    assert y.shape == (BATCH, OUTPUT_SIZE), y.shape
    assert jnp.allclose(y, y_ref, rtol=1e-4, atol=1e-4), "mismatch vs JAX reference"

    print("KERNEL_OK")
</pallas_src>

<mosaic_0001>
module attributes {stable_mosaic.version = 11 : i64} {
  func.func @_mlp_kernel(%arg0: i32, %arg1: memref<88x1xf32, #tpu.memory_space<vmem>>, %arg2: memref<1x64xf32, #tpu.memory_space<vmem>>, %arg3: memref<1x64xf32, #tpu.memory_space<vmem>>, %arg4: memref<64x128xf32, #tpu.memory_space<vmem>>, %arg5: memref<1x128xf32, #tpu.memory_space<vmem>>, %arg6: memref<128x640xf32, #tpu.memory_space<vmem>>, %arg7: memref<1x640xf32, #tpu.memory_space<vmem>>, %arg8: memref<640x320xf32, #tpu.memory_space<vmem>>, %arg9: memref<1x320xf32, #tpu.memory_space<vmem>>, %arg10: memref<320x1xf32, #tpu.memory_space<vmem>>, %arg11: memref<1x1xf32, #tpu.memory_space<vmem>>, %arg12: memref<88x1xf32, #tpu.memory_space<vmem>>) attributes {dimension_semantics = [#tpu.dimension_semantics<parallel>], iteration_bounds = array<i64: 1>, scalar_prefetch = 0 : i64, scratch_operands = 0 : i64, tpu.core_type = #tpu.core_type<tc>, window_params = [{transform_indices = @transform_0, window_bounds = array<i64: 88, 1>}, {pipeline_mode = #tpu.pipeline_mode<synchronous>, transform_indices = @transform_1, window_bounds = array<i64: 1, 64>}, {pipeline_mode = #tpu.pipeline_mode<synchronous>, transform_indices = @transform_2, window_bounds = array<i64: 1, 64>}, {pipeline_mode = #tpu.pipeline_mode<synchronous>, transform_indices = @transform_3, window_bounds = array<i64: 64, 128>}, {pipeline_mode = #tpu.pipeline_mode<synchronous>, transform_indices = @transform_4, window_bounds = array<i64: 1, 128>}, {pipeline_mode = #tpu.pipeline_mode<synchronous>, transform_indices = @transform_5, window_bounds = array<i64: 128, 640>}, {pipeline_mode = #tpu.pipeline_mode<synchronous>, transform_indices = @transform_6, window_bounds = array<i64: 1, 640>}, {pipeline_mode = #tpu.pipeline_mode<synchronous>, transform_indices = @transform_7, window_bounds = array<i64: 640, 320>}, {pipeline_mode = #tpu.pipeline_mode<synchronous>, transform_indices = @transform_8, window_bounds = array<i64: 1, 320>}, {pipeline_mode = #tpu.pipeline_mode<synchronous>, transform_indices = @transform_9, window_bounds = array<i64: 320, 1>}, {pipeline_mode = #tpu.pipeline_mode<synchronous>, transform_indices = @transform_10, window_bounds = array<i64: 1, 1>}, {transform_indices = @transform_11, window_bounds = array<i64: 88, 1>}]} {
    %c0 = arith.constant 0 : index
    %c0_0 = arith.constant 0 : index
    %0 = vector.load %arg1[%c0, %c0_0] : memref<88x1xf32, #tpu.memory_space<vmem>>, vector<48x1xf32>
    %c0_1 = arith.constant 0 : index
    %c0_2 = arith.constant 0 : index
    %1 = vector.load %arg2[%c0_1, %c0_2] : memref<1x64xf32, #tpu.memory_space<vmem>>, vector<1x64xf32>
    %2 = vector.broadcast %0 : vector<48x1xf32> to vector<48x64xf32>
    %3 = vector.broadcast %1 : vector<1x64xf32> to vector<48x64xf32>
    %4 = arith.mulf %2, %3 : vector<48x64xf32>
    %c0_3 = arith.constant 0 : index
    %c0_4 = arith.constant 0 : index
    %5 = vector.load %arg3[%c0_3, %c0_4] : memref<1x64xf32, #tpu.memory_space<vmem>>, vector<1x64xf32>
    %6 = vector.broadcast %5 : vector<1x64xf32> to vector<48x64xf32>
    %7 = arith.addf %4, %6 : vector<48x64xf32>
    %cst = arith.constant 0.000000e+00 : f32
    %8 = vector.broadcast %cst : f32 to vector<48x64xf32>
    %9 = arith.maximumf %7, %8 : vector<48x64xf32>
    %c0_5 = arith.constant 0 : index
    %c0_6 = arith.constant 0 : index
    %10 = vector.load %arg4[%c0_5, %c0_6] : memref<64x128xf32, #tpu.memory_space<vmem>>, vector<64x128xf32>
    %cst_7 = arith.constant dense<0.000000e+00> : vector<48x128xf32>
    %11 = tpu.matmul %9, %10, %cst_7 {dimension_numbers = #tpu.dot_dimension_numbers<[1], [0], [0], [1], [0, 0, 1, 1], [], []>} : vector<48x64xf32>, vector<64x128xf32>, vector<48x128xf32> -> vector<48x128xf32>
    %c0_8 = arith.constant 0 : index
    %c0_9 = arith.constant 0 : index
    %12 = vector.load %arg5[%c0_8, %c0_9] : memref<1x128xf32, #tpu.memory_space<vmem>>, vector<1x128xf32>
    %13 = vector.broadcast %12 : vector<1x128xf32> to vector<48x128xf32>
    %14 = arith.addf %11, %13 : vector<48x128xf32>
    %15 = arith.negf %14 : vector<48x128xf32>
    %16 = math.exp %15 : vector<48x128xf32>
    %cst_10 = arith.constant 1.000000e+00 : f32
    %17 = vector.broadcast %cst_10 : f32 to vector<48x128xf32>
    %18 = arith.addf %17, %16 : vector<48x128xf32>
    %19 = arith.divf %17, %18 : vector<48x128xf32>
    %c0_11 = arith.constant 0 : index
    %c0_12 = arith.constant 0 : index
    %20 = vector.load %arg6[%c0_11, %c0_12] : memref<128x640xf32, #tpu.memory_space<vmem>>, vector<128x640xf32>
    %cst_13 = arith.constant dense<0.000000e+00> : vector<48x640xf32>
    %21 = tpu.matmul %19, %20, %cst_13 {dimension_numbers = #tpu.dot_dimension_numbers<[1], [0], [0], [1], [0, 0, 1, 1], [], []>} : vector<48x128xf32>, vector<128x640xf32>, vector<48x640xf32> -> vector<48x640xf32>
    %c0_14 = arith.constant 0 : index
    %c0_15 = arith.constant 0 : index
    %22 = vector.load %arg7[%c0_14, %c0_15] : memref<1x640xf32, #tpu.memory_space<vmem>>, vector<1x640xf32>
    %23 = vector.broadcast %22 : vector<1x640xf32> to vector<48x640xf32>
    %24 = arith.addf %21, %23 : vector<48x640xf32>
    %25 = math.tanh %24 : vector<48x640xf32>
    %c0_16 = arith.constant 0 : index
    %c0_17 = arith.constant 0 : index
    %26 = vector.load %arg8[%c0_16, %c0_17] : memref<640x320xf32, #tpu.memory_space<vmem>>, vector<640x320xf32>
    %cst_18 = arith.constant dense<0.000000e+00> : vector<48x320xf32>
    %27 = tpu.matmul %25, %26, %cst_18 {dimension_numbers = #tpu.dot_dimension_numbers<[1], [0], [0], [1], [0, 0, 1, 1], [], []>} : vector<48x640xf32>, vector<640x320xf32>, vector<48x320xf32> -> vector<48x320xf32>
    %c0_19 = arith.constant 0 : index
    %c0_20 = arith.constant 0 : index
    %28 = vector.load %arg9[%c0_19, %c0_20] : memref<1x320xf32, #tpu.memory_space<vmem>>, vector<1x320xf32>
    %29 = vector.broadcast %28 : vector<1x320xf32> to vector<48x320xf32>
    %30 = arith.addf %27, %29 : vector<48x320xf32>
    %cst_21 = arith.constant 0.000000e+00 : f32
    %31 = vector.broadcast %cst_21 : f32 to vector<48x320xf32>
    %32 = arith.maximumf %30, %31 : vector<48x320xf32>
    %c0_22 = arith.constant 0 : index
    %c0_23 = arith.constant 0 : index
    %33 = vector.load %arg10[%c0_22, %c0_23] : memref<320x1xf32, #tpu.memory_space<vmem>>, vector<320x1xf32>
    %cst_24 = arith.constant dense<0.000000e+00> : vector<48x1xf32>
    %34 = tpu.matmul %32, %33, %cst_24 {dimension_numbers = #tpu.dot_dimension_numbers<[1], [0], [0], [1], [0, 0, 1, 1], [], []>} : vector<48x320xf32>, vector<320x1xf32>, vector<48x1xf32> -> vector<48x1xf32>
    %c0_25 = arith.constant 0 : index
    %c0_26 = arith.constant 0 : index
    %35 = vector.load %arg11[%c0_25, %c0_26] : memref<1x1xf32, #tpu.memory_space<vmem>>, vector<1x1xf32>
    %36 = vector.broadcast %35 : vector<1x1xf32> to vector<48x1xf32>
    %37 = arith.addf %34, %36 : vector<48x1xf32>
    %c0_27 = arith.constant 0 : index
    %c0_28 = arith.constant 0 : index
    %38 = vector.load %arg12[%c0_27, %c0_28] : memref<88x1xf32, #tpu.memory_space<vmem>>, vector<48x1xf32>
    tpu.vector_store %arg12[%c0_27, %c0_28], %37 {strides = array<i32>} : memref<88x1xf32, #tpu.memory_space<vmem>>, vector<48x1xf32>,
    %c48 = arith.constant 48 : index
    %c0_29 = arith.constant 0 : index
    %39 = vector.load %arg1[%c48, %c0_29] : memref<88x1xf32, #tpu.memory_space<vmem>>, vector<40x1xf32>
    %c0_30 = arith.constant 0 : index
    %c0_31 = arith.constant 0 : index
    %40 = vector.load %arg2[%c0_30, %c0_31] : memref<1x64xf32, #tpu.memory_space<vmem>>, vector<1x64xf32>
    %41 = vector.broadcast %39 : vector<40x1xf32> to vector<40x64xf32>
    %42 = vector.broadcast %40 : vector<1x64xf32> to vector<40x64xf32>
    %43 = arith.mulf %41, %42 : vector<40x64xf32>
    %c0_32 = arith.constant 0 : index
    %c0_33 = arith.constant 0 : index
    %44 = vector.load %arg3[%c0_32, %c0_33] : memref<1x64xf32, #tpu.memory_space<vmem>>, vector<1x64xf32>
    %45 = vector.broadcast %44 : vector<1x64xf32> to vector<40x64xf32>
    %46 = arith.addf %43, %45 : vector<40x64xf32>
    %cst_34 = arith.constant 0.000000e+00 : f32
    %47 = vector.broadcast %cst_34 : f32 to vector<40x64xf32>
    %48 = arith.maximumf %46, %47 : vector<40x64xf32>
    %c0_35 = arith.constant 0 : index
    %c0_36 = arith.constant 0 : index
    %49 = vector.load %arg4[%c0_35, %c0_36] : memref<64x128xf32, #tpu.memory_space<vmem>>, vector<64x128xf32>
    %cst_37 = arith.constant dense<0.000000e+00> : vector<40x128xf32>
    %50 = tpu.matmul %48, %49, %cst_37 {dimension_numbers = #tpu.dot_dimension_numbers<[1], [0], [0], [1], [0, 0, 1, 1], [], []>} : vector<40x64xf32>, vector<64x128xf32>, vector<40x128xf32> -> vector<40x128xf32>
    %c0_38 = arith.constant 0 : index
    %c0_39 = arith.constant 0 : index
    %51 = vector.load %arg5[%c0_38, %c0_39] : memref<1x128xf32, #tpu.memory_space<vmem>>, vector<1x128xf32>
    %52 = vector.broadcast %51 : vector<1x128xf32> to vector<40x128xf32>
    %53 = arith.addf %50, %52 : vector<40x128xf32>
    %54 = arith.negf %53 : vector<40x128xf32>
    %55 = math.exp %54 : vector<40x128xf32>
    %cst_40 = arith.constant 1.000000e+00 : f32
    %56 = vector.broadcast %cst_40 : f32 to vector<40x128xf32>
    %57 = arith.addf %56, %55 : vector<40x128xf32>
    %58 = arith.divf %56, %57 : vector<40x128xf32>
    %c0_41 = arith.constant 0 : index
    %c0_42 = arith.constant 0 : index
    %59 = vector.load %arg6[%c0_41, %c0_42] : memref<128x640xf32, #tpu.memory_space<vmem>>, vector<128x640xf32>
    %cst_43 = arith.constant dense<0.000000e+00> : vector<40x640xf32>
    %60 = tpu.matmul %58, %59, %cst_43 {dimension_numbers = #tpu.dot_dimension_numbers<[1], [0], [0], [1], [0, 0, 1, 1], [], []>} : vector<40x128xf32>, vector<128x640xf32>, vector<40x640xf32> -> vector<40x640xf32>
    %c0_44 = arith.constant 0 : index
    %c0_45 = arith.constant 0 : index
    %61 = vector.load %arg7[%c0_44, %c0_45] : memref<1x640xf32, #tpu.memory_space<vmem>>, vector<1x640xf32>
    %62 = vector.broadcast %61 : vector<1x640xf32> to vector<40x640xf32>
    %63 = arith.addf %60, %62 : vector<40x640xf32>
    %64 = math.tanh %63 : vector<40x640xf32>
    %c0_46 = arith.constant 0 : index
    %c0_47 = arith.constant 0 : index
    %65 = vector.load %arg8[%c0_46, %c0_47] : memref<640x320xf32, #tpu.memory_space<vmem>>, vector<640x320xf32>
    %cst_48 = arith.constant dense<0.000000e+00> : vector<40x320xf32>
    %66 = tpu.matmul %64, %65, %cst_48 {dimension_numbers = #tpu.dot_dimension_numbers<[1], [0], [0], [1], [0, 0, 1, 1], [], []>} : vector<40x640xf32>, vector<640x320xf32>, vector<40x320xf32> -> vector<40x320xf32>
    %c0_49 = arith.constant 0 : index
    %c0_50 = arith.constant 0 : index
    %67 = vector.load %arg9[%c0_49, %c0_50] : memref<1x320xf32, #tpu.memory_space<vmem>>, vector<1x320xf32>
    %68 = vector.broadcast %67 : vector<1x320xf32> to vector<40x320xf32>
    %69 = arith.addf %66, %68 : vector<40x320xf32>
    %cst_51 = arith.constant 0.000000e+00 : f32
    %70 = vector.broadcast %cst_51 : f32 to vector<40x320xf32>
    %71 = arith.maximumf %69, %70 : vector<40x320xf32>
    %c0_52 = arith.constant 0 : index
    %c0_53 = arith.constant 0 : index
    %72 = vector.load %arg10[%c0_52, %c0_53] : memref<320x1xf32, #tpu.memory_space<vmem>>, vector<320x1xf32>
    %cst_54 = arith.constant dense<0.000000e+00> : vector<40x1xf32>
    %73 = tpu.matmul %71, %72, %cst_54 {dimension_numbers = #tpu.dot_dimension_numbers<[1], [0], [0], [1], [0, 0, 1, 1], [], []>} : vector<40x320xf32>, vector<320x1xf32>, vector<40x1xf32> -> vector<40x1xf32>
    %c0_55 = arith.constant 0 : index
    %c0_56 = arith.constant 0 : index
    %74 = vector.load %arg11[%c0_55, %c0_56] : memref<1x1xf32, #tpu.memory_space<vmem>>, vector<1x1xf32>
    %75 = vector.broadcast %74 : vector<1x1xf32> to vector<40x1xf32>
    %76 = arith.addf %73, %75 : vector<40x1xf32>
    %c48_57 = arith.constant 48 : index
    %c0_58 = arith.constant 0 : index
    %77 = vector.load %arg12[%c48_57, %c0_58] : memref<88x1xf32, #tpu.memory_space<vmem>>, vector<40x1xf32>
    tpu.vector_store %arg12[%c48_57, %c0_58], %76 {strides = array<i32>} : memref<88x1xf32, #tpu.memory_space<vmem>>, vector<40x1xf32>,
    return
  }
  func.func @transform_0(%arg0: i32) -> (i32, i32) {
    %c0_i32 = arith.constant 0 : i32
    %c0_i32_0 = arith.constant 0 : i32
    return %arg0, %c0_i32 : i32, i32
  }
  func.func @transform_1(%arg0: i32) -> (i32, i32) {
    %c0_i32 = arith.constant 0 : i32
    %c0_i32_0 = arith.constant 0 : i32
    %c0_i32_1 = arith.constant 0 : i32
    return %c0_i32, %c0_i32_0 : i32, i32
  }
  func.func @transform_2(%arg0: i32) -> (i32, i32) {
    %c0_i32 = arith.constant 0 : i32
    %c0_i32_0 = arith.constant 0 : i32
    %c0_i32_1 = arith.constant 0 : i32
    return %c0_i32, %c0_i32_0 : i32, i32
  }
  func.func @transform_3(%arg0: i32) -> (i32, i32) {
    %c0_i32 = arith.constant 0 : i32
    %c0_i32_0 = arith.constant 0 : i32
    %c0_i32_1 = arith.constant 0 : i32
    return %c0_i32, %c0_i32_0 : i32, i32
  }
  func.func @transform_4(%arg0: i32) -> (i32, i32) {
    %c0_i32 = arith.constant 0 : i32
    %c0_i32_0 = arith.constant 0 : i32
    %c0_i32_1 = arith.constant 0 : i32
    return %c0_i32, %c0_i32_0 : i32, i32
  }
  func.func @transform_5(%arg0: i32) -> (i32, i32) {
    %c0_i32 = arith.constant 0 : i32
    %c0_i32_0 = arith.constant 0 : i32
    %c0_i32_1 = arith.constant 0 : i32
    return %c0_i32, %c0_i32_0 : i32, i32
  }
  func.func @transform_6(%arg0: i32) -> (i32, i32) {
    %c0_i32 = arith.constant 0 : i32
    %c0_i32_0 = arith.constant 0 : i32
    %c0_i32_1 = arith.constant 0 : i32
    return %c0_i32, %c0_i32_0 : i32, i32
  }
  func.func @transform_7(%arg0: i32) -> (i32, i32) {
    %c0_i32 = arith.constant 0 : i32
    %c0_i32_0 = arith.constant 0 : i32
    %c0_i32_1 = arith.constant 0 : i32
    return %c0_i32, %c0_i32_0 : i32, i32
  }
  func.func @transform_8(%arg0: i32) -> (i32, i32) {
    %c0_i32 = arith.constant 0 : i32
    %c0_i32_0 = arith.constant 0 : i32
    %c0_i32_1 = arith.constant 0 : i32
    return %c0_i32, %c0_i32_0 : i32, i32
  }
  func.func @transform_9(%arg0: i32) -> (i32, i32) {
    %c0_i32 = arith.constant 0 : i32
    %c0_i32_0 = arith.constant 0 : i32
    %c0_i32_1 = arith.constant 0 : i32
    return %c0_i32, %c0_i32_0 : i32, i32
  }
  func.func @transform_10(%arg0: i32) -> (i32, i32) {
    %c0_i32 = arith.constant 0 : i32
    %c0_i32_0 = arith.constant 0 : i32
    %c0_i32_1 = arith.constant 0 : i32
    return %c0_i32, %c0_i32_0 : i32, i32
  }
  func.func @transform_11(%arg0: i32) -> (i32, i32) {
    %c0_i32 = arith.constant 0 : i32
    %c0_i32_0 = arith.constant 0 : i32
    return %arg0, %c0_i32 : i32, i32
  }
}

</mosaic_0001>

<llo_original>
// kernel: hz_model_forward.1
$region0: #{hz_model_forward.1}
  #allocation0 [shape = 'u32[]', space=smem, size = 0x4, offset = 0x4, fixed_abs, tag = 'smem constant byte address 0x4 - core index']
  #allocation1 [shape = 'u32[144,128]{1,0:T(1,128)}', space=vmem, size = 0x12000, scoped, tag = 'internal scratch']
  #allocation2 [shape = 'f32[1,1]{1,0:T(1,128)S(1)}', space=vmem, size = 0x200, scoped, tag = 'scoped memory for hz_model_forward.1']
  %s0 = inlined_call_operand.vmem [shape: f32[82,1], index: 0, kind: input, shape index: {}]
  %s1 = inlined_call_operand.vmem [shape: f32[1,64], index: 1, kind: input, shape index: {}]
  %s2 = inlined_call_operand.vmem [shape: f32[1,64], index: 2, kind: input, shape index: {}]
  %s3 = inlined_call_operand.vmem [shape: f32[64,128], index: 3, kind: input, shape index: {}]
  %s4 = inlined_call_operand.vmem [shape: f32[1,128], index: 4, kind: input, shape index: {}]
  %s5 = inlined_call_operand.vmem [shape: f32[128,640], index: 5, kind: input, shape index: {}]
  %s6 = inlined_call_operand.vmem [shape: f32[1,640], index: 6, kind: input, shape index: {}]
  %s7 = inlined_call_operand.vmem [shape: f32[640,320], index: 7, kind: input, shape index: {}]
  %s8 = inlined_call_operand.vmem [shape: f32[1,320], index: 8, kind: input, shape index: {}]
  %s9 = inlined_call_operand.vmem [shape: f32[320,1], index: 9, kind: input, shape index: {}]
  %s10 = inlined_call_operand.<no memory space> [shape: f32[1,1], index: 10, kind: input, shape index: {}]
  %s11 = inlined_call_operand.vmem [shape: f32[82,1], index: 11, kind: output, shape index: {}]
  %s12 = sld [smem:[#allocation0]]
  $region54: #{hz_model_forward.1} parent=0
    _
  %s14 = ssub.s32 1, %s12
  %s15 = scalar_select 0, %s14, %s12
  %v16 = vstv %s10
  %17 = vst [vmem:[#allocation2] sm:$0x1] %v16
  // Predicated region
  $region2: #{hz_model_forward.1} parent=0 // pred_check
    _
  $region3: #{hz_model_forward.1} parent=0 // pred_check_branch
    %19 = sbr.rel (0) target = $region5
  $region4: #{hz_model_forward.1} parent=0 // pred_region
    _
  $region5: #{hz_model_forward.1} parent=0 // pred_fallthru
    _
  // Predicated region
  $region6: #{hz_model_forward.1} parent=0 // pred_check
    _
  $region7: #{hz_model_forward.1} parent=0 // pred_check_branch
    %21 = sbr.rel (0) target = $region9
  $region8: #{hz_model_forward.1} parent=0 // pred_region
    _
  $region9: #{hz_model_forward.1} parent=0 // pred_fallthru
    _
  // Predicated region
  $region10: #{hz_model_forward.1} parent=0 // pred_check
    _
  $region11: #{hz_model_forward.1} parent=0 // pred_check_branch
    %23 = sbr.rel (0) target = $region13
  $region12: #{hz_model_forward.1} parent=0 // pred_region
    _
  $region13: #{hz_model_forward.1} parent=0 // pred_fallthru
    _
  // Predicated region
  $region14: #{hz_model_forward.1} parent=0 // pred_check
    _
  $region15: #{hz_model_forward.1} parent=0 // pred_check_branch
    %25 = sbr.rel (0) target = $region17
  $region16: #{hz_model_forward.1} parent=0 // pred_region
    _
  $region17: #{hz_model_forward.1} parent=0 // pred_fallthru
    _
  // Predicated region
  $region18: #{hz_model_forward.1} parent=0 // pred_check
    _
  $region19: #{hz_model_forward.1} parent=0 // pred_check_branch
    %27 = sbr.rel (0) target = $region21
  $region20: #{hz_model_forward.1} parent=0 // pred_region
    _
  $region21: #{hz_model_forward.1} parent=0 // pred_fallthru
    _
  // Predicated region
  $region22: #{hz_model_forward.1} parent=0 // pred_check
    _
  $region23: #{hz_model_forward.1} parent=0 // pred_check_branch
    %29 = sbr.rel (0) target = $region25
  $region24: #{hz_model_forward.1} parent=0 // pred_region
    _
  $region25: #{hz_model_forward.1} parent=0 // pred_fallthru
    _
  // Predicated region
  $region26: #{hz_model_forward.1} parent=0 // pred_check
    _
  $region27: #{hz_model_forward.1} parent=0 // pred_check_branch
    %31 = sbr.rel (0) target = $region29
  $region28: #{hz_model_forward.1} parent=0 // pred_region
    _
  $region29: #{hz_model_forward.1} parent=0 // pred_fallthru
    _
  // Predicated region
  $region30: #{hz_model_forward.1} parent=0 // pred_check
    _
  $region31: #{hz_model_forward.1} parent=0 // pred_check_branch
    %33 = sbr.rel (0) target = $region33
  $region32: #{hz_model_forward.1} parent=0 // pred_region
    _
  $region33: #{hz_model_forward.1} parent=0 // pred_fallthru
    _
  // Predicated region
  $region34: #{hz_model_forward.1} parent=0 // pred_check
    _
  $region35: #{hz_model_forward.1} parent=0 // pred_check_branch
    %35 = sbr.rel (0) target = $region37
  $region36: #{hz_model_forward.1} parent=0 // pred_region
    _
  $region37: #{hz_model_forward.1} parent=0 // pred_fallthru
    _
  // Predicated region
  $region38: #{hz_model_forward.1} parent=0 // pred_check
    _
  $region39: #{hz_model_forward.1} parent=0 // pred_check_branch
    %37 = sbr.rel (0) target = $region41
  $region40: #{hz_model_forward.1} parent=0 // pred_region
    _
  $region41: #{hz_model_forward.1} parent=0 // pred_fallthru
    _
  // Predicated region
  $region42: #{hz_model_forward.1} parent=0 // pred_check
    _
  $region43: #{hz_model_forward.1} parent=0 // pred_check_branch
    %39 = sbr.rel (0) target = $region45
  $region44: #{hz_model_forward.1} parent=0 // pred_region
    _
  $region45: #{hz_model_forward.1} parent=0 // pred_fallthru
    _
  %v40 = vld [vmem:[%s0] sm:$0xff]
  %v41 = vld [vmem:[%s0 + $0x8] sm:$0xff]
  %v42 = vld [vmem:[%s0 + $0x10] sm:$0xff]
  %v43 = vld [vmem:[%s0 + $0x18] sm:$0xff]
  %v44 = vld [vmem:[%s0 + $0x20] sm:$0xff]
  %v45 = vld [vmem:[%s0 + $0x28] sm:$0xff]
  %v46 = vld [vmem:[%s1] sm:$0x1]
  %48 = vset.pattern.permute.xlu0 0
  %49 = vperm.xlu0 %48, %v40
  %v50 = vpop.permute.xlu0 %49
  %53 = vset.pattern.permute.xlu0 0
  %54 = vperm.xlu0 %53, %v41
  %v55 = vpop.permute.xlu0 %54
  %58 = vset.pattern.permute.xlu0 0
  %59 = vperm.xlu0 %58, %v42
  %v60 = vpop.permute.xlu0 %59
  %63 = vset.pattern.permute.xlu0 0
  %64 = vperm.xlu0 %63, %v43
  %v65 = vpop.permute.xlu0 %64
  %68 = vset.pattern.permute.xlu0 0
  %69 = vperm.xlu0 %68, %v44
  %v70 = vpop.permute.xlu0 %69
  %73 = vset.pattern.permute.xlu0 0
  %74 = vperm.xlu0 %73, %v45
  %v75 = vpop.permute.xlu0 %74
  %v78 = vlaneseq
  %v79 = vshrl.u32 %v78, 7
  %v80 = vsub.s32 0, %v79
  %v81 = vrot.slane %v46, %v80
  %v83 = vmul.f32 %v50, %v81
  %v84 = vmul.f32 %v55, %v81
  %v85 = vmul.f32 %v60, %v81
  %v86 = vmul.f32 %v65, %v81
  %v87 = vmul.f32 %v70, %v81
  %v88 = vmul.f32 %v75, %v81
  %v89 = vld [vmem:[%s2] sm:$0x1]
  %v91 = vlaneseq
  %v92 = vshrl.u32 %v91, 7
  %v93 = vsub.s32 0, %v92
  %v94 = vrot.slane %v89, %v93
  %v96 = vadd.f32 %v83, %v94
  %v97 = vadd.f32 %v84, %v94
  %v98 = vadd.f32 %v85, %v94
  %v99 = vadd.f32 %v86, %v94
  %v100 = vadd.f32 %v87, %v94
  %v101 = vadd.f32 %v88, %v94
  %v102 = vmax.f32 %v96, 0.0
  %v103 = vmax.f32 %v97, 0.0
  %v104 = vmax.f32 %v98, 0.0
  %v105 = vmax.f32 %v99, 0.0
  %v106 = vmax.f32 %v100, 0.0
  %v107 = vmax.f32 %v101, 0.0
  %v108 = vld [vmem:[%s3] sm:$0xff]
  %v109 = vld [vmem:[%s3 + $0x8] sm:$0xff]
  %v110 = vld [vmem:[%s3 + $0x10] sm:$0xff]
  %v111 = vld [vmem:[%s3 + $0x18] sm:$0xff]
  %v112 = vld [vmem:[%s3 + $0x20] sm:$0xff]
  %v113 = vld [vmem:[%s3 + $0x28] sm:$0xff]
  %v114 = vld [vmem:[%s3 + $0x30] sm:$0xff]
  %v115 = vld [vmem:[%s3 + $0x38] sm:$0xff]
  %v116 = vld [vmem:[%s4] sm:$0x1]
  %v118 = vlaneseq
  %v119 = vshrl.u32 %v118, 7
  %v120 = vsub.s32 0, %v119
  %v121 = vrot.slane %v116, %v120
  %vm123 = vcmask 523264
  %v125 = vsel %vm123, %v102, 0
  %v128 = vsel %vm123, %v103, 0
  %v131 = vsel %vm123, %v104, 0
  %v134 = vsel %vm123, %v105, 0
  %v137 = vsel %vm123, %v106, 0
  %v140 = vsel %vm123, %v107, 0
  %142 = vmatprep.subr.mxu0 0.0
  %143 = vmatpush1.msra.mxu0 %v108
  %144 = vmatprep.subr.mxu0 0.0
  %145 = vmatpush1.msra.mxu0 %v109
  %146 = vmatprep.subr.mxu0 0.0
  %147 = vmatpush1.msra.mxu0 %v110
  %148 = vmatprep.subr.mxu0 0.0
  %149 = vmatpush1.msra.mxu0 %v111
  %150 = vmatprep.subr.mxu0 0.0
  %151 = vmatpush1.msra.mxu0 %v112
  %152 = vmatprep.subr.mxu0 0.0
  %153 = vmatpush1.msra.mxu0 %v113
  %154 = vmatprep.subr.mxu0 0.0
  %155 = vmatpush1.msra.mxu0 %v114
  %156 = vmatprep.subr.mxu0 0.0
  %157 = vmatpush1.msra.mxu0 %v115
  %158 = vmatprep.subr.mxu0 0.0
  %159 = vmatpush1.msra.mxu0 0.0
  %160 = vmatprep.subr.mxu0 0.0
  %161 = vmatpush1.msra.mxu0 0.0
  %162 = vmatprep.subr.mxu0 0.0
  %163 = vmatpush1.msra.mxu0 0.0
  %164 = vmatprep.subr.mxu0 0.0
  %165 = vmatpush1.msra.mxu0 0.0
  %166 = vmatprep.subr.mxu0 0.0
  %167 = vmatpush1.msra.mxu0 0.0
  %168 = vmatprep.subr.mxu0 0.0
  %169 = vmatpush1.msra.mxu0 0.0
  %170 = vmatprep.subr.mxu0 0.0
  %171 = vmatpush1.msra.mxu0 0.0
  %172 = vmatprep.subr.mxu0 0.0
  %173 = vmatpush1.msra.mxu0 0.0
  %174 = vmatprep.subr.mxu0 0.0
  %175 = vmatpush1.msra.mxu0 0.0
  %176 = vmatprep.subr.mxu0 0.0
  %177 = vmatpush1.msra.mxu0 0.0
  %178 = vmatprep.subr.mxu0 0.0
  %179 = vmatpush1.msra.mxu0 0.0
  %180 = vmatprep.subr.mxu0 0.0
  %181 = vmatpush1.msra.mxu0 0.0
  %182 = vmatprep.subr.mxu0 0.0
  %183 = vmatpush1.msra.mxu0 0.0
  %184 = vmatprep.subr.mxu0 0.0
  %185 = vmatpush1.msra.mxu0 0.0
  %186 = vmatprep.subr.mxu0 0.0
  %187 = vmatpush1.msra.mxu0 0.0
  %188 = vmatprep.subr.mxu0 0.0
  %189 = vmatpush1.msra.mxu0 0.0
  %190 = vmatprep.subr.mxu0 0.0
  %191 = vmatpush1.msra.mxu0 0.0
  %192 = vmatprep.subr.mxu0 0.0
  %193 = vmatpush1.msra.mxu0 0.0
  %194 = vmatprep.subr.mxu0 0.0
  %195 = vmatpush1.msra.mxu0 0.0
  %196 = vmatprep.subr.mxu0 0.0
  %197 = vmatpush1.msra.mxu0 0.0
  %198 = vmatprep.subr.mxu0 0.0
  %199 = vmatpush1.msra.mxu0 0.0
  %200 = vmatprep.subr.mxu0 0.0
  %201 = vmatpush1.msra.mxu0 0.0
  %202 = vmatprep.subr.mxu0 0.0
  %203 = vmatpush1.msra.mxu0 0.0
  %204 = vmatprep.subr.mxu0 0.0
  %205 = vmatpush1.msra.mxu0 0.0
  %206 = vmatprep.mubr.f32.mxu0 0.0
  %207 = vmatmul.mubr.f32.gmra.mrb[0].mxu0 %v125
  %v208 = vpop.f32.mrb[0].mxu0
  %v209 = vadd.f32 %v121, %v208
  %v210 = vpop.f32.mrb[0].mxu0
  %211 = vmatprep.mubr.f32.mxu0 0.0
  %212 = vmatmul.mubr.f32.gmra.mrb[0].mxu0 %v128
  %v213 = vpop.f32.mrb[0].mxu0
  %v214 = vadd.f32 %v121, %v213
  %v215 = vpop.f32.mrb[0].mxu0
  %216 = vmatprep.mubr.f32.mxu0 0.0
  %217 = vmatmul.mubr.f32.gmra.mrb[0].mxu0 %v131
  %v218 = vpop.f32.mrb[0].mxu0
  %v219 = vadd.f32 %v121, %v218
  %v220 = vpop.f32.mrb[0].mxu0
  %221 = vmatprep.mubr.f32.mxu0 0.0
  %222 = vmatmul.mubr.f32.gmra.mrb[0].mxu0 %v134
  %v223 = vpop.f32.mrb[0].mxu0
  %v224 = vadd.f32 %v121, %v223
  %v225 = vpop.f32.mrb[0].mxu0
  %226 = vmatprep.mubr.f32.mxu0 0.0
  %227 = vmatmul.mubr.f32.gmra.mrb[0].mxu0 %v137
  %v228 = vpop.f32.mrb[0].mxu0
  %v229 = vadd.f32 %v121, %v228
  %v230 = vpop.f32.mrb[0].mxu0
  %231 = vmatprep.mubr.f32.mxu0 0.0
  %232 = vmatmul.mubr.f32.gmra.mrb[0].mxu0 %v140
  %v233 = vpop.f32.mrb[0].mxu0
  %v234 = vadd.f32 %v121, %v233
  %v235 = vpop.f32.mrb[0].mxu0
  %236 = vdwg.mxu0
  %v237 = vxor.u32 %v209, 2147483648
  %v238 = vxor.u32 %v214, 2147483648
  %v239 = vxor.u32 %v219, 2147483648
  %v240 = vxor.u32 %v224, 2147483648
  %v241 = vxor.u32 %v229, 2147483648
  %v242 = vxor.u32 %v234, 2147483648
  %v243 = vmul.f32 %v237, 1.442695
  %v244 = vpow.pop %v243
  %v245 = vmul.f32 %v238, 1.442695
  %v246 = vpow.pop %v245
  %v247 = vmul.f32 %v239, 1.442695
  %v248 = vpow.pop %v247
  %v249 = vmul.f32 %v240, 1.442695
  %v250 = vpow.pop %v249
  %v251 = vmul.f32 %v241, 1.442695
  %v252 = vpow.pop %v251
  %v253 = vmul.f32 %v242, 1.442695
  %v254 = vpow.pop %v253
  %v255 = vadd.f32 %v244, 1.0
  %v256 = vadd.f32 %v246, 1.0
  %v257 = vadd.f32 %v248, 1.0
  %v258 = vadd.f32 %v250, 1.0
  %v259 = vadd.f32 %v252, 1.0
  %v260 = vadd.f32 %v254, 1.0
  %v261 = vrcp.pop %v255
  %v262 = vmul.f32 1.0, %v261
  %v263 = vrcp.pop %v256
  %v264 = vmul.f32 1.0, %v263
  %v265 = vrcp.pop %v257
  %v266 = vmul.f32 1.0, %v265
  %v267 = vrcp.pop %v258
  %v268 = vmul.f32 1.0, %v267
  %v269 = vrcp.pop %v259
  %v270 = vmul.f32 1.0, %v269
  %v271 = vrcp.pop %v260
  %v272 = vmul.f32 1.0, %v271
  %v273 = vld [vmem:[%s5] sm:$0xff]
  %v274 = vld [vmem:[%s5 + $0x8] sm:$0xff]
  %v275 = vld [vmem:[%s5 + $0x10] sm:$0xff]
  %v276 = vld [vmem:[%s5 + $0x18] sm:$0xff]
  %v277 = vld [vmem:[%s5 + $0x20] sm:$0xff]
  %v278 = vld [vmem:[%s5 + $0x28] sm:$0xff]
  %v279 = vld [vmem:[%s5 + $0x30] sm:$0xff]
  %v280 = vld [vmem:[%s5 + $0x38] sm:$0xff]
  %v281 = vld [vmem:[%s5 + $0x40] sm:$0xff]
  %v282 = vld [vmem:[%s5 + $0x48] sm:$0xff]
  %v283 = vld [vmem:[%s5 + $0x50] sm:$0xff]
  %v284 = vld [vmem:[%s5 + $0x58] sm:$0xff]
  %v285 = vld [vmem:[%s5 + $0x60] sm:$0xff]
  %v286 = vld [vmem:[%s5 + $0x68] sm:$0xff]
  %v287 = vld [vmem:[%s5 + $0x70] sm:$0xff]
  %v288 = vld [vmem:[%s5 + $0x78] sm:$0xff]
  %v289 = vld [vmem:[%s5 + $0x80] sm:$0xff]
  %v290 = vld [vmem:[%s5 + $0x88] sm:$0xff]
  %v291 = vld [vmem:[%s5 + $0x90] sm:$0xff]
  %v292 = vld [vmem:[%s5 + $0x98] sm:$0xff]
  %v293 = vld [vmem:[%s5 + $0xa0] sm:$0xff]
  %v294 = vld [vmem:[%s5 + $0xa8] sm:$0xff]
  %v295 = vld [vmem:[%s5 + $0xb0] sm:$0xff]
  %v296 = vld [vmem:[%s5 + $0xb8] sm:$0xff]
  %v297 = vld [vmem:[%s5 + $0xc0] sm:$0xff]
  %v298 = vld [vmem:[%s5 + $0xc8] sm:$0xff]
  %v299 = vld [vmem:[%s5 + $0xd0] sm:$0xff]
  %v300 = vld [vmem:[%s5 + $0xd8] sm:$0xff]
  %v301 = vld [vmem:[%s5 + $0xe0] sm:$0xff]
  %v302 = vld [vmem:[%s5 + $0xe8] sm:$0xff]
  %v303 = vld [vmem:[%s5 + $0xf0] sm:$0xff]
  %v304 = vld [vmem:[%s5 + $0xf8] sm:$0xff]
  %v305 = vld [vmem:[%s5 + $0x100] sm:$0xff]
  %v306 = vld [vmem:[%s5 + $0x108] sm:$0xff]
  %v307 = vld [vmem:[%s5 + $0x110] sm:$0xff]
  %v308 = vld [vmem:[%s5 + $0x118] sm:$0xff]
  %v309 = vld [vmem:[%s5 + $0x120] sm:$0xff]
  %v310 = vld [vmem:[%s5 + $0x128] sm:$0xff]
  %v311 = vld [vmem:[%s5 + $0x130] sm:$0xff]
  %v312 = vld [vmem:[%s5 + $0x138] sm:$0xff]
  %v313 = vld [vmem:[%s5 + $0x140] sm:$0xff]
  %v314 = vld [vmem:[%s5 + $0x148] sm:$0xff]
  %v315 = vld [vmem:[%s5 + $0x150] sm:$0xff]
  %v316 = vld [vmem:[%s5 + $0x158] sm:$0xff]
  %v317 = vld [vmem:[%s5 + $0x160] sm:$0xff]
  %v318 = vld [vmem:[%s5 + $0x168] sm:$0xff]
  %v319 = vld [vmem:[%s5 + $0x170] sm:$0xff]
  %v320 = vld [vmem:[%s5 + $0x178] sm:$0xff]
  %v321 = vld [vmem:[%s5 + $0x180] sm:$0xff]
  %v322 = vld [vmem:[%s5 + $0x188] sm:$0xff]
  %v323 = vld [vmem:[%s5 + $0x190] sm:$0xff]
  %v324 = vld [vmem:[%s5 + $0x198] sm:$0xff]
  %v325 = vld [vmem:[%s5 + $0x1a0] sm:$0xff]
  %v326 = vld [vmem:[%s5 + $0x1a8] sm:$0xff]
  %v327 = vld [vmem:[%s5 + $0x1b0] sm:$0xff]
  %v328 = vld [vmem:[%s5 + $0x1b8] sm:$0xff]
  %v329 = vld [vmem:[%s5 + $0x1c0] sm:$0xff]
  %v330 = vld [vmem:[%s5 + $0x1c8] sm:$0xff]
  %v331 = vld [vmem:[%s5 + $0x1d0] sm:$0xff]
  %v332 = vld [vmem:[%s5 + $0x1d8] sm:$0xff]
  %v333 = vld [vmem:[%s5 + $0x1e0] sm:$0xff]
  %v334 = vld [vmem:[%s5 + $0x1e8] sm:$0xff]
  %v335 = vld [vmem:[%s5 + $0x1f0] sm:$0xff]
  %v336 = vld [vmem:[%s5 + $0x1f8] sm:$0xff]
  %v337 = vld [vmem:[%s5 + $0x200] sm:$0xff]
  %v338 = vld [vmem:[%s5 + $0x208] sm:$0xff]
  %v339 = vld [vmem:[%s5 + $0x210] sm:$0xff]
  %v340 = vld [vmem:[%s5 + $0x218] sm:$0xff]
  %v341 = vld [vmem:[%s5 + $0x220] sm:$0xff]
  %v342 = vld [vmem:[%s5 + $0x228] sm:$0xff]
  %v343 = vld [vmem:[%s5 + $0x230] sm:$0xff]
  %v344 = vld [vmem:[%s5 + $0x238] sm:$0xff]
  %v345 = vld [vmem:[%s5 + $0x240] sm:$0xff]
  %v346 = vld [vmem:[%s5 + $0x248] sm:$0xff]
  %v347 = vld [vmem:[%s5 + $0x250] sm:$0xff]
  %v348 = vld [vmem:[%s5 + $0x258] sm:$0xff]
  %v349 = vld [vmem:[%s5 + $0x260] sm:$0xff]
  %v350 = vld [vmem:[%s5 + $0x268] sm:$0xff]
  %v351 = vld [vmem:[%s5 + $0x270] sm:$0xff]
  %v352 = vld [vmem:[%s5 + $0x278] sm:$0xff]
  %v353 = vld [vmem:[%s6] sm:$0x1f]
  %v355 = vlaneseq
  %v356 = vshrl.u32 %v355, 7
  %v357 = vsub.s32 0, %v356
  %v358 = vrot.slane %v353, %v357
  %v359 = vlaneseq
  %v360 = vshrl.u32 %v359, 7
  %v361 = vsub.s32 1, %v360
  %v362 = vrot.slane %v353, %v361
  %v363 = vlaneseq
  %v364 = vshrl.u32 %v363, 7
  %v365 = vsub.s32 2, %v364
  %v366 = vrot.slane %v353, %v365
  %v367 = vlaneseq
  %v368 = vshrl.u32 %v367, 7
  %v369 = vsub.s32 3, %v368
  %v370 = vrot.slane %v353, %v369
  %v371 = vlaneseq
  %v372 = vshrl.u32 %v371, 7
  %v373 = vsub.s32 4, %v372
  %v374 = vrot.slane %v353, %v373
  %380 = vmatprep.subr.mxu0 %v274
  %381 = vmatpush1.msra.mxu0 %v273
  %382 = vmatprep.subr.mxu0 %v279
  %383 = vmatpush1.msra.mxu0 %v278
  %384 = vmatprep.subr.mxu0 %v284
  %385 = vmatpush1.msra.mxu0 %v283
  %386 = vmatprep.subr.mxu0 %v289
  %387 = vmatpush1.msra.mxu0 %v288
  %388 = vmatprep.subr.mxu0 %v294
  %389 = vmatpush1.msra.mxu0 %v293
  %390 = vmatprep.subr.mxu0 %v299
  %391 = vmatpush1.msra.mxu0 %v298
  %392 = vmatprep.subr.mxu0 %v304
  %393 = vmatpush1.msra.mxu0 %v303
  %394 = vmatprep.subr.mxu0 %v309
  %395 = vmatpush1.msra.mxu0 %v308
  %396 = vmatprep.subr.mxu0 %v314
  %397 = vmatpush1.msra.mxu0 %v313
  %398 = vmatprep.subr.mxu0 %v319
  %399 = vmatpush1.msra.mxu0 %v318
  %400 = vmatprep.subr.mxu0 %v324
  %401 = vmatpush1.msra.mxu0 %v323
  %402 = vmatprep.subr.mxu0 %v329
  %403 = vmatpush1.msra.mxu0 %v328
  %404 = vmatprep.subr.mxu0 %v334
  %405 = vmatpush1.msra.mxu0 %v333
  %406 = vmatprep.subr.mxu0 %v339
  %407 = vmatpush1.msra.mxu0 %v338
  %408 = vmatprep.subr.mxu0 %v344
  %409 = vmatpush1.msra.mxu0 %v343
  %410 = vmatprep.subr.mxu0 %v349
  %411 = vmatpush1.msra.mxu0 %v348
  %412 = vmatprep.subr.mxu0 0.0
  %413 = vmatpush1.msra.mxu0 0.0
  %414 = vmatprep.subr.mxu0 0.0
  %415 = vmatpush1.msra.mxu0 0.0
  %416 = vmatprep.subr.mxu0 0.0
  %417 = vmatpush1.msra.mxu0 0.0
  %418 = vmatprep.subr.mxu0 0.0
  %419 = vmatpush1.msra.mxu0 0.0
  %420 = vmatprep.subr.mxu0 0.0
  %421 = vmatpush1.msra.mxu0 0.0
  %422 = vmatprep.subr.mxu0 0.0
  %423 = vmatpush1.msra.mxu0 0.0
  %424 = vmatprep.subr.mxu0 0.0
  %425 = vmatpush1.msra.mxu0 0.0
  %426 = vmatprep.subr.mxu0 0.0
  %427 = vmatpush1.msra.mxu0 0.0
  %428 = vmatprep.subr.mxu0 0.0
  %429 = vmatpush1.msra.mxu0 0.0
  %430 = vmatprep.subr.mxu0 0.0
  %431 = vmatpush1.msra.mxu0 0.0
  %432 = vmatprep.subr.mxu0 0.0
  %433 = vmatpush1.msra.mxu0 0.0
  %434 = vmatprep.subr.mxu0 0.0
  %435 = vmatpush1.msra.mxu0 0.0
  %436 = vmatprep.subr.mxu0 0.0
  %437 = vmatpush1.msra.mxu0 0.0
  %438 = vmatprep.subr.mxu0 0.0
  %439 = vmatpush1.msra.mxu0 0.0
  %440 = vmatprep.subr.mxu0 0.0
  %441 = vmatpush1.msra.mxu0 0.0
  %442 = vmatprep.subr.mxu0 0.0
  %443 = vmatpush1.msra.mxu0 0.0
  %444 = vmatprep.mubr.f32.mxu0 0.0
  %445 = vmatmul.mubr.f32.gmra.mrb[0].mxu0 %v262
  %v446 = vpop.f32.mrb[0].mxu0
  %v447 = vadd.f32 %v358, %v446
  %v448 = vpop.f32.mrb[0].mxu0
  %v449 = vadd.f32 %v362, %v448
  %450 = vmatprep.mubr.f32.mxu0 0.0
  %451 = vmatmul.mubr.f32.gmra.mrb[0].mxu0 %v264
  %v452 = vpop.f32.mrb[0].mxu0
  %v453 = vadd.f32 %v358, %v452
  %v454 = vpop.f32.mrb[0].mxu0
  %v455 = vadd.f32 %v362, %v454
  %456 = vmatprep.mubr.f32.mxu0 0.0
  %457 = vmatmul.mubr.f32.gmra.mrb[0].mxu0 %v266
  %v458 = vpop.f32.mrb[0].mxu0
  %v459 = vadd.f32 %v358, %v458
  %v460 = vpop.f32.mrb[0].mxu0
  %v461 = vadd.f32 %v362, %v460
  %462 = vmatprep.mubr.f32.mxu0 0.0
  %463 = vmatmul.mubr.f32.gmra.mrb[0].mxu0 %v268
  %v464 = vpop.f32.mrb[0].mxu0
  %v465 = vadd.f32 %v358, %v464
  %v466 = vpop.f32.mrb[0].mxu0
  %v467 = vadd.f32 %v362, %v466
  %468 = vmatprep.mubr.f32.mxu0 0.0
  %469 = vmatmul.mubr.f32.gmra.mrb[0].mxu0 %v270
  %v470 = vpop.f32.mrb[0].mxu0
  %v471 = vadd.f32 %v358, %v470
  %v472 = vpop.f32.mrb[0].mxu0
  %v473 = vadd.f32 %v362, %v472
  %474 = vmatprep.mubr.f32.mxu0 0.0
  %475 = vmatmul.mubr.f32.gmra.mrb[0].mxu0 %v272
  %v476 = vpop.f32.mrb[0].mxu0
  %v477 = vadd.f32 %v358, %v476
  %v478 = vpop.f32.mrb[0].mxu0
  %v479 = vadd.f32 %v362, %v478
  %480 = vdwg.mxu0
  %481 = vmatprep.subr.mxu0 %v276
  %482 = vmatpush1.msra.mxu0 %v275
  %483 = vmatprep.subr.mxu0 %v281
  %484 = vmatpush1.msra.mxu0 %v280
  %485 = vmatprep.subr.mxu0 %v286
  %486 = vmatpush1.msra.mxu0 %v285
  %487 = vmatprep.subr.mxu0 %v291
  %488 = vmatpush1.msra.mxu0 %v290
  %489 = vmatprep.subr.mxu0 %v296
  %490 = vmatpush1.msra.mxu0 %v295
  %491 = vmatprep.subr.mxu0 %v301
  %492 = vmatpush1.msra.mxu0 %v300
  %493 = vmatprep.subr.mxu0 %v306
  %494 = vmatpush1.msra.mxu0 %v305
  %495 = vmatprep.subr.mxu0 %v311
  %496 = vmatpush1.msra.mxu0 %v310
  %497 = vmatprep.subr.mxu0 %v316
  %498 = vmatpush1.msra.mxu0 %v315
  %499 = vmatprep.subr.mxu0 %v321
  %500 = vmatpush1.msra.mxu0 %v320
  %501 = vmatprep.subr.mxu0 %v326
  %502 = vmatpush1.msra.mxu0 %v325
  %503 = vmatprep.subr.mxu0 %v331
  %504 = vmatpush1.msra.mxu0 %v330
  %505 = vmatprep.subr.mxu0 %v336
  %506 = vmatpush1.msra.mxu0 %v335
  %507 = vmatprep.subr.mxu0 %v341
  %508 = vmatpush1.msra.mxu0 %v340
  %509 = vmatprep.subr.mxu0 %v346
  %510 = vmatpush1.msra.mxu0 %v345
  %511 = vmatprep.subr.mxu0 %v351
  %512 = vmatpush1.msra.mxu0 %v350
  %513 = vmatprep.subr.mxu0 0.0
  %514 = vmatpush1.msra.mxu0 0.0
  %515 = vmatprep.subr.mxu0 0.0
  %516 = vmatpush1.msra.mxu0 0.0
  %517 = vmatprep.subr.mxu0 0.0
  %518 = vmatpush1.msra.mxu0 0.0
  %519 = vmatprep.subr.mxu0 0.0
  %520 = vmatpush1.msra.mxu0 0.0
  %521 = vmatprep.subr.mxu0 0.0
  %522 = vmatpush1.msra.mxu0 0.0
  %523 = vmatprep.subr.mxu0 0.0
  %524 = vmatpush1.msra.mxu0 0.0
  %525 = vmatprep.subr.mxu0 0.0
  %526 = vmatpush1.msra.mxu0 0.0
  %527 = vmatprep.subr.mxu0 0.0
  %528 = vmatpush1.msra.mxu0 0.0
  %529 = vmatprep.subr.mxu0 0.0
  %530 = vmatpush1.msra.mxu0 0.0
  %531 = vmatprep.subr.mxu0 0.0
  %532 = vmatpush1.msra.mxu0 0.0
  %533 = vmatprep.subr.mxu0 0.0
  %534 = vmatpush1.msra.mxu0 0.0
  %535 = vmatprep.subr.mxu0 0.0
  %536 = vmatpush1.msra.mxu0 0.0
  %537 = vmatprep.subr.mxu0 0.0
  %538 = vmatpush1.msra.mxu0 0.0
  %539 = vmatprep.subr.mxu0 0.0
  %540 = vmatpush1.msra.mxu0 0.0
  %541 = vmatprep.subr.mxu0 0.0
  %542 = vmatpush1.msra.mxu0 0.0
  %543 = vmatprep.subr.mxu0 0.0
  %544 = vmatpush1.msra.mxu0 0.0
  %545 = vmatprep.mubr.f32.mxu0 0.0
  %546 = vmatmul.mubr.f32.gmra.mrb[0].mxu0 %v262
  %v547 = vpop.f32.mrb[0].mxu0
  %v548 = vadd.f32 %v366, %v547
  %v549 = vpop.f32.mrb[0].mxu0
  %v550 = vadd.f32 %v370, %v549
  %551 = vmatprep.mubr.f32.mxu0 0.0
  %552 = vmatmul.mubr.f32.gmra.mrb[0].mxu0 %v264
  %v553 = vpop.f32.mrb[0].mxu0
  %v554 = vadd.f32 %v366, %v553
  %v555 = vpop.f32.mrb[0].mxu0
  %v556 = vadd.f32 %v370, %v555
  %557 = vmatprep.mubr.f32.mxu0 0.0
  %558 = vmatmul.mubr.f32.gmra.mrb[0].mxu0 %v266
  %v559 = vpop.f32.mrb[0].mxu0
  %v560 = vadd.f32 %v366, %v559
  %v561 = vpop.f32.mrb[0].mxu0
  %v562 = vadd.f32 %v370, %v561
  %563 = vmatprep.mubr.f32.mxu0 0.0
  %564 = vmatmul.mubr.f32.gmra.mrb[0].mxu0 %v268
  %v565 = vpop.f32.mrb[0].mxu0
  %v566 = vadd.f32 %v366, %v565
  %v567 = vpop.f32.mrb[0].mxu0
  %v568 = vadd.f32 %v370, %v567
  %569 = vmatprep.mubr.f32.mxu0 0.0
  %570 = vmatmul.mubr.f32.gmra.mrb[0].mxu0 %v270
  %v571 = vpop.f32.mrb[0].mxu0
  %v572 = vadd.f32 %v366, %v571
  %v573 = vpop.f32.mrb[0].mxu0
  %v574 = vadd.f32 %v370, %v573
  %575 = vmatprep.mubr.f32.mxu0 0.0
  %576 = vmatmul.mubr.f32.gmra.mrb[0].mxu0 %v272
  %v577 = vpop.f32.mrb[0].mxu0
  %v578 = vadd.f32 %v366, %v577
  %v579 = vpop.f32.mrb[0].mxu0
  %v580 = vadd.f32 %v370, %v579
  %581 = vdwg.mxu0
  %582 = vmatprep.subr.mxu0 0.0
  %583 = vmatpush1.msra.mxu0 %v277
  %584 = vmatprep.subr.mxu0 0.0
  %585 = vmatpush1.msra.mxu0 %v282
  %586 = vmatprep.subr.mxu0 0.0
  %587 = vmatpush1.msra.mxu0 %v287
  %588 = vmatprep.subr.mxu0 0.0
  %589 = vmatpush1.msra.mxu0 %v292
  %590 = vmatprep.subr.mxu0 0.0
  %591 = vmatpush1.msra.mxu0 %v297
  %592 = vmatprep.subr.mxu0 0.0
  %593 = vmatpush1.msra.mxu0 %v302
  %594 = vmatprep.subr.mxu0 0.0
  %595 = vmatpush1.msra.mxu0 %v307
  %596 = vmatprep.subr.mxu0 0.0
  %597 = vmatpush1.msra.mxu0 %v312
  %598 = vmatprep.subr.mxu0 0.0
  %599 = vmatpush1.msra.mxu0 %v317
  %600 = vmatprep.subr.mxu0 0.0
  %601 = vmatpush1.msra.mxu0 %v322
  %602 = vmatprep.subr.mxu0 0.0
  %603 = vmatpush1.msra.mxu0 %v327
  %604 = vmatprep.subr.mxu0 0.0
  %605 = vmatpush1.msra.mxu0 %v332
  %606 = vmatprep.subr.mxu0 0.0
  %607 = vmatpush1.msra.mxu0 %v337
  %608 = vmatprep.subr.mxu0 0.0
  %609 = vmatpush1.msra.mxu0 %v342
  %610 = vmatprep.subr.mxu0 0.0
  %611 = vmatpush1.msra.mxu0 %v347
  %612 = vmatprep.subr.mxu0 0.0
  %613 = vmatpush1.msra.mxu0 %v352
  %614 = vmatprep.subr.mxu0 0.0
  %615 = vmatpush1.msra.mxu0 0.0
  %616 = vmatprep.subr.mxu0 0.0
  %617 = vmatpush1.msra.mxu0 0.0
  %618 = vmatprep.subr.mxu0 0.0
  %619 = vmatpush1.msra.mxu0 0.0
  %620 = vmatprep.subr.mxu0 0.0
  %621 = vmatpush1.msra.mxu0 0.0
  %622 = vmatprep.subr.mxu0 0.0
  %623 = vmatpush1.msra.mxu0 0.0
  %624 = vmatprep.subr.mxu0 0.0
  %625 = vmatpush1.msra.mxu0 0.0
  %626 = vmatprep.subr.mxu0 0.0
  %627 = vmatpush1.msra.mxu0 0.0
  %628 = vmatprep.subr.mxu0 0.0
  %629 = vmatpush1.msra.mxu0 0.0
  %630 = vmatprep.subr.mxu0 0.0
  %631 = vmatpush1.msra.mxu0 0.0
  %632 = vmatprep.subr.mxu0 0.0
  %633 = vmatpush1.msra.mxu0 0.0
  %634 = vmatprep.subr.mxu0 0.0
  %635 = vmatpush1.msra.mxu0 0.0
  %636 = vmatprep.subr.mxu0 0.0
  %637 = vmatpush1.msra.mxu0 0.0
  %638 = vmatprep.subr.mxu0 0.0
  %639 = vmatpush1.msra.mxu0 0.0
  %640 = vmatprep.subr.mxu0 0.0
  %641 = vmatpush1.msra.mxu0 0.0
  %642 = vmatprep.subr.mxu0 0.0
  %643 = vmatpush1.msra.mxu0 0.0
  %644 = vmatprep.subr.mxu0 0.0
  %645 = vmatpush1.msra.mxu0 0.0
  %646 = vmatprep.mubr.f32.mxu0 0.0
  %647 = vmatmul.mubr.f32.gmra.mrb[0].mxu0 %v262
  %v648 = vpop.f32.mrb[0].mxu0
  %v649 = vadd.f32 %v374, %v648
  %v650 = vpop.f32.mrb[0].mxu0
  %651 = vmatprep.mubr.f32.mxu0 0.0
  %652 = vmatmul.mubr.f32.gmra.mrb[0].mxu0 %v264
  %v653 = vpop.f32.mrb[0].mxu0
  %v654 = vadd.f32 %v374, %v653
  %v655 = vpop.f32.mrb[0].mxu0
  %656 = vmatprep.mubr.f32.mxu0 0.0
  %657 = vmatmul.mubr.f32.gmra.mrb[0].mxu0 %v266
  %v658 = vpop.f32.mrb[0].mxu0
  %v659 = vadd.f32 %v374, %v658
  %v660 = vpop.f32.mrb[0].mxu0
  %661 = vmatprep.mubr.f32.mxu0 0.0
  %662 = vmatmul.mubr.f32.gmra.mrb[0].mxu0 %v268
  %v663 = vpop.f32.mrb[0].mxu0
  %v664 = vadd.f32 %v374, %v663
  %v665 = vpop.f32.mrb[0].mxu0
  %666 = vmatprep.mubr.f32.mxu0 0.0
  %667 = vmatmul.mubr.f32.gmra.mrb[0].mxu0 %v270
  %v668 = vpop.f32.mrb[0].mxu0
  %v669 = vadd.f32 %v374, %v668
  %v670 = vpop.f32.mrb[0].mxu0
  %671 = vmatprep.mubr.f32.mxu0 0.0
  %672 = vmatmul.mubr.f32.gmra.mrb[0].mxu0 %v272
  %v673 = vpop.f32.mrb[0].mxu0
  %v674 = vadd.f32 %v374, %v673
  %v675 = vpop.f32.mrb[0].mxu0
  %676 = vdwg.mxu0
  %v677 = vtanh.pop %v447
  %v678 = vtanh.pop %v449
  %v679 = vtanh.pop %v548
  %v680 = vtanh.pop %v550
  %v681 = vtanh.pop %v649
  %v682 = vtanh.pop %v453
  %v683 = vtanh.pop %v455
  %v684 = vtanh.pop %v554
  %v685 = vtanh.pop %v556
  %v686 = vtanh.pop %v654
  %v687 = vtanh.pop %v459
  %v688 = vtanh.pop %v461
  %v689 = vtanh.pop %v560
  %v690 = vtanh.pop %v562
  %v691 = vtanh.pop %v659
  %v692 = vtanh.pop %v465
  %v693 = vtanh.pop %v467
  %v694 = vtanh.pop %v566
  %v695 = vtanh.pop %v568
  %v696 = vtanh.pop %v664
  %v697 = vtanh.pop %v471
  %v698 = vtanh.pop %v473
  %v699 = vtanh.pop %v572
  %v700 = vtanh.pop %v574
  %v701 = vtanh.pop %v669
  %v702 = vtanh.pop %v477
  %v703 = vtanh.pop %v479
  %v704 = vtanh.pop %v578
  %v705 = vtanh.pop %v580
  %v706 = vtanh.pop %v674
  %v707 = vld [vmem:[%s7] sm:$0xff]
  %v708 = vld [vmem:[%s7 + $0x8] sm:$0xff]
  %v709 = vld [vmem:[%s7 + $0x10] sm:$0xff]
  %v710 = vld [vmem:[%s7 + $0x18] sm:$0xff]
  %v711 = vld [vmem:[%s7 + $0x20] sm:$0xff]
  %v712 = vld [vmem:[%s7 + $0x28] sm:$0xff]
  %v713 = vld [vmem:[%s7 + $0x30] sm:$0xff]
  %v714 = vld [vmem:[%s7 + $0x38] sm:$0xff]
  %v715 = vld [vmem:[%s7 + $0x40] sm:$0xff]
  %v716 = vld [vmem:[%s7 + $0x48] sm:$0xff]
  %v717 = vld [vmem:[%s7 + $0x50] sm:$0xff]
  %v718 = vld [vmem:[%s7 + $0x58] sm:$0xff]
  %v719 = vld [vmem:[%s7 + $0x60] sm:$0xff]
  %v720 = vld [vmem:[%s7 + $0x68] sm:$0xff]
  %v721 = vld [vmem:[%s7 + $0x70] sm:$0xff]
  %v722 = vld [vmem:[%s7 + $0x78] sm:$0xff]
  %v723 = vld [vmem:[%s7 + $0x80] sm:$0xff]
  %v724 = vld [vmem:[%s7 + $0x88] sm:$0xff]
  %v725 = vld [vmem:[%s7 + $0x90] sm:$0xff]
  %v726 = vld [vmem:[%s7 + $0x98] sm:$0xff]
  %v727 = vld [vmem:[%s7 + $0xa0] sm:$0xff]
  %v728 = vld [vmem:[%s7 + $0xa8] sm:$0xff]
  %v729 = vld [vmem:[%s7 + $0xb0] sm:$0xff]
  %v730 = vld [vmem:[%s7 + $0xb8] sm:$0xff]
  %v731 = vld [vmem:[%s7 + $0xc0] sm:$0xff]
  %v732 = vld [vmem:[%s7 + $0xc8] sm:$0xff]
  %v733 = vld [vmem:[%s7 + $0xd0] sm:$0xff]
  %v734 = vld [vmem:[%s7 + $0xd8] sm:$0xff]
  %v735 = vld [vmem:[%s7 + $0xe0] sm:$0xff]
  %v736 = vld [vmem:[%s7 + $0xe8] sm:$0xff]
  %v737 = vld [vmem:[%s7 + $0xf0] sm:$0xff]
  %v738 = vld [vmem:[%s7 + $0xf8] sm:$0xff]
  %v739 = vld [vmem:[%s7 + $0x100] sm:$0xff]
  %v740 = vld [vmem:[%s7 + $0x108] sm:$0xff]
  %v741 = vld [vmem:[%s7 + $0x110] sm:$0xff]
  %v742 = vld [vmem:[%s7 + $0x118] sm:$0xff]
  %v743 = vld [vmem:[%s7 + $0x120] sm:$0xff]
  %v744 = vld [vmem:[%s7 + $0x128] sm:$0xff]
  %v745 = vld [vmem:[%s7 + $0x130] sm:$0xff]
  %v746 = vld [vmem:[%s7 + $0x138] sm:$0xff]
  %v747 = vld [vmem:[%s7 + $0x140] sm:$0xff]
  %v748 = vld [vmem:[%s7 + $0x148] sm:$0xff]
  %v749 = vld [vmem:[%s7 + $0x150] sm:$0xff]
  %v750 = vld [vmem:[%s7 + $0x158] sm:$0xff]
  %v751 = vld [vmem:[%s7 + $0x160] sm:$0xff]
  %v752 = vld [vmem:[%s7 + $0x168] sm:$0xff]
  %v753 = vld [vmem:[%s7 + $0x170] sm:$0xff]
  %v754 = vld [vmem:[%s7 + $0x178] sm:$0xff]
  %v755 = vld [vmem:[%s7 + $0x180] sm:$0xff]
  %v756 = vld [vmem:[%s7 + $0x188] sm:$0xff]
  %v757 = vld [vmem:[%s7 + $0x190] sm:$0xff]
  %v758 = vld [vmem:[%s7 + $0x198] sm:$0xff]
  %v759 = vld [vmem:[%s7 + $0x1a0] sm:$0xff]
  %v760 = vld [vmem:[%s7 + $0x1a8] sm:$0xff]
  %v761 = vld [vmem:[%s7 + $0x1b0] sm:$0xff]
  %v762 = vld [vmem:[%s7 + $0x1b8] sm:$0xff]
  %v763 = vld [vmem:[%s7 + $0x1c0] sm:$0xff]
  %v764 = vld [vmem:[%s7 + $0x1c8] sm:$0xff]
  %v765 = vld [vmem:[%s7 + $0x1d0] sm:$0xff]
  %v766 = vld [vmem:[%s7 + $0x1d8] sm:$0xff]
  %v767 = vld [vmem:[%s7 + $0x1e0] sm:$0xff]
  %v768 = vld [vmem:[%s7 + $0x1e8] sm:$0xff]
  %v769 = vld [vmem:[%s7 + $0x1f0] sm:$0xff]
  %v770 = vld [vmem:[%s7 + $0x1f8] sm:$0xff]
  %v771 = vld [vmem:[%s7 + $0x200] sm:$0xff]
  %v772 = vld [vmem:[%s7 + $0x208] sm:$0xff]
  %v773 = vld [vmem:[%s7 + $0x210] sm:$0xff]
  %v774 = vld [vmem:[%s7 + $0x218] sm:$0xff]
  %v775 = vld [vmem:[%s7 + $0x220] sm:$0xff]
  %v776 = vld [vmem:[%s7 + $0x228] sm:$0xff]
  %v777 = vld [vmem:[%s7 + $0x230] sm:$0xff]
  %v778 = vld [vmem:[%s7 + $0x238] sm:$0xff]
  %v779 = vld [vmem:[%s7 + $0x240] sm:$0xff]
  %v780 = vld [vmem:[%s7 + $0x248] sm:$0xff]
  %v781 = vld [vmem:[%s7 + $0x250] sm:$0xff]
  %v782 = vld [vmem:[%s7 + $0x258] sm:$0xff]
  %v783 = vld [vmem:[%s7 + $0x260] sm:$0xff]
  %v784 = vld [vmem:[%s7 + $0x268] sm:$0xff]
  %v785 = vld [vmem:[%s7 + $0x270] sm:$0xff]
  %v786 = vld [vmem:[%s7 + $0x278] sm:$0xff]
  %v787 = vld [vmem:[%s7 + $0x280] sm:$0xff]
  %v788 = vld [vmem:[%s7 + $0x288] sm:$0xff]
  %v789 = vld [vmem:[%s7 + $0x290] sm:$0xff]
  %v790 = vld [vmem:[%s7 + $0x298] sm:$0xff]
  %v791 = vld [vmem:[%s7 + $0x2a0] sm:$0xff]
  %v792 = vld [vmem:[%s7 + $0x2a8] sm:$0xff]
  %v793 = vld [vmem:[%s7 + $0x2b0] sm:$0xff]
  %v794 = vld [vmem:[%s7 + $0x2b8] sm:$0xff]
  %v795 = vld [vmem:[%s7 + $0x2c0] sm:$0xff]
  %v796 = vld [vmem:[%s7 + $0x2c8] sm:$0xff]
  %v797 = vld [vmem:[%s7 + $0x2d0] sm:$0xff]
  %v798 = vld [vmem:[%s7 + $0x2d8] sm:$0xff]
  %v799 = vld [vmem:[%s7 + $0x2e0] sm:$0xff]
  %v800 = vld [vmem:[%s7 + $0x2e8] sm:$0xff]
  %v801 = vld [vmem:[%s7 + $0x2f0] sm:$0xff]
  %v802 = vld [vmem:[%s7 + $0x2f8] sm:$0xff]
  %v803 = vld [vmem:[%s7 + $0x300] sm:$0xff]
  %v804 = vld [vmem:[%s7 + $0x308] sm:$0xff]
  %v805 = vld [vmem:[%s7 + $0x310] sm:$0xff]
  %v806 = vld [vmem:[%s7 + $0x318] sm:$0xff]
  %v807 = vld [vmem:[%s7 + $0x320] sm:$0xff]
  %v808 = vld [vmem:[%s7 + $0x328] sm:$0xff]
  %v809 = vld [vmem:[%s7 + $0x330] sm:$0xff]
  %v810 = vld [vmem:[%s7 + $0x338] sm:$0xff]
  %v811 = vld [vmem:[%s7 + $0x340] sm:$0xff]
  %v812 = vld [vmem:[%s7 + $0x348] sm:$0xff]
  %v813 = vld [vmem:[%s7 + $0x350] sm:$0xff]
  %v814 = vld [vmem:[%s7 + $0x358] sm:$0xff]
  %v815 = vld [vmem:[%s7 + $0x360] sm:$0xff]
  %v816 = vld [vmem:[%s7 + $0x368] sm:$0xff]
  %v817 = vld [vmem:[%s7 + $0x370] sm:$0xff]
  %v818 = vld [vmem:[%s7 + $0x378] sm:$0xff]
  %v819 = vld [vmem:[%s7 + $0x380] sm:$0xff]
  %v820 = vld [vmem:[%s7 + $0x388] sm:$0xff]
  %v821 = vld [vmem:[%s7 + $0x390] sm:$0xff]
  %v822 = vld [vmem:[%s7 + $0x398] sm:$0xff]
  %v823 = vld [vmem:[%s7 + $0x3a0] sm:$0xff]
  %v824 = vld [vmem:[%s7 + $0x3a8] sm:$0xff]
  %v825 = vld [vmem:[%s7 + $0x3b0] sm:$0xff]
  %v826 = vld [vmem:[%s7 + $0x3b8] sm:$0xff]
  %v827 = vld [vmem:[%s7 + $0x3c0] sm:$0xff]
  %v828 = vld [vmem:[%s7 + $0x3c8] sm:$0xff]
  %v829 = vld [vmem:[%s7 + $0x3d0] sm:$0xff]
  %v830 = vld [vmem:[%s7 + $0x3d8] sm:$0xff]
  %v831 = vld [vmem:[%s7 + $0x3e0] sm:$0xff]
  %v832 = vld [vmem:[%s7 + $0x3e8] sm:$0xff]
  %v833 = vld [vmem:[%s7 + $0x3f0] sm:$0xff]
  %v834 = vld [vmem:[%s7 + $0x3f8] sm:$0xff]
  %v835 = vld [vmem:[%s7 + $0x400] sm:$0xff]
  %v836 = vld [vmem:[%s7 + $0x408] sm:$0xff]
  %v837 = vld [vmem:[%s7 + $0x410] sm:$0xff]
  %v838 = vld [vmem:[%s7 + $0x418] sm:$0xff]
  %v839 = vld [vmem:[%s7 + $0x420] sm:$0xff]
  %v840 = vld [vmem:[%s7 + $0x428] sm:$0xff]
  %v841 = vld [vmem:[%s7 + $0x430] sm:$0xff]
  %v842 = vld [vmem:[%s7 + $0x438] sm:$0xff]
  %v843 = vld [vmem:[%s7 + $0x440] sm:$0xff]
  %v844 = vld [vmem:[%s7 + $0x448] sm:$0xff]
  %v845 = vld [vmem:[%s7 + $0x450] sm:$0xff]
  %v846 = vld [vmem:[%s7 + $0x458] sm:$0xff]
  %v847 = vld [vmem:[%s7 + $0x460] sm:$0xff]
  %v848 = vld [vmem:[%s7 + $0x468] sm:$0xff]
  %v849 = vld [vmem:[%s7 + $0x470] sm:$0xff]
  %v850 = vld [vmem:[%s7 + $0x478] sm:$0xff]
  %v851 = vld [vmem:[%s7 + $0x480] sm:$0xff]
  %v852 = vld [vmem:[%s7 + $0x488] sm:$0xff]
  %v853 = vld [vmem:[%s7 + $0x490] sm:$0xff]
  %v854 = vld [vmem:[%s7 + $0x498] sm:$0xff]
  %v855 = vld [vmem:[%s7 + $0x4a0] sm:$0xff]
  %v856 = vld [vmem:[%s7 + $0x4a8] sm:$0xff]
  %v857 = vld [vmem:[%s7 + $0x4b0] sm:$0xff]
  %v858 = vld [vmem:[%s7 + $0x4b8] sm:$0xff]
  %v859 = vld [vmem:[%s7 + $0x4c0] sm:$0xff]
  %v860 = vld [vmem:[%s7 + $0x4c8] sm:$0xff]
  %v861 = vld [vmem:[%s7 + $0x4d0] sm:$0xff]
  %v862 = vld [vmem:[%s7 + $0x4d8] sm:$0xff]
  %v863 = vld [vmem:[%s7 + $0x4e0] sm:$0xff]
  %v864 = vld [vmem:[%s7 + $0x4e8] sm:$0xff]
  %v865 = vld [vmem:[%s7 + $0x4f0] sm:$0xff]
  %v866 = vld [vmem:[%s7 + $0x4f8] sm:$0xff]
  %v867 = vld [vmem:[%s7 + $0x500] sm:$0xff]
  %v868 = vld [vmem:[%s7 + $0x508] sm:$0xff]
  %v869 = vld [vmem:[%s7 + $0x510] sm:$0xff]
  %v870 = vld [vmem:[%s7 + $0x518] sm:$0xff]
  %v871 = vld [vmem:[%s7 + $0x520] sm:$0xff]
  %v872 = vld [vmem:[%s7 + $0x528] sm:$0xff]
  %v873 = vld [vmem:[%s7 + $0x530] sm:$0xff]
  %v874 = vld [vmem:[%s7 + $0x538] sm:$0xff]
  %v875 = vld [vmem:[%s7 + $0x540] sm:$0xff]
  %v876 = vld [vmem:[%s7 + $0x548] sm:$0xff]
  %v877 = vld [vmem:[%s7 + $0x550] sm:$0xff]
  %v878 = vld [vmem:[%s7 + $0x558] sm:$0xff]
  %v879 = vld [vmem:[%s7 + $0x560] sm:$0xff]
  %v880 = vld [vmem:[%s7 + $0x568] sm:$0xff]
  %v881 = vld [vmem:[%s7 + $0x570] sm:$0xff]
  %v882 = vld [vmem:[%s7 + $0x578] sm:$0xff]
  %v883 = vld [vmem:[%s7 + $0x580] sm:$0xff]
  %v884 = vld [vmem:[%s7 + $0x588] sm:$0xff]
  %v885 = vld [vmem:[%s7 + $0x590] sm:$0xff]
  %v886 = vld [vmem:[%s7 + $0x598] sm:$0xff]
  %v887 = vld [vmem:[%s7 + $0x5a0] sm:$0xff]
  %v888 = vld [vmem:[%s7 + $0x5a8] sm:$0xff]
  %v889 = vld [vmem:[%s7 + $0x5b0] sm:$0xff]
  %v890 = vld [vmem:[%s7 + $0x5b8] sm:$0xff]
  %v891 = vld [vmem:[%s7 + $0x5c0] sm:$0xff]
  %v892 = vld [vmem:[%s7 + $0x5c8] sm:$0xff]
  %v893 = vld [vmem:[%s7 + $0x5d0] sm:$0xff]
  %v894 = vld [vmem:[%s7 + $0x5d8] sm:$0xff]
  %v895 = vld [vmem:[%s7 + $0x5e0] sm:$0xff]
  %v896 = vld [vmem:[%s7 + $0x5e8] sm:$0xff]
  %v897 = vld [vmem:[%s7 + $0x5f0] sm:$0xff]
  %v898 = vld [vmem:[%s7 + $0x5f8] sm:$0xff]
  %v899 = vld [vmem:[%s7 + $0x600] sm:$0xff]
  %v900 = vld [vmem:[%s7 + $0x608] sm:$0xff]
  %v901 = vld [vmem:[%s7 + $0x610] sm:$0xff]
  %v902 = vld [vmem:[%s7 + $0x618] sm:$0xff]
  %v903 = vld [vmem:[%s7 + $0x620] sm:$0xff]
  %v904 = vld [vmem:[%s7 + $0x628] sm:$0xff]
  %v905 = vld [vmem:[%s7 + $0x630] sm:$0xff]
  %v906 = vld [vmem:[%s7 + $0x638] sm:$0xff]
  %v907 = vld [vmem:[%s7 + $0x640] sm:$0xff]
  %v908 = vld [vmem:[%s7 + $0x648] sm:$0xff]
  %v909 = vld [vmem:[%s7 + $0x650] sm:$0xff]
  %v910 = vld [vmem:[%s7 + $0x658] sm:$0xff]
  %v911 = vld [vmem:[%s7 + $0x660] sm:$0xff]
  %v912 = vld [vmem:[%s7 + $0x668] sm:$0xff]
  %v913 = vld [vmem:[%s7 + $0x670] sm:$0xff]
  %v914 = vld [vmem:[%s7 + $0x678] sm:$0xff]
  %v915 = vld [vmem:[%s7 + $0x680] sm:$0xff]
  %v916 = vld [vmem:[%s7 + $0x688] sm:$0xff]
  %v917 = vld [vmem:[%s7 + $0x690] sm:$0xff]
  %v918 = vld [vmem:[%s7 + $0x698] sm:$0xff]
  %v919 = vld [vmem:[%s7 + $0x6a0] sm:$0xff]
  %v920 = vld [vmem:[%s7 + $0x6a8] sm:$0xff]
  %v921 = vld [vmem:[%s7 + $0x6b0] sm:$0xff]
  %v922 = vld [vmem:[%s7 + $0x6b8] sm:$0xff]
  %v923 = vld [vmem:[%s7 + $0x6c0] sm:$0xff]
  %v924 = vld [vmem:[%s7 + $0x6c8] sm:$0xff]
  %v925 = vld [vmem:[%s7 + $0x6d0] sm:$0xff]
  %v926 = vld [vmem:[%s7 + $0x6d8] sm:$0xff]
  %v927 = vld [vmem:[%s7 + $0x6e0] sm:$0xff]
  %v928 = vld [vmem:[%s7 + $0x6e8] sm:$0xff]
  %v929 = vld [vmem:[%s7 + $0x6f0] sm:$0xff]
  %v930 = vld [vmem:[%s7 + $0x6f8] sm:$0xff]
  %v931 = vld [vmem:[%s7 + $0x700] sm:$0xff]
  %v932 = vld [vmem:[%s7 + $0x708] sm:$0xff]
  %v933 = vld [vmem:[%s7 + $0x710] sm:$0xff]
  %v934 = vld [vmem:[%s7 + $0x718] sm:$0xff]
  %v935 = vld [vmem:[%s7 + $0x720] sm:$0xff]
  %v936 = vld [vmem:[%s7 + $0x728] sm:$0xff]
  %v937 = vld [vmem:[%s7 + $0x730] sm:$0xff]
  %v938 = vld [vmem:[%s7 + $0x738] sm:$0xff]
  %v939 = vld [vmem:[%s7 + $0x740] sm:$0xff]
  %v940 = vld [vmem:[%s7 + $0x748] sm:$0xff]
  %v941 = vld [vmem:[%s7 + $0x750] sm:$0xff]
  %v942 = vld [vmem:[%s7 + $0x758] sm:$0xff]
  %v943 = vld [vmem:[%s7 + $0x760] sm:$0xff]
  %v944 = vld [vmem:[%s7 + $0x768] sm:$0xff]
  %v945 = vld [vmem:[%s7 + $0x770] sm:$0xff]
  %v946 = vld [vmem:[%s7 + $0x778] sm:$0xff]
  %v947 = vld [vmem:[%s8] sm:$0x7]
  %v949 = vlaneseq
  %v950 = vshrl.u32 %v949, 7
  %v951 = vsub.s32 0, %v950
  %v952 = vrot.slane %v947, %v951
  %v953 = vlaneseq
  %v954 = vshrl.u32 %v953, 7
  %v955 = vsub.s32 1, %v954
  %v956 = vrot.slane %v947, %v955
  %v957 = vlaneseq
  %v958 = vshrl.u32 %v957, 7
  %v959 = vsub.s32 2, %v958
  %v960 = vrot.slane %v947, %v959
  %964 = vmatprep.subr.mxu0 %v708
  %965 = vmatpush1.msra.mxu0 %v707
  %966 = vmatprep.subr.mxu0 %v711
  %967 = vmatpush1.msra.mxu0 %v710
  %968 = vmatprep.subr.mxu0 %v714
  %969 = vmatpush1.msra.mxu0 %v713
  %970 = vmatprep.subr.mxu0 %v717
  %971 = vmatpush1.msra.mxu0 %v716
  %972 = vmatprep.subr.mxu0 %v720
  %973 = vmatpush1.msra.mxu0 %v719
  %974 = vmatprep.subr.mxu0 %v723
  %975 = vmatpush1.msra.mxu0 %v722
  %976 = vmatprep.subr.mxu0 %v726
  %977 = vmatpush1.msra.mxu0 %v725
  %978 = vmatprep.subr.mxu0 %v729
  %979 = vmatpush1.msra.mxu0 %v728
  %980 = vmatprep.subr.mxu0 %v732
  %981 = vmatpush1.msra.mxu0 %v731
  %982 = vmatprep.subr.mxu0 %v735
  %983 = vmatpush1.msra.mxu0 %v734
  %984 = vmatprep.subr.mxu0 %v738
  %985 = vmatpush1.msra.mxu0 %v737
  %986 = vmatprep.subr.mxu0 %v741
  %987 = vmatpush1.msra.mxu0 %v740
  %988 = vmatprep.subr.mxu0 %v744
  %989 = vmatpush1.msra.mxu0 %v743
  %990 = vmatprep.subr.mxu0 %v747
  %991 = vmatpush1.msra.mxu0 %v746
  %992 = vmatprep.subr.mxu0 %v750
  %993 = vmatpush1.msra.mxu0 %v749
  %994 = vmatprep.subr.mxu0 %v753
  %995 = vmatpush1.msra.mxu0 %v752
  %996 = vmatprep.subr.mxu0 %v756
  %997 = vmatpush1.msra.mxu0 %v755
  %998 = vmatprep.subr.mxu0 %v759
  %999 = vmatpush1.msra.mxu0 %v758
  %1000 = vmatprep.subr.mxu0 %v762
  %1001 = vmatpush1.msra.mxu0 %v761
  %1002 = vmatprep.subr.mxu0 %v765
  %1003 = vmatpush1.msra.mxu0 %v764
  %1004 = vmatprep.subr.mxu0 %v768
  %1005 = vmatpush1.msra.mxu0 %v767
  %1006 = vmatprep.subr.mxu0 %v771
  %1007 = vmatpush1.msra.mxu0 %v770
  %1008 = vmatprep.subr.mxu0 %v774
  %1009 = vmatpush1.msra.mxu0 %v773
  %1010 = vmatprep.subr.mxu0 %v777
  %1011 = vmatpush1.msra.mxu0 %v776
  %1012 = vmatprep.subr.mxu0 %v780
  %1013 = vmatpush1.msra.mxu0 %v779
  %1014 = vmatprep.subr.mxu0 %v783
  %1015 = vmatpush1.msra.mxu0 %v782
  %1016 = vmatprep.subr.mxu0 %v786
  %1017 = vmatpush1.msra.mxu0 %v785
  %1018 = vmatprep.subr.mxu0 %v789
  %1019 = vmatpush1.msra.mxu0 %v788
  %1020 = vmatprep.subr.mxu0 %v792
  %1021 = vmatpush1.msra.mxu0 %v791
  %1022 = vmatprep.subr.mxu0 %v795
  %1023 = vmatpush1.msra.mxu0 %v794
  %1024 = vmatprep.subr.mxu0 %v798
  %1025 = vmatpush1.msra.mxu0 %v797
  %1026 = vmatprep.subr.mxu0 %v801
  %1027 = vmatpush1.msra.mxu0 %v800
  %1028 = vmatprep.mubr.f32.mxu0 %v678
  %1029 = vmatmul.mubr.f32.gmra.mrb[0].mxu0 %v677
  %v1030 = vpop.f32.mrb[0].mxu0
  %v1031 = vadd.f32 %v952, %v1030
  %v1032 = vpop.f32.mrb[0].mxu0
  %v1033 = vadd.f32 %v956, %v1032
  %1034 = vmatprep.mubr.f32.mxu0 %v683
  %1035 = vmatmul.mubr.f32.gmra.mrb[0].mxu0 %v682
  %v1036 = vpop.f32.mrb[0].mxu0
  %v1037 = vadd.f32 %v952, %v1036
  %v1038 = vpop.f32.mrb[0].mxu0
  %v1039 = vadd.f32 %v956, %v1038
  %1040 = vmatprep.mubr.f32.mxu0 %v688
  %1041 = vmatmul.mubr.f32.gmra.mrb[0].mxu0 %v687
  %v1042 = vpop.f32.mrb[0].mxu0
  %v1043 = vadd.f32 %v952, %v1042
  %v1044 = vpop.f32.mrb[0].mxu0
  %v1045 = vadd.f32 %v956, %v1044
  %1046 = vmatprep.mubr.f32.mxu0 %v693
  %1047 = vmatmul.mubr.f32.gmra.mrb[0].mxu0 %v692
  %v1048 = vpop.f32.mrb[0].mxu0
  %v1049 = vadd.f32 %v952, %v1048
  %v1050 = vpop.f32.mrb[0].mxu0
  %v1051 = vadd.f32 %v956, %v1050
  %1052 = vmatprep.mubr.f32.mxu0 %v698
  %1053 = vmatmul.mubr.f32.gmra.mrb[0].mxu0 %v697
  %v1054 = vpop.f32.mrb[0].mxu0
  %v1055 = vadd.f32 %v952, %v1054
  %v1056 = vpop.f32.mrb[0].mxu0
  %v1057 = vadd.f32 %v956, %v1056
  %1058 = vmatprep.mubr.f32.mxu0 %v703
  %1059 = vmatmul.mubr.f32.gmra.mrb[0].mxu0 %v702
  %v1060 = vpop.f32.mrb[0].mxu0
  %v1061 = vadd.f32 %v952, %v1060
  %v1062 = vpop.f32.mrb[0].mxu0
  %v1063 = vadd.f32 %v956, %v1062
  %1064 = vdwg.mxu0
  %1065 = vmatprep.subr.mxu0 %v804
  %1066 = vmatpush1.msra.mxu0 %v803
  %1067 = vmatprep.subr.mxu0 %v807
  %1068 = vmatpush1.msra.mxu0 %v806
  %1069 = vmatprep.subr.mxu0 %v810
  %1070 = vmatpush1.msra.mxu0 %v809
  %1071 = vmatprep.subr.mxu0 %v813
  %1072 = vmatpush1.msra.mxu0 %v812
  %1073 = vmatprep.subr.mxu0 %v816
  %1074 = vmatpush1.msra.mxu0 %v815
  %1075 = vmatprep.subr.mxu0 %v819
  %1076 = vmatpush1.msra.mxu0 %v818
  %1077 = vmatprep.subr.mxu0 %v822
  %1078 = vmatpush1.msra.mxu0 %v821
  %1079 = vmatprep.subr.mxu0 %v825
  %1080 = vmatpush1.msra.mxu0 %v824
  %1081 = vmatprep.subr.mxu0 %v828
  %1082 = vmatpush1.msra.mxu0 %v827
  %1083 = vmatprep.subr.mxu0 %v831
  %1084 = vmatpush1.msra.mxu0 %v830
  %1085 = vmatprep.subr.mxu0 %v834
  %1086 = vmatpush1.msra.mxu0 %v833
  %1087 = vmatprep.subr.mxu0 %v837
  %1088 = vmatpush1.msra.mxu0 %v836
  %1089 = vmatprep.subr.mxu0 %v840
  %1090 = vmatpush1.msra.mxu0 %v839
  %1091 = vmatprep.subr.mxu0 %v843
  %1092 = vmatpush1.msra.mxu0 %v842
  %1093 = vmatprep.subr.mxu0 %v846
  %1094 = vmatpush1.msra.mxu0 %v845
  %1095 = vmatprep.subr.mxu0 %v849
  %1096 = vmatpush1.msra.mxu0 %v848
  %1097 = vmatprep.subr.mxu0 %v852
  %1098 = vmatpush1.msra.mxu0 %v851
  %1099 = vmatprep.subr.mxu0 %v855
  %1100 = vmatpush1.msra.mxu0 %v854
  %1101 = vmatprep.subr.mxu0 %v858
  %1102 = vmatpush1.msra.mxu0 %v857
  %1103 = vmatprep.subr.mxu0 %v861
  %1104 = vmatpush1.msra.mxu0 %v860
  %1105 = vmatprep.subr.mxu0 %v864
  %1106 = vmatpush1.msra.mxu0 %v863
  %1107 = vmatprep.subr.mxu0 %v867
  %1108 = vmatpush1.msra.mxu0 %v866
  %1109 = vmatprep.subr.mxu0 %v870
  %1110 = vmatpush1.msra.mxu0 %v869
  %1111 = vmatprep.subr.mxu0 %v873
  %1112 = vmatpush1.msra.mxu0 %v872
  %1113 = vmatprep.subr.mxu0 %v876
  %1114 = vmatpush1.msra.mxu0 %v875
  %1115 = vmatprep.subr.mxu0 %v879
  %1116 = vmatpush1.msra.mxu0 %v878
  %1117 = vmatprep.subr.mxu0 %v882
  %1118 = vmatpush1.msra.mxu0 %v881
  %1119 = vmatprep.subr.mxu0 %v885
  %1120 = vmatpush1.msra.mxu0 %v884
  %1121 = vmatprep.subr.mxu0 %v888
  %1122 = vmatpush1.msra.mxu0 %v887
  %1123 = vmatprep.subr.mxu0 %v891
  %1124 = vmatpush1.msra.mxu0 %v890
  %1125 = vmatprep.subr.mxu0 %v894
  %1126 = vmatpush1.msra.mxu0 %v893
  %1127 = vmatprep.subr.mxu0 %v897
  %1128 = vmatpush1.msra.mxu0 %v896
  %1129 = vmatprep.mubr.f32.mxu0 %v680
  %1130 = vmatmul.mubr.f32.gmra.mrb[0].mxu0 %v679
  %v1131 = vpop.f32.mrb[0].mxu0
  %v1132 = vadd.f32 %v1031, %v1131
  %v1133 = vpop.f32.mrb[0].mxu0
  %v1134 = vadd.f32 %v1033, %v1133
  %1135 = vmatprep.mubr.f32.mxu0 %v685
  %1136 = vmatmul.mubr.f32.gmra.mrb[0].mxu0 %v684
  %v1137 = vpop.f32.mrb[0].mxu0
  %v1138 = vadd.f32 %v1037, %v1137
  %v1139 = vpop.f32.mrb[0].mxu0
  %v1140 = vadd.f32 %v1039, %v1139
  %1141 = vmatprep.mubr.f32.mxu0 %v690
  %1142 = vmatmul.mubr.f32.gmra.mrb[0].mxu0 %v689
  %v1143 = vpop.f32.mrb[0].mxu0
  %v1144 = vadd.f32 %v1043, %v1143
  %v1145 = vpop.f32.mrb[0].mxu0
  %v1146 = vadd.f32 %v1045, %v1145
  %1147 = vmatprep.mubr.f32.mxu0 %v695
  %1148 = vmatmul.mubr.f32.gmra.mrb[0].mxu0 %v694
  %v1149 = vpop.f32.mrb[0].mxu0
  %v1150 = vadd.f32 %v1049, %v1149
  %v1151 = vpop.f32.mrb[0].mxu0
  %v1152 = vadd.f32 %v1051, %v1151
  %1153 = vmatprep.mubr.f32.mxu0 %v700
  %1154 = vmatmul.mubr.f32.gmra.mrb[0].mxu0 %v699
  %v1155 = vpop.f32.mrb[0].mxu0
  %v1156 = vadd.f32 %v1055, %v1155
  %v1157 = vpop.f32.mrb[0].mxu0
  %v1158 = vadd.f32 %v1057, %v1157
  %1159 = vmatprep.mubr.f32.mxu0 %v705
  %1160 = vmatmul.mubr.f32.gmra.mrb[0].mxu0 %v704
  %v1161 = vpop.f32.mrb[0].mxu0
  %v1162 = vadd.f32 %v1061, %v1161
  %v1163 = vpop.f32.mrb[0].mxu0
  %v1164 = vadd.f32 %v1063, %v1163
  %1165 = vdwg.mxu0
  %1166 = vmatprep.subr.mxu0 %v900
  %1167 = vmatpush1.msra.mxu0 %v899
  %1168 = vmatprep.subr.mxu0 %v903
  %1169 = vmatpush1.msra.mxu0 %v902
  %1170 = vmatprep.subr.mxu0 %v906
  %1171 = vmatpush1.msra.mxu0 %v905
  %1172 = vmatprep.subr.mxu0 %v909
  %1173 = vmatpush1.msra.mxu0 %v908
  %1174 = vmatprep.subr.mxu0 %v912
  %1175 = vmatpush1.msra.mxu0 %v911
  %1176 = vmatprep.subr.mxu0 %v915
  %1177 = vmatpush1.msra.mxu0 %v914
  %1178 = vmatprep.subr.mxu0 %v918
  %1179 = vmatpush1.msra.mxu0 %v917
  %1180 = vmatprep.subr.mxu0 %v921
  %1181 = vmatpush1.msra.mxu0 %v920
  %1182 = vmatprep.subr.mxu0 %v924
  %1183 = vmatpush1.msra.mxu0 %v923
  %1184 = vmatprep.subr.mxu0 %v927
  %1185 = vmatpush1.msra.mxu0 %v926
  %1186 = vmatprep.subr.mxu0 %v930
  %1187 = vmatpush1.msra.mxu0 %v929
  %1188 = vmatprep.subr.mxu0 %v933
  %1189 = vmatpush1.msra.mxu0 %v932
  %1190 = vmatprep.subr.mxu0 %v936
  %1191 = vmatpush1.msra.mxu0 %v935
  %1192 = vmatprep.subr.mxu0 %v939
  %1193 = vmatpush1.msra.mxu0 %v938
  %1194 = vmatprep.subr.mxu0 %v942
  %1195 = vmatpush1.msra.mxu0 %v941
  %1196 = vmatprep.subr.mxu0 %v945
  %1197 = vmatpush1.msra.mxu0 %v944
  %1198 = vmatprep.subr.mxu0 0.0
  %1199 = vmatpush1.msra.mxu0 0.0
  %1200 = vmatprep.subr.mxu0 0.0
  %1201 = vmatpush1.msra.mxu0 0.0
  %1202 = vmatprep.subr.mxu0 0.0
  %1203 = vmatpush1.msra.mxu0 0.0
  %1204 = vmatprep.subr.mxu0 0.0
  %1205 = vmatpush1.msra.mxu0 0.0
  %1206 = vmatprep.subr.mxu0 0.0
  %1207 = vmatpush1.msra.mxu0 0.0
  %1208 = vmatprep.subr.mxu0 0.0
  %1209 = vmatpush1.msra.mxu0 0.0
  %1210 = vmatprep.subr.mxu0 0.0
  %1211 = vmatpush1.msra.mxu0 0.0
  %1212 = vmatprep.subr.mxu0 0.0
  %1213 = vmatpush1.msra.mxu0 0.0
  %1214 = vmatprep.subr.mxu0 0.0
  %1215 = vmatpush1.msra.mxu0 0.0
  %1216 = vmatprep.subr.mxu0 0.0
  %1217 = vmatpush1.msra.mxu0 0.0
  %1218 = vmatprep.subr.mxu0 0.0
  %1219 = vmatpush1.msra.mxu0 0.0
  %1220 = vmatprep.subr.mxu0 0.0
  %1221 = vmatpush1.msra.mxu0 0.0
  %1222 = vmatprep.subr.mxu0 0.0
  %1223 = vmatpush1.msra.mxu0 0.0
  %1224 = vmatprep.subr.mxu0 0.0
  %1225 = vmatpush1.msra.mxu0 0.0
  %1226 = vmatprep.subr.mxu0 0.0
  %1227 = vmatpush1.msra.mxu0 0.0
  %1228 = vmatprep.subr.mxu0 0.0
  %1229 = vmatpush1.msra.mxu0 0.0
  %1230 = vmatprep.mubr.f32.mxu0 0.0
  %1231 = vmatmul.mubr.f32.gmra.mrb[0].mxu0 %v681
  %v1232 = vpop.f32.mrb[0].mxu0
  %v1233 = vadd.f32 %v1132, %v1232
  %v1234 = vpop.f32.mrb[0].mxu0
  %v1235 = vadd.f32 %v1134, %v1234
  %1236 = vmatprep.mubr.f32.mxu0 0.0
  %1237 = vmatmul.mubr.f32.gmra.mrb[0].mxu0 %v686
  %v1238 = vpop.f32.mrb[0].mxu0
  %v1239 = vadd.f32 %v1138, %v1238
  %v1240 = vpop.f32.mrb[0].mxu0
  %v1241 = vadd.f32 %v1140, %v1240
  %1242 = vmatprep.mubr.f32.mxu0 0.0
  %1243 = vmatmul.mubr.f32.gmra.mrb[0].mxu0 %v691
  %v1244 = vpop.f32.mrb[0].mxu0
  %v1245 = vadd.f32 %v1144, %v1244
  %v1246 = vpop.f32.mrb[0].mxu0
  %v1247 = vadd.f32 %v1146, %v1246
  %1248 = vmatprep.mubr.f32.mxu0 0.0
  %1249 = vmatmul.mubr.f32.gmra.mrb[0].mxu0 %v696
  %v1250 = vpop.f32.mrb[0].mxu0
  %v1251 = vadd.f32 %v1150, %v1250
  %v1252 = vpop.f32.mrb[0].mxu0
  %v1253 = vadd.f32 %v1152, %v1252
  %1254 = vmatprep.mubr.f32.mxu0 0.0
  %1255 = vmatmul.mubr.f32.gmra.mrb[0].mxu0 %v701
  %v1256 = vpop.f32.mrb[0].mxu0
  %v1257 = vadd.f32 %v1156, %v1256
  %v1258 = vpop.f32.mrb[0].mxu0
  %v1259 = vadd.f32 %v1158, %v1258
  %1260 = vmatprep.mubr.f32.mxu0 0.0
  %1261 = vmatmul.mubr.f32.gmra.mrb[0].mxu0 %v706
  %v1262 = vpop.f32.mrb[0].mxu0
  %v1263 = vadd.f32 %v1162, %v1262
  %v1264 = vpop.f32.mrb[0].mxu0
  %v1265 = vadd.f32 %v1164, %v1264
  %1266 = vdwg.mxu0
  %1267 = vmatprep.subr.mxu0 0.0
  %1268 = vmatpush1.msra.mxu0 %v709
  %1269 = vmatprep.subr.mxu0 0.0
  %1270 = vmatpush1.msra.mxu0 %v712
  %1271 = vmatprep.subr.mxu0 0.0
  %1272 = vmatpush1.msra.mxu0 %v715
  %1273 = vmatprep.subr.mxu0 0.0
  %1274 = vmatpush1.msra.mxu0 %v718
  %1275 = vmatprep.subr.mxu0 0.0
  %1276 = vmatpush1.msra.mxu0 %v721
  %1277 = vmatprep.subr.mxu0 0.0
  %1278 = vmatpush1.msra.mxu0 %v724
  %1279 = vmatprep.subr.mxu0 0.0
  %1280 = vmatpush1.msra.mxu0 %v727
  %1281 = vmatprep.subr.mxu0 0.0
  %1282 = vmatpush1.msra.mxu0 %v730
  %1283 = vmatprep.subr.mxu0 0.0
  %1284 = vmatpush1.msra.mxu0 %v733
  %1285 = vmatprep.subr.mxu0 0.0
  %1286 = vmatpush1.msra.mxu0 %v736
  %1287 = vmatprep.subr.mxu0 0.0
  %1288 = vmatpush1.msra.mxu0 %v739
  %1289 = vmatprep.subr.mxu0 0.0
  %1290 = vmatpush1.msra.mxu0 %v742
  %1291 = vmatprep.subr.mxu0 0.0
  %1292 = vmatpush1.msra.mxu0 %v745
  %1293 = vmatprep.subr.mxu0 0.0
  %1294 = vmatpush1.msra.mxu0 %v748
  %1295 = vmatprep.subr.mxu0 0.0
  %1296 = vmatpush1.msra.mxu0 %v751
  %1297 = vmatprep.subr.mxu0 0.0
  %1298 = vmatpush1.msra.mxu0 %v754
  %1299 = vmatprep.subr.mxu0 0.0
  %1300 = vmatpush1.msra.mxu0 %v757
  %1301 = vmatprep.subr.mxu0 0.0
  %1302 = vmatpush1.msra.mxu0 %v760
  %1303 = vmatprep.subr.mxu0 0.0
  %1304 = vmatpush1.msra.mxu0 %v763
  %1305 = vmatprep.subr.mxu0 0.0
  %1306 = vmatpush1.msra.mxu0 %v766
  %1307 = vmatprep.subr.mxu0 0.0
  %1308 = vmatpush1.msra.mxu0 %v769
  %1309 = vmatprep.subr.mxu0 0.0
  %1310 = vmatpush1.msra.mxu0 %v772
  %1311 = vmatprep.subr.mxu0 0.0
  %1312 = vmatpush1.msra.mxu0 %v775
  %1313 = vmatprep.subr.mxu0 0.0
  %1314 = vmatpush1.msra.mxu0 %v778
  %1315 = vmatprep.subr.mxu0 0.0
  %1316 = vmatpush1.msra.mxu0 %v781
  %1317 = vmatprep.subr.mxu0 0.0
  %1318 = vmatpush1.msra.mxu0 %v784
  %1319 = vmatprep.subr.mxu0 0.0
  %1320 = vmatpush1.msra.mxu0 %v787
  %1321 = vmatprep.subr.mxu0 0.0
  %1322 = vmatpush1.msra.mxu0 %v790
  %1323 = vmatprep.subr.mxu0 0.0
  %1324 = vmatpush1.msra.mxu0 %v793
  %1325 = vmatprep.subr.mxu0 0.0
  %1326 = vmatpush1.msra.mxu0 %v796
  %1327 = vmatprep.subr.mxu0 0.0
  %1328 = vmatpush1.msra.mxu0 %v799
  %1329 = vmatprep.subr.mxu0 0.0
  %1330 = vmatpush1.msra.mxu0 %v802
  %1331 = vmatprep.mubr.f32.mxu0 %v678
  %1332 = vmatmul.mubr.f32.gmra.mrb[0].mxu0 %v677
  %v1333 = vpop.f32.mrb[0].mxu0
  %v1334 = vadd.f32 %v960, %v1333
  %v1335 = vpop.f32.mrb[0].mxu0
  %1336 = vmatprep.mubr.f32.mxu0 %v683
  %1337 = vmatmul.mubr.f32.gmra.mrb[0].mxu0 %v682
  %v1338 = vpop.f32.mrb[0].mxu0
  %v1339 = vadd.f32 %v960, %v1338
  %v1340 = vpop.f32.mrb[0].mxu0
  %1341 = vmatprep.mubr.f32.mxu0 %v688
  %1342 = vmatmul.mubr.f32.gmra.mrb[0].mxu0 %v687
  %v1343 = vpop.f32.mrb[0].mxu0
  %v1344 = vadd.f32 %v960, %v1343
  %v1345 = vpop.f32.mrb[0].mxu0
  %1346 = vmatprep.mubr.f32.mxu0 %v693
  %1347 = vmatmul.mubr.f32.gmra.mrb[0].mxu0 %v692
  %v1348 = vpop.f32.mrb[0].mxu0
  %v1349 = vadd.f32 %v960, %v1348
  %v1350 = vpop.f32.mrb[0].mxu0
  %1351 = vmatprep.mubr.f32.mxu0 %v698
  %1352 = vmatmul.mubr.f32.gmra.mrb[0].mxu0 %v697
  %v1353 = vpop.f32.mrb[0].mxu0
  %v1354 = vadd.f32 %v960, %v1353
  %v1355 = vpop.f32.mrb[0].mxu0
  %1356 = vmatprep.mubr.f32.mxu0 %v703
  %1357 = vmatmul.mubr.f32.gmra.mrb[0].mxu0 %v702
  %v1358 = vpop.f32.mrb[0].mxu0
  %v1359 = vadd.f32 %v960, %v1358
  %v1360 = vpop.f32.mrb[0].mxu0
  %1361 = vdwg.mxu0
  %1362 = vmatprep.subr.mxu0 0.0
  %1363 = vmatpush1.msra.mxu0 %v805
  %1364 = vmatprep.subr.mxu0 0.0
  %1365 = vmatpush1.msra.mxu0 %v808
  %1366 = vmatprep.subr.mxu0 0.0
  %1367 = vmatpush1.msra.mxu0 %v811
  %1368 = vmatprep.subr.mxu0 0.0
  %1369 = vmatpush1.msra.mxu0 %v814
  %1370 = vmatprep.subr.mxu0 0.0
  %1371 = vmatpush1.msra.mxu0 %v817
  %1372 = vmatprep.subr.mxu0 0.0
  %1373 = vmatpush1.msra.mxu0 %v820
  %1374 = vmatprep.subr.mxu0 0.0
  %1375 = vmatpush1.msra.mxu0 %v823
  %1376 = vmatprep.subr.mxu0 0.0
  %1377 = vmatpush1.msra.mxu0 %v826
  %1378 = vmatprep.subr.mxu0 0.0
  %1379 = vmatpush1.msra.mxu0 %v829
  %1380 = vmatprep.subr.mxu0 0.0
  %1381 = vmatpush1.msra.mxu0 %v832
  %1382 = vmatprep.subr.mxu0 0.0
  %1383 = vmatpush1.msra.mxu0 %v835
  %1384 = vmatprep.subr.mxu0 0.0
  %1385 = vmatpush1.msra.mxu0 %v838
  %1386 = vmatprep.subr.mxu0 0.0
  %1387 = vmatpush1.msra.mxu0 %v841
  %1388 = vmatprep.subr.mxu0 0.0
  %1389 = vmatpush1.msra.mxu0 %v844
  %1390 = vmatprep.subr.mxu0 0.0
  %1391 = vmatpush1.msra.mxu0 %v847
  %1392 = vmatprep.subr.mxu0 0.0
  %1393 = vmatpush1.msra.mxu0 %v850
  %1394 = vmatprep.subr.mxu0 0.0
  %1395 = vmatpush1.msra.mxu0 %v853
  %1396 = vmatprep.subr.mxu0 0.0
  %1397 = vmatpush1.msra.mxu0 %v856
  %1398 = vmatprep.subr.mxu0 0.0
  %1399 = vmatpush1.msra.mxu0 %v859
  %1400 = vmatprep.subr.mxu0 0.0
  %1401 = vmatpush1.msra.mxu0 %v862
  %1402 = vmatprep.subr.mxu0 0.0
  %1403 = vmatpush1.msra.mxu0 %v865
  %1404 = vmatprep.subr.mxu0 0.0
  %1405 = vmatpush1.msra.mxu0 %v868
  %1406 = vmatprep.subr.mxu0 0.0
  %1407 = vmatpush1.msra.mxu0 %v871
  %1408 = vmatprep.subr.mxu0 0.0
  %1409 = vmatpush1.msra.mxu0 %v874
  %1410 = vmatprep.subr.mxu0 0.0
  %1411 = vmatpush1.msra.mxu0 %v877
  %1412 = vmatprep.subr.mxu0 0.0
  %1413 = vmatpush1.msra.mxu0 %v880
  %1414 = vmatprep.subr.mxu0 0.0
  %1415 = vmatpush1.msra.mxu0 %v883
  %1416 = vmatprep.subr.mxu0 0.0
  %1417 = vmatpush1.msra.mxu0 %v886
  %1418 = vmatprep.subr.mxu0 0.0
  %1419 = vmatpush1.msra.mxu0 %v889
  %1420 = vmatprep.subr.mxu0 0.0
  %1421 = vmatpush1.msra.mxu0 %v892
  %1422 = vmatprep.subr.mxu0 0.0
  %1423 = vmatpush1.msra.mxu0 %v895
  %1424 = vmatprep.subr.mxu0 0.0
  %1425 = vmatpush1.msra.mxu0 %v898
  %1426 = vmatprep.mubr.f32.mxu0 %v680
  %1427 = vmatmul.mubr.f32.gmra.mrb[0].mxu0 %v679
  %v1428 = vpop.f32.mrb[0].mxu0
  %v1429 = vadd.f32 %v1334, %v1428
  %v1430 = vpop.f32.mrb[0].mxu0
  %1431 = vmatprep.mubr.f32.mxu0 %v685
  %1432 = vmatmul.mubr.f32.gmra.mrb[0].mxu0 %v684
  %v1433 = vpop.f32.mrb[0].mxu0
  %v1434 = vadd.f32 %v1339, %v1433
  %v1435 = vpop.f32.mrb[0].mxu0
  %1436 = vmatprep.mubr.f32.mxu0 %v690
  %1437 = vmatmul.mubr.f32.gmra.mrb[0].mxu0 %v689
  %v1438 = vpop.f32.mrb[0].mxu0
  %v1439 = vadd.f32 %v1344, %v1438
  %v1440 = vpop.f32.mrb[0].mxu0
  %1441 = vmatprep.mubr.f32.mxu0 %v695
  %1442 = vmatmul.mubr.f32.gmra.mrb[0].mxu0 %v694
  %v1443 = vpop.f32.mrb[0].mxu0
  %v1444 = vadd.f32 %v1349, %v1443
  %v1445 = vpop.f32.mrb[0].mxu0
  %1446 = vmatprep.mubr.f32.mxu0 %v700
  %1447 = vmatmul.mubr.f32.gmra.mrb[0].mxu0 %v699
  %v1448 = vpop.f32.mrb[0].mxu0
  %v1449 = vadd.f32 %v1354, %v1448
  %v1450 = vpop.f32.mrb[0].mxu0
  %1451 = vmatprep.mubr.f32.mxu0 %v705
  %1452 = vmatmul.mubr.f32.gmra.mrb[0].mxu0 %v704
  %v1453 = vpop.f32.mrb[0].mxu0
  %v1454 = vadd.f32 %v1359, %v1453
  %v1455 = vpop.f32.mrb[0].mxu0
  %1456 = vdwg.mxu0
  %1457 = vmatprep.subr.mxu0 0.0
  %1458 = vmatpush1.msra.mxu0 %v901
  %1459 = vmatprep.subr.mxu0 0.0
  %1460 = vmatpush1.msra.mxu0 %v904
  %1461 = vmatprep.subr.mxu0 0.0
  %1462 = vmatpush1.msra.mxu0 %v907
  %1463 = vmatprep.subr.mxu0 0.0
  %1464 = vmatpush1.msra.mxu0 %v910
  %1465 = vmatprep.subr.mxu0 0.0
  %1466 = vmatpush1.msra.mxu0 %v913
  %1467 = vmatprep.subr.mxu0 0.0
  %1468 = vmatpush1.msra.mxu0 %v916
  %1469 = vmatprep.subr.mxu0 0.0
  %1470 = vmatpush1.msra.mxu0 %v919
  %1471 = vmatprep.subr.mxu0 0.0
  %1472 = vmatpush1.msra.mxu0 %v922
  %1473 = vmatprep.subr.mxu0 0.0
  %1474 = vmatpush1.msra.mxu0 %v925
  %1475 = vmatprep.subr.mxu0 0.0
  %1476 = vmatpush1.msra.mxu0 %v928
  %1477 = vmatprep.subr.mxu0 0.0
  %1478 = vmatpush1.msra.mxu0 %v931
  %1479 = vmatprep.subr.mxu0 0.0
  %1480 = vmatpush1.msra.mxu0 %v934
  %1481 = vmatprep.subr.mxu0 0.0
  %1482 = vmatpush1.msra.mxu0 %v937
  %1483 = vmatprep.subr.mxu0 0.0
  %1484 = vmatpush1.msra.mxu0 %v940
  %1485 = vmatprep.subr.mxu0 0.0
  %1486 = vmatpush1.msra.mxu0 %v943
  %1487 = vmatprep.subr.mxu0 0.0
  %1488 = vmatpush1.msra.mxu0 %v946
  %1489 = vmatprep.subr.mxu0 0.0
  %1490 = vmatpush1.msra.mxu0 0.0
  %1491 = vmatprep.subr.mxu0 0.0
  %1492 = vmatpush1.msra.mxu0 0.0
  %1493 = vmatprep.subr.mxu0 0.0
  %1494 = vmatpush1.msra.mxu0 0.0
  %1495 = vmatprep.subr.mxu0 0.0
  %1496 = vmatpush1.msra.mxu0 0.0
  %1497 = vmatprep.subr.mxu0 0.0
  %1498 = vmatpush1.msra.mxu0 0.0
  %1499 = vmatprep.subr.mxu0 0.0
  %1500 = vmatpush1.msra.mxu0 0.0
  %1501 = vmatprep.subr.mxu0 0.0
  %1502 = vmatpush1.msra.mxu0 0.0
  %1503 = vmatprep.subr.mxu0 0.0
  %1504 = vmatpush1.msra.mxu0 0.0
  %1505 = vmatprep.subr.mxu0 0.0
  %1506 = vmatpush1.msra.mxu0 0.0
  %1507 = vmatprep.subr.mxu0 0.0
  %1508 = vmatpush1.msra.mxu0 0.0
  %1509 = vmatprep.subr.mxu0 0.0
  %1510 = vmatpush1.msra.mxu0 0.0
  %1511 = vmatprep.subr.mxu0 0.0
  %1512 = vmatpush1.msra.mxu0 0.0
  %1513 = vmatprep.subr.mxu0 0.0
  %1514 = vmatpush1.msra.mxu0 0.0
  %1515 = vmatprep.subr.mxu0 0.0
  %1516 = vmatpush1.msra.mxu0 0.0
  %1517 = vmatprep.subr.mxu0 0.0
  %1518 = vmatpush1.msra.mxu0 0.0
  %1519 = vmatprep.subr.mxu0 0.0
  %1520 = vmatpush1.msra.mxu0 0.0
  %1521 = vmatprep.mubr.f32.mxu0 0.0
  %1522 = vmatmul.mubr.f32.gmra.mrb[0].mxu0 %v681
  %v1523 = vpop.f32.mrb[0].mxu0
  %v1524 = vadd.f32 %v1429, %v1523
  %v1525 = vpop.f32.mrb[0].mxu0
  %1526 = vmatprep.mubr.f32.mxu0 0.0
  %1527 = vmatmul.mubr.f32.gmra.mrb[0].mxu0 %v686
  %v1528 = vpop.f32.mrb[0].mxu0
  %v1529 = vadd.f32 %v1434, %v1528
  %v1530 = vpop.f32.mrb[0].mxu0
  %1531 = vmatprep.mubr.f32.mxu0 0.0
  %1532 = vmatmul.mubr.f32.gmra.mrb[0].mxu0 %v691
  %v1533 = vpop.f32.mrb[0].mxu0
  %v1534 = vadd.f32 %v1439, %v1533
  %v1535 = vpop.f32.mrb[0].mxu0
  %1536 = vmatprep.mubr.f32.mxu0 0.0
  %1537 = vmatmul.mubr.f32.gmra.mrb[0].mxu0 %v696
  %v1538 = vpop.f32.mrb[0].mxu0
  %v1539 = vadd.f32 %v1444, %v1538
  %v1540 = vpop.f32.mrb[0].mxu0
  %1541 = vmatprep.mubr.f32.mxu0 0.0
  %1542 = vmatmul.mubr.f32.gmra.mrb[0].mxu0 %v701
  %v1543 = vpop.f32.mrb[0].mxu0
  %v1544 = vadd.f32 %v1449, %v1543
  %v1545 = vpop.f32.mrb[0].mxu0
  %1546 = vmatprep.mubr.f32.mxu0 0.0
  %1547 = vmatmul.mubr.f32.gmra.mrb[0].mxu0 %v706
  %v1548 = vpop.f32.mrb[0].mxu0
  %v1549 = vadd.f32 %v1454, %v1548
  %v1550 = vpop.f32.mrb[0].mxu0
  %1551 = vdwg.mxu0
  %v1552 = vmax.f32 %v1233, 0.0
  %v1553 = vmax.f32 %v1235, 0.0
  %v1554 = vmax.f32 %v1524, 0.0
  %v1555 = vmax.f32 %v1239, 0.0
  %v1556 = vmax.f32 %v1241, 0.0
  %v1557 = vmax.f32 %v1529, 0.0
  %v1558 = vmax.f32 %v1245, 0.0
  %v1559 = vmax.f32 %v1247, 0.0
  %v1560 = vmax.f32 %v1534, 0.0
  %v1561 = vmax.f32 %v1251, 0.0
  %v1562 = vmax.f32 %v1253, 0.0
  %v1563 = vmax.f32 %v1539, 0.0
  %v1564 = vmax.f32 %v1257, 0.0
  %v1565 = vmax.f32 %v1259, 0.0
  %v1566 = vmax.f32 %v1544, 0.0
  %v1567 = vmax.f32 %v1263, 0.0
  %v1568 = vmax.f32 %v1265, 0.0
  %v1569 = vmax.f32 %v1549, 0.0
  %v1570 = vld [vmem:[%s9] sm:$0xff]
  %v1571 = vld [vmem:[%s9 + $0x8] sm:$0xff]
  %v1572 = vld [vmem:[%s9 + $0x10] sm:$0xff]
  %v1573 = vld [vmem:[%s9 + $0x18] sm:$0xff]
  %v1574 = vld [vmem:[%s9 + $0x20] sm:$0xff]
  %v1575 = vld [vmem:[%s9 + $0x28] sm:$0xff]
  %v1576 = vld [vmem:[%s9 + $0x30] sm:$0xff]
  %v1577 = vld [vmem:[%s9 + $0x38] sm:$0xff]
  %v1578 = vld [vmem:[%s9 + $0x40] sm:$0xff]
  %v1579 = vld [vmem:[%s9 + $0x48] sm:$0xff]
  %v1580 = vld [vmem:[%s9 + $0x50] sm:$0xff]
  %v1581 = vld [vmem:[%s9 + $0x58] sm:$0xff]
  %v1582 = vld [vmem:[%s9 + $0x60] sm:$0xff]
  %v1583 = vld [vmem:[%s9 + $0x68] sm:$0xff]
  %v1584 = vld [vmem:[%s9 + $0x70] sm:$0xff]
  %v1585 = vld [vmem:[%s9 + $0x78] sm:$0xff]
  %v1586 = vld [vmem:[%s9 + $0x80] sm:$0xff]
  %v1587 = vld [vmem:[%s9 + $0x88] sm:$0xff]
  %v1588 = vld [vmem:[%s9 + $0x90] sm:$0xff]
  %v1589 = vld [vmem:[%s9 + $0x98] sm:$0xff]
  %v1590 = vld [vmem:[%s9 + $0xa0] sm:$0xff]
  %v1591 = vld [vmem:[%s9 + $0xa8] sm:$0xff]
  %v1592 = vld [vmem:[%s9 + $0xb0] sm:$0xff]
  %v1593 = vld [vmem:[%s9 + $0xb8] sm:$0xff]
  %v1594 = vld [vmem:[%s9 + $0xc0] sm:$0xff]
  %v1595 = vld [vmem:[%s9 + $0xc8] sm:$0xff]
  %v1596 = vld [vmem:[%s9 + $0xd0] sm:$0xff]
  %v1597 = vld [vmem:[%s9 + $0xd8] sm:$0xff]
  %v1598 = vld [vmem:[%s9 + $0xe0] sm:$0xff]
  %v1599 = vld [vmem:[%s9 + $0xe8] sm:$0xff]
  %v1600 = vld [vmem:[%s9 + $0xf0] sm:$0xff]
  %v1601 = vld [vmem:[%s9 + $0xf8] sm:$0xff]
  %v1602 = vld [vmem:[%s9 + $0x100] sm:$0xff]
  %v1603 = vld [vmem:[%s9 + $0x108] sm:$0xff]
  %v1604 = vld [vmem:[%s9 + $0x110] sm:$0xff]
  %v1605 = vld [vmem:[%s9 + $0x118] sm:$0xff]
  %v1606 = vld [vmem:[%s9 + $0x120] sm:$0xff]
  %v1607 = vld [vmem:[%s9 + $0x128] sm:$0xff]
  %v1608 = vld [vmem:[%s9 + $0x130] sm:$0xff]
  %v1609 = vld [vmem:[%s9 + $0x138] sm:$0xff]
  %v1610 = vld [vmem:[#allocation2] sm:$0x1]
  %v1612 = vlaneseq
  %v1613 = vshrl.u32 %v1612, 7
  %v1614 = vsub.s32 0, %v1613
  %v1615 = vrot.slane %v1610, %v1614
  %v1618 = vsel %vm123, %v1554, 0
  %v1621 = vsel %vm123, %v1557, 0
  %v1624 = vsel %vm123, %v1560, 0
  %v1627 = vsel %vm123, %v1563, 0
  %v1630 = vsel %vm123, %v1566, 0
  %v1633 = vsel %vm123, %v1569, 0
  %1635 = vmatprep.subr.mxu0 0.0
  %1636 = vmatpush1.msra.mxu0 %v1570
  %1637 = vmatprep.subr.mxu0 0.0
  %1638 = vmatpush1.msra.mxu0 %v1571
  %1639 = vmatprep.subr.mxu0 0.0
  %1640 = vmatpush1.msra.mxu0 %v1572
  %1641 = vmatprep.subr.mxu0 0.0
  %1642 = vmatpush1.msra.mxu0 %v1573
  %1643 = vmatprep.subr.mxu0 0.0
  %1644 = vmatpush1.msra.mxu0 %v1574
  %1645 = vmatprep.subr.mxu0 0.0
  %1646 = vmatpush1.msra.mxu0 %v1575
  %1647 = vmatprep.subr.mxu0 0.0
  %1648 = vmatpush1.msra.mxu0 %v1576
  %1649 = vmatprep.subr.mxu0 0.0
  %1650 = vmatpush1.msra.mxu0 %v1577
  %1651 = vmatprep.subr.mxu0 0.0
  %1652 = vmatpush1.msra.mxu0 %v1578
  %1653 = vmatprep.subr.mxu0 0.0
  %1654 = vmatpush1.msra.mxu0 %v1579
  %1655 = vmatprep.subr.mxu0 0.0
  %1656 = vmatpush1.msra.mxu0 %v1580
  %1657 = vmatprep.subr.mxu0 0.0
  %1658 = vmatpush1.msra.mxu0 %v1581
  %1659 = vmatprep.subr.mxu0 0.0
  %1660 = vmatpush1.msra.mxu0 %v1582
  %1661 = vmatprep.subr.mxu0 0.0
  %1662 = vmatpush1.msra.mxu0 %v1583
  %1663 = vmatprep.subr.mxu0 0.0
  %1664 = vmatpush1.msra.mxu0 %v1584
  %1665 = vmatprep.subr.mxu0 0.0
  %1666 = vmatpush1.msra.mxu0 %v1585
  %1667 = vmatprep.subr.mxu0 0.0
  %1668 = vmatpush1.msra.mxu0 %v1586
  %1669 = vmatprep.subr.mxu0 0.0
  %1670 = vmatpush1.msra.mxu0 %v1587
  %1671 = vmatprep.subr.mxu0 0.0
  %1672 = vmatpush1.msra.mxu0 %v1588
  %1673 = vmatprep.subr.mxu0 0.0
  %1674 = vmatpush1.msra.mxu0 %v1589
  %1675 = vmatprep.subr.mxu0 0.0
  %1676 = vmatpush1.msra.mxu0 %v1590
  %1677 = vmatprep.subr.mxu0 0.0
  %1678 = vmatpush1.msra.mxu0 %v1591
  %1679 = vmatprep.subr.mxu0 0.0
  %1680 = vmatpush1.msra.mxu0 %v1592
  %1681 = vmatprep.subr.mxu0 0.0
  %1682 = vmatpush1.msra.mxu0 %v1593
  %1683 = vmatprep.subr.mxu0 0.0
  %1684 = vmatpush1.msra.mxu0 %v1594
  %1685 = vmatprep.subr.mxu0 0.0
  %1686 = vmatpush1.msra.mxu0 %v1595
  %1687 = vmatprep.subr.mxu0 0.0
  %1688 = vmatpush1.msra.mxu0 %v1596
  %1689 = vmatprep.subr.mxu0 0.0
  %1690 = vmatpush1.msra.mxu0 %v1597
  %1691 = vmatprep.subr.mxu0 0.0
  %1692 = vmatpush1.msra.mxu0 %v1598
  %1693 = vmatprep.subr.mxu0 0.0
  %1694 = vmatpush1.msra.mxu0 %v1599
  %1695 = vmatprep.subr.mxu0 0.0
  %1696 = vmatpush1.msra.mxu0 %v1600
  %1697 = vmatprep.subr.mxu0 0.0
  %1698 = vmatpush1.msra.mxu0 %v1601
  %1699 = vmatprep.mubr.f32.mxu0 %v1553
  %1700 = vmatmul.mubr.f32.gmra.mrb[0].mxu0 %v1552
  %v1701 = vpop.f32.mrb[0].mxu0
  %v1702 = vadd.f32 %v1615, %v1701
  %v1703 = vpop.f32.mrb[0].mxu0
  %1704 = vmatprep.mubr.f32.mxu0 %v1556
  %1705 = vmatmul.mubr.f32.gmra.mrb[0].mxu0 %v1555
  %v1706 = vpop.f32.mrb[0].mxu0
  %v1707 = vadd.f32 %v1615, %v1706
  %v1708 = vpop.f32.mrb[0].mxu0
  %1709 = vmatprep.mubr.f32.mxu0 %v1559
  %1710 = vmatmul.mubr.f32.gmra.mrb[0].mxu0 %v1558
  %v1711 = vpop.f32.mrb[0].mxu0
  %v1712 = vadd.f32 %v1615, %v1711
  %v1713 = vpop.f32.mrb[0].mxu0
  %1714 = vmatprep.mubr.f32.mxu0 %v1562
  %1715 = vmatmul.mubr.f32.gmra.mrb[0].mxu0 %v1561
  %v1716 = vpop.f32.mrb[0].mxu0
  %v1717 = vadd.f32 %v1615, %v1716
  %v1718 = vpop.f32.mrb[0].mxu0
  %1719 = vmatprep.mubr.f32.mxu0 %v1565
  %1720 = vmatmul.mubr.f32.gmra.mrb[0].mxu0 %v1564
  %v1721 = vpop.f32.mrb[0].mxu0
  %v1722 = vadd.f32 %v1615, %v1721
  %v1723 = vpop.f32.mrb[0].mxu0
  %1724 = vmatprep.mubr.f32.mxu0 %v1568
  %1725 = vmatmul.mubr.f32.gmra.mrb[0].mxu0 %v1567
  %v1726 = vpop.f32.mrb[0].mxu0
  %v1727 = vadd.f32 %v1615, %v1726
  %v1728 = vpop.f32.mrb[0].mxu0
  %1729 = vdwg.mxu0
  %1730 = vmatprep.subr.mxu0 0.0
  %1731 = vmatpush1.msra.mxu0 %v1602
  %1732 = vmatprep.subr.mxu0 0.0
  %1733 = vmatpush1.msra.mxu0 %v1603
  %1734 = vmatprep.subr.mxu0 0.0
  %1735 = vmatpush1.msra.mxu0 %v1604
  %1736 = vmatprep.subr.mxu0 0.0
  %1737 = vmatpush1.msra.mxu0 %v1605
  %1738 = vmatprep.subr.mxu0 0.0
  %1739 = vmatpush1.msra.mxu0 %v1606
  %1740 = vmatprep.subr.mxu0 0.0
  %1741 = vmatpush1.msra.mxu0 %v1607
  %1742 = vmatprep.subr.mxu0 0.0
  %1743 = vmatpush1.msra.mxu0 %v1608
  %1744 = vmatprep.subr.mxu0 0.0
  %1745 = vmatpush1.msra.mxu0 %v1609
  %1746 = vmatprep.subr.mxu0 0.0
  %1747 = vmatpush1.msra.mxu0 0.0
  %1748 = vmatprep.subr.mxu0 0.0
  %1749 = vmatpush1.msra.mxu0 0.0
  %1750 = vmatprep.subr.mxu0 0.0
  %1751 = vmatpush1.msra.mxu0 0.0
  %1752 = vmatprep.subr.mxu0 0.0
  %1753 = vmatpush1.msra.mxu0 0.0
  %1754 = vmatprep.subr.mxu0 0.0
  %1755 = vmatpush1.msra.mxu0 0.0
  %1756 = vmatprep.subr.mxu0 0.0
  %1757 = vmatpush1.msra.mxu0 0.0
  %1758 = vmatprep.subr.mxu0 0.0
  %1759 = vmatpush1.msra.mxu0 0.0
  %1760 = vmatprep.subr.mxu0 0.0
  %1761 = vmatpush1.msra.mxu0 0.0
  %1762 = vmatprep.subr.mxu0 0.0
  %1763 = vmatpush1.msra.mxu0 0.0
  %1764 = vmatprep.subr.mxu0 0.0
  %1765 = vmatpush1.msra.mxu0 0.0
  %1766 = vmatprep.subr.mxu0 0.0
  %1767 = vmatpush1.msra.mxu0 0.0
  %1768 = vmatprep.subr.mxu0 0.0
  %1769 = vmatpush1.msra.mxu0 0.0
  %1770 = vmatprep.subr.mxu0 0.0
  %1771 = vmatpush1.msra.mxu0 0.0
  %1772 = vmatprep.subr.mxu0 0.0
  %1773 = vmatpush1.msra.mxu0 0.0
  %1774 = vmatprep.subr.mxu0 0.0
  %1775 = vmatpush1.msra.mxu0 0.0
  %1776 = vmatprep.subr.mxu0 0.0
  %1777 = vmatpush1.msra.mxu0 0.0
  %1778 = vmatprep.subr.mxu0 0.0
  %1779 = vmatpush1.msra.mxu0 0.0
  %1780 = vmatprep.subr.mxu0 0.0
  %1781 = vmatpush1.msra.mxu0 0.0
  %1782 = vmatprep.subr.mxu0 0.0
  %1783 = vmatpush1.msra.mxu0 0.0
  %1784 = vmatprep.subr.mxu0 0.0
  %1785 = vmatpush1.msra.mxu0 0.0
  %1786 = vmatprep.subr.mxu0 0.0
  %1787 = vmatpush1.msra.mxu0 0.0
  %1788 = vmatprep.subr.mxu0 0.0
  %1789 = vmatpush1.msra.mxu0 0.0
  %1790 = vmatprep.subr.mxu0 0.0
  %1791 = vmatpush1.msra.mxu0 0.0
  %1792 = vmatprep.subr.mxu0 0.0
  %1793 = vmatpush1.msra.mxu0 0.0
  %1794 = vmatprep.mubr.f32.mxu0 0.0
  %1795 = vmatmul.mubr.f32.gmra.mrb[0].mxu0 %v1618
  %v1796 = vpop.f32.mrb[0].mxu0
  %v1797 = vadd.f32 %v1702, %v1796
  %v1798 = vpop.f32.mrb[0].mxu0
  %1799 = vmatprep.mubr.f32.mxu0 0.0
  %1800 = vmatmul.mubr.f32.gmra.mrb[0].mxu0 %v1621
  %v1801 = vpop.f32.mrb[0].mxu0
  %v1802 = vadd.f32 %v1707, %v1801
  %v1803 = vpop.f32.mrb[0].mxu0
  %1804 = vmatprep.mubr.f32.mxu0 0.0
  %1805 = vmatmul.mubr.f32.gmra.mrb[0].mxu0 %v1624
  %v1806 = vpop.f32.mrb[0].mxu0
  %v1807 = vadd.f32 %v1712, %v1806
  %v1808 = vpop.f32.mrb[0].mxu0
  %1809 = vmatprep.mubr.f32.mxu0 0.0
  %1810 = vmatmul.mubr.f32.gmra.mrb[0].mxu0 %v1627
  %v1811 = vpop.f32.mrb[0].mxu0
  %v1812 = vadd.f32 %v1717, %v1811
  %v1813 = vpop.f32.mrb[0].mxu0
  %1814 = vmatprep.mubr.f32.mxu0 0.0
  %1815 = vmatmul.mubr.f32.gmra.mrb[0].mxu0 %v1630
  %v1816 = vpop.f32.mrb[0].mxu0
  %v1817 = vadd.f32 %v1722, %v1816
  %v1818 = vpop.f32.mrb[0].mxu0
  %1819 = vmatprep.mubr.f32.mxu0 0.0
  %1820 = vmatmul.mubr.f32.gmra.mrb[0].mxu0 %v1633
  %v1821 = vpop.f32.mrb[0].mxu0
  %v1822 = vadd.f32 %v1727, %v1821
  %v1823 = vpop.f32.mrb[0].mxu0
  %1824 = vdwg.mxu0
  %vm1825 = vcmask 7168
  %1826 = vst.msk [vmem:[%s11] sm:$0xff] %vm1825, %v1797
  %1827 = vst.msk [vmem:[%s11 + $0x8] sm:$0xff] %vm1825, %v1802
  %1828 = vst.msk [vmem:[%s11 + $0x10] sm:$0xff] %vm1825, %v1807
  %1829 = vst.msk [vmem:[%s11 + $0x18] sm:$0xff] %vm1825, %v1812
  %1830 = vst.msk [vmem:[%s11 + $0x20] sm:$0xff] %vm1825, %v1817
  %1831 = vst.msk [vmem:[%s11 + $0x28] sm:$0xff] %vm1825, %v1822
  %v1832 = vld [vmem:[%s0 + $0x30] sm:$0xff]
  %v1833 = vld [vmem:[%s0 + $0x38] sm:$0xff]
  %v1834 = vld [vmem:[%s0 + $0x40] sm:$0xff]
  %v1835 = vld [vmem:[%s0 + $0x48] sm:$0xff]
  %v1836 = vld [vmem:[%s0 + $0x50] sm:$0xff]
  %v1837 = vld [vmem:[%s1] sm:$0x1]
  %1839 = vset.pattern.permute.xlu0 0
  %1840 = vperm.xlu0 %1839, %v1832
  %v1841 = vpop.permute.xlu0 %1840
  %1844 = vset.pattern.permute.xlu0 0
  %1845 = vperm.xlu0 %1844, %v1833
  %v1846 = vpop.permute.xlu0 %1845
  %1849 = vset.pattern.permute.xlu0 0
  %1850 = vperm.xlu0 %1849, %v1834
  %v1851 = vpop.permute.xlu0 %1850
  %1854 = vset.pattern.permute.xlu0 0
  %1855 = vperm.xlu0 %1854, %v1835
  %v1856 = vpop.permute.xlu0 %1855
  %1859 = vset.pattern.permute.xlu0 0
  %1860 = vperm.xlu0 %1859, %v1836
  %v1861 = vpop.permute.xlu0 %1860
  %v1864 = vlaneseq
  %v1865 = vshrl.u32 %v1864, 7
  %v1866 = vsub.s32 0, %v1865
  %v1867 = vrot.slane %v1837, %v1866
  %v1869 = vmul.f32 %v1841, %v1867
  %v1870 = vmul.f32 %v1846, %v1867
  %v1871 = vmul.f32 %v1851, %v1867
  %v1872 = vmul.f32 %v1856, %v1867
  %v1873 = vmul.f32 %v1861, %v1867
  %v1874 = vld [vmem:[%s2] sm:$0x1]
  %v1876 = vlaneseq
  %v1877 = vshrl.u32 %v1876, 7
  %v1878 = vsub.s32 0, %v1877
  %v1879 = vrot.slane %v1874, %v1878
  %v1881 = vadd.f32 %v1869, %v1879
  %v1882 = vadd.f32 %v1870, %v1879
  %v1883 = vadd.f32 %v1871, %v1879
  %v1884 = vadd.f32 %v1872, %v1879
  %v1885 = vadd.f32 %v1873, %v1879
  %v1886 = vmax.f32 %v1881, 0.0
  %v1887 = vmax.f32 %v1882, 0.0
  %v1888 = vmax.f32 %v1883, 0.0
  %v1889 = vmax.f32 %v1884, 0.0
  %v1890 = vmax.f32 %v1885, 0.0
  %v1891 = vld [vmem:[%s3] sm:$0xff]
  %v1892 = vld [vmem:[%s3 + $0x8] sm:$0xff]
  %v1893 = vld [vmem:[%s3 + $0x10] sm:$0xff]
  %v1894 = vld [vmem:[%s3 + $0x18] sm:$0xff]
  %v1895 = vld [vmem:[%s3 + $0x20] sm:$0xff]
  %v1896 = vld [vmem:[%s3 + $0x28] sm:$0xff]
  %v1897 = vld [vmem:[%s3 + $0x30] sm:$0xff]
  %v1898 = vld [vmem:[%s3 + $0x38] sm:$0xff]
  %v1899 = vld [vmem:[%s4] sm:$0x1]
  %v1901 = vlaneseq
  %v1902 = vshrl.u32 %v1901, 7
  %v1903 = vsub.s32 0, %v1902
  %v1904 = vrot.slane %v1899, %v1903
  %v1907 = vsel %vm123, %v1886, 0
  %v1910 = vsel %vm123, %v1887, 0
  %v1913 = vsel %vm123, %v1888, 0
  %v1916 = vsel %vm123, %v1889, 0
  %v1919 = vsel %vm123, %v1890, 0
  %1921 = vmatprep.subr.mxu0 0.0
  %1922 = vmatpush1.msra.mxu0 %v1891
  %1923 = vmatprep.subr.mxu0 0.0
  %1924 = vmatpush1.msra.mxu0 %v1892
  %1925 = vmatprep.subr.mxu0 0.0
  %1926 = vmatpush1.msra.mxu0 %v1893
  %1927 = vmatprep.subr.mxu0 0.0
  %1928 = vmatpush1.msra.mxu0 %v1894
  %1929 = vmatprep.subr.mxu0 0.0
  %1930 = vmatpush1.msra.mxu0 %v1895
  %1931 = vmatprep.subr.mxu0 0.0
  %1932 = vmatpush1.msra.mxu0 %v1896
  %1933 = vmatprep.subr.mxu0 0.0
  %1934 = vmatpush1.msra.mxu0 %v1897
  %1935 = vmatprep.subr.mxu0 0.0
  %1936 = vmatpush1.msra.mxu0 %v1898
  %1937 = vmatprep.subr.mxu0 0.0
  %1938 = vmatpush1.msra.mxu0 0.0
  %1939 = vmatprep.subr.mxu0 0.0
  %1940 = vmatpush1.msra.mxu0 0.0
  %1941 = vmatprep.subr.mxu0 0.0
  %1942 = vmatpush1.msra.mxu0 0.0
  %1943 = vmatprep.subr.mxu0 0.0
  %1944 = vmatpush1.msra.mxu0 0.0
  %1945 = vmatprep.subr.mxu0 0.0
  %1946 = vmatpush1.msra.mxu0 0.0
  %1947 = vmatprep.subr.mxu0 0.0
  %1948 = vmatpush1.msra.mxu0 0.0
  %1949 = vmatprep.subr.mxu0 0.0
  %1950 = vmatpush1.msra.mxu0 0.0
  %1951 = vmatprep.subr.mxu0 0.0
  %1952 = vmatpush1.msra.mxu0 0.0
  %1953 = vmatprep.subr.mxu0 0.0
  %1954 = vmatpush1.msra.mxu0 0.0
  %1955 = vmatprep.subr.mxu0 0.0
  %1956 = vmatpush1.msra.mxu0 0.0
  %1957 = vmatprep.subr.mxu0 0.0
  %1958 = vmatpush1.msra.mxu0 0.0
  %1959 = vmatprep.subr.mxu0 0.0
  %1960 = vmatpush1.msra.mxu0 0.0
  %1961 = vmatprep.subr.mxu0 0.0
  %1962 = vmatpush1.msra.mxu0 0.0
  %1963 = vmatprep.subr.mxu0 0.0
  %1964 = vmatpush1.msra.mxu0 0.0
  %1965 = vmatprep.subr.mxu0 0.0
  %1966 = vmatpush1.msra.mxu0 0.0
  %1967 = vmatprep.subr.mxu0 0.0
  %1968 = vmatpush1.msra.mxu0 0.0
  %1969 = vmatprep.subr.mxu0 0.0
  %1970 = vmatpush1.msra.mxu0 0.0
  %1971 = vmatprep.subr.mxu0 0.0
  %1972 = vmatpush1.msra.mxu0 0.0
  %1973 = vmatprep.subr.mxu0 0.0
  %1974 = vmatpush1.msra.mxu0 0.0
  %1975 = vmatprep.subr.mxu0 0.0
  %1976 = vmatpush1.msra.mxu0 0.0
  %1977 = vmatprep.subr.mxu0 0.0
  %1978 = vmatpush1.msra.mxu0 0.0
  %1979 = vmatprep.subr.mxu0 0.0
  %1980 = vmatpush1.msra.mxu0 0.0
  %1981 = vmatprep.subr.mxu0 0.0
  %1982 = vmatpush1.msra.mxu0 0.0
  %1983 = vmatprep.subr.mxu0 0.0
  %1984 = vmatpush1.msra.mxu0 0.0
  %1985 = vmatprep.mubr.f32.mxu0 0.0
  %1986 = vmatmul.mubr.f32.gmra.mrb[0].mxu0 %v1907
  %v1987 = vpop.f32.mrb[0].mxu0
  %v1988 = vadd.f32 %v1904, %v1987
  %v1989 = vpop.f32.mrb[0].mxu0
  %1990 = vmatprep.mubr.f32.mxu0 0.0
  %1991 = vmatmul.mubr.f32.gmra.mrb[0].mxu0 %v1910
  %v1992 = vpop.f32.mrb[0].mxu0
  %v1993 = vadd.f32 %v1904, %v1992
  %v1994 = vpop.f32.mrb[0].mxu0
  %1995 = vmatprep.mubr.f32.mxu0 0.0
  %1996 = vmatmul.mubr.f32.gmra.mrb[0].mxu0 %v1913
  %v1997 = vpop.f32.mrb[0].mxu0
  %v1998 = vadd.f32 %v1904, %v1997
  %v1999 = vpop.f32.mrb[0].mxu0
  %2000 = vmatprep.mubr.f32.mxu0 0.0
  %2001 = vmatmul.mubr.f32.gmra.mrb[0].mxu0 %v1916
  %v2002 = vpop.f32.mrb[0].mxu0
  %v2003 = vadd.f32 %v1904, %v2002
  %v2004 = vpop.f32.mrb[0].mxu0
  %2005 = vmatprep.mubr.f32.mxu0 0.0
  %2006 = vmatmul.mubr.f32.gmra.mrb[0].mxu0 %v1919
  %v2007 = vpop.f32.mrb[0].mxu0
  %v2008 = vadd.f32 %v1904, %v2007
  %v2009 = vpop.f32.mrb[0].mxu0
  %2010 = vdwg.mxu0
  %v2011 = vxor.u32 %v1988, 2147483648
  %v2012 = vxor.u32 %v1993, 2147483648
  %v2013 = vxor.u32 %v1998, 2147483648
  %v2014 = vxor.u32 %v2003, 2147483648
  %v2015 = vxor.u32 %v2008, 2147483648
  %v2016 = vmul.f32 %v2011, 1.442695
  %v2017 = vpow.pop %v2016
  %v2018 = vmul.f32 %v2012, 1.442695
  %v2019 = vpow.pop %v2018
  %v2020 = vmul.f32 %v2013, 1.442695
  %v2021 = vpow.pop %v2020
  %v2022 = vmul.f32 %v2014, 1.442695
  %v2023 = vpow.pop %v2022
  %v2024 = vmul.f32 %v2015, 1.442695
  %v2025 = vpow.pop %v2024
  %v2026 = vadd.f32 %v2017, 1.0
  %v2027 = vadd.f32 %v2019, 1.0
  %v2028 = vadd.f32 %v2021, 1.0
  %v2029 = vadd.f32 %v2023, 1.0
  %v2030 = vadd.f32 %v2025, 1.0
  %v2031 = vrcp.pop %v2026
  %v2032 = vmul.f32 1.0, %v2031
  %v2033 = vrcp.pop %v2027
  %v2034 = vmul.f32 1.0, %v2033
  %v2035 = vrcp.pop %v2028
  %v2036 = vmul.f32 1.0, %v2035
  %v2037 = vrcp.pop %v2029
  %v2038 = vmul.f32 1.0, %v2037
  %v2039 = vrcp.pop %v2030
  %v2040 = vmul.f32 1.0, %v2039
  %v2041 = vld [vmem:[%s5] sm:$0xff]
  %v2042 = vld [vmem:[%s5 + $0x8] sm:$0xff]
  %v2043 = vld [vmem:[%s5 + $0x10] sm:$0xff]
  %v2044 = vld [vmem:[%s5 + $0x18] sm:$0xff]
  %v2045 = vld [vmem:[%s5 + $0x20] sm:$0xff]
  %v2046 = vld [vmem:[%s5 + $0x28] sm:$0xff]
  %v2047 = vld [vmem:[%s5 + $0x30] sm:$0xff]
  %v2048 = vld [vmem:[%s5 + $0x38] sm:$0xff]
  %v2049 = vld [vmem:[%s5 + $0x40] sm:$0xff]
  %v2050 = vld [vmem:[%s5 + $0x48] sm:$0xff]
  %v2051 = vld [vmem:[%s5 + $0x50] sm:$0xff]
  %v2052 = vld [vmem:[%s5 + $0x58] sm:$0xff]
  %v2053 = vld [vmem:[%s5 + $0x60] sm:$0xff]
  %v2054 = vld [vmem:[%s5 + $0x68] sm:$0xff]
  %v2055 = vld [vmem:[%s5 + $0x70] sm:$0xff]
  %v2056 = vld [vmem:[%s5 + $0x78] sm:$0xff]
  %v2057 = vld [vmem:[%s5 + $0x80] sm:$0xff]
  %v2058 = vld [vmem:[%s5 + $0x88] sm:$0xff]
  %v2059 = vld [vmem:[%s5 + $0x90] sm:$0xff]
  %v2060 = vld [vmem:[%s5 + $0x98] sm:$0xff]
  %v2061 = vld [vmem:[%s5 + $0xa0] sm:$0xff]
  %v2062 = vld [vmem:[%s5 + $0xa8] sm:$0xff]
  %v2063 = vld [vmem:[%s5 + $0xb0] sm:$0xff]
  %v2064 = vld [vmem:[%s5 + $0xb8] sm:$0xff]
  %v2065 = vld [vmem:[%s5 + $0xc0] sm:$0xff]
  %v2066 = vld [vmem:[%s5 + $0xc8] sm:$0xff]
  %v2067 = vld [vmem:[%s5 + $0xd0] sm:$0xff]
  %v2068 = vld [vmem:[%s5 + $0xd8] sm:$0xff]
  %v2069 = vld [vmem:[%s5 + $0xe0] sm:$0xff]
  %v2070 = vld [vmem:[%s5 + $0xe8] sm:$0xff]
  %v2071 = vld [vmem:[%s5 + $0xf0] sm:$0xff]
  %v2072 = vld [vmem:[%s5 + $0xf8] sm:$0xff]
  %v2073 = vld [vmem:[%s5 + $0x100] sm:$0xff]
  %v2074 = vld [vmem:[%s5 + $0x108] sm:$0xff]
  %v2075 = vld [vmem:[%s5 + $0x110] sm:$0xff]
  %v2076 = vld [vmem:[%s5 + $0x118] sm:$0xff]
  %v2077 = vld [vmem:[%s5 + $0x120] sm:$0xff]
  %v2078 = vld [vmem:[%s5 + $0x128] sm:$0xff]
  %v2079 = vld [vmem:[%s5 + $0x130] sm:$0xff]
  %v2080 = vld [vmem:[%s5 + $0x138] sm:$0xff]
  %v2081 = vld [vmem:[%s5 + $0x140] sm:$0xff]
  %v2082 = vld [vmem:[%s5 + $0x148] sm:$0xff]
  %v2083 = vld [vmem:[%s5 + $0x150] sm:$0xff]
  %v2084 = vld [vmem:[%s5 + $0x158] sm:$0xff]
  %v2085 = vld [vmem:[%s5 + $0x160] sm:$0xff]
  %v2086 = vld [vmem:[%s5 + $0x168] sm:$0xff]
  %v2087 = vld [vmem:[%s5 + $0x170] sm:$0xff]
  %v2088 = vld [vmem:[%s5 + $0x178] sm:$0xff]
  %v2089 = vld [vmem:[%s5 + $0x180] sm:$0xff]
  %v2090 = vld [vmem:[%s5 + $0x188] sm:$0xff]
  %v2091 = vld [vmem:[%s5 + $0x190] sm:$0xff]
  %v2092 = vld [vmem:[%s5 + $0x198] sm:$0xff]
  %v2093 = vld [vmem:[%s5 + $0x1a0] sm:$0xff]
  %v2094 = vld [vmem:[%s5 + $0x1a8] sm:$0xff]
  %v2095 = vld [vmem:[%s5 + $0x1b0] sm:$0xff]
  %v2096 = vld [vmem:[%s5 + $0x1b8] sm:$0xff]
  %v2097 = vld [vmem:[%s5 + $0x1c0] sm:$0xff]
  %v2098 = vld [vmem:[%s5 + $0x1c8] sm:$0xff]
  %v2099 = vld [vmem:[%s5 + $0x1d0] sm:$0xff]
  %v2100 = vld [vmem:[%s5 + $0x1d8] sm:$0xff]
  %v2101 = vld [vmem:[%s5 + $0x1e0] sm:$0xff]
  %v2102 = vld [vmem:[%s5 + $0x1e8] sm:$0xff]
  %v2103 = vld [vmem:[%s5 + $0x1f0] sm:$0xff]
  %v2104 = vld [vmem:[%s5 + $0x1f8] sm:$0xff]
  %v2105 = vld [vmem:[%s5 + $0x200] sm:$0xff]
  %v2106 = vld [vmem:[%s5 + $0x208] sm:$0xff]
  %v2107 = vld [vmem:[%s5 + $0x210] sm:$0xff]
  %v2108 = vld [vmem:[%s5 + $0x218] sm:$0xff]
  %v2109 = vld [vmem:[%s5 + $0x220] sm:$0xff]
  %v2110 = vld [vmem:[%s5 + $0x228] sm:$0xff]
  %v2111 = vld [vmem:[%s5 + $0x230] sm:$0xff]
  %v2112 = vld [vmem:[%s5 + $0x238] sm:$0xff]
  %v2113 = vld [vmem:[%s5 + $0x240] sm:$0xff]
  %v2114 = vld [vmem:[%s5 + $0x248] sm:$0xff]
  %v2115 = vld [vmem:[%s5 + $0x250] sm:$0xff]
  %v2116 = vld [vmem:[%s5 + $0x258] sm:$0xff]
  %v2117 = vld [vmem:[%s5 + $0x260] sm:$0xff]
  %v2118 = vld [vmem:[%s5 + $0x268] sm:$0xff]
  %v2119 = vld [vmem:[%s5 + $0x270] sm:$0xff]
  %v2120 = vld [vmem:[%s5 + $0x278] sm:$0xff]
  %v2121 = vld [vmem:[%s6] sm:$0x1f]
  %v2123 = vlaneseq
  %v2124 = vshrl.u32 %v2123, 7
  %v2125 = vsub.s32 0, %v2124
  %v2126 = vrot.slane %v2121, %v2125
  %v2127 = vlaneseq
  %v2128 = vshrl.u32 %v2127, 7
  %v2129 = vsub.s32 1, %v2128
  %v2130 = vrot.slane %v2121, %v2129
  %v2131 = vlaneseq
  %v2132 = vshrl.u32 %v2131, 7
  %v2133 = vsub.s32 2, %v2132
  %v2134 = vrot.slane %v2121, %v2133
  %v2135 = vlaneseq
  %v2136 = vshrl.u32 %v2135, 7
  %v2137 = vsub.s32 3, %v2136
  %v2138 = vrot.slane %v2121, %v2137
  %v2139 = vlaneseq
  %v2140 = vshrl.u32 %v2139, 7
  %v2141 = vsub.s32 4, %v2140
  %v2142 = vrot.slane %v2121, %v2141
  %2148 = vmatprep.subr.mxu0 %v2042
  %2149 = vmatpush1.msra.mxu0 %v2041
  %2150 = vmatprep.subr.mxu0 %v2047
  %2151 = vmatpush1.msra.mxu0 %v2046
  %2152 = vmatprep.subr.mxu0 %v2052
  %2153 = vmatpush1.msra.mxu0 %v2051
  %2154 = vmatprep.subr.mxu0 %v2057
  %2155 = vmatpush1.msra.mxu0 %v2056
  %2156 = vmatprep.subr.mxu0 %v2062
  %2157 = vmatpush1.msra.mxu0 %v2061
  %2158 = vmatprep.subr.mxu0 %v2067
  %2159 = vmatpush1.msra.mxu0 %v2066
  %2160 = vmatprep.subr.mxu0 %v2072
  %2161 = vmatpush1.msra.mxu0 %v2071
  %2162 = vmatprep.subr.mxu0 %v2077
  %2163 = vmatpush1.msra.mxu0 %v2076
  %2164 = vmatprep.subr.mxu0 %v2082
  %2165 = vmatpush1.msra.mxu0 %v2081
  %2166 = vmatprep.subr.mxu0 %v2087
  %2167 = vmatpush1.msra.mxu0 %v2086
  %2168 = vmatprep.subr.mxu0 %v2092
  %2169 = vmatpush1.msra.mxu0 %v2091
  %2170 = vmatprep.subr.mxu0 %v2097
  %2171 = vmatpush1.msra.mxu0 %v2096
  %2172 = vmatprep.subr.mxu0 %v2102
  %2173 = vmatpush1.msra.mxu0 %v2101
  %2174 = vmatprep.subr.mxu0 %v2107
  %2175 = vmatpush1.msra.mxu0 %v2106
  %2176 = vmatprep.subr.mxu0 %v2112
  %2177 = vmatpush1.msra.mxu0 %v2111
  %2178 = vmatprep.subr.mxu0 %v2117
  %2179 = vmatpush1.msra.mxu0 %v2116
  %2180 = vmatprep.subr.mxu0 0.0
  %2181 = vmatpush1.msra.mxu0 0.0
  %2182 = vmatprep.subr.mxu0 0.0
  %2183 = vmatpush1.msra.mxu0 0.0
  %2184 = vmatprep.subr.mxu0 0.0
  %2185 = vmatpush1.msra.mxu0 0.0
  %2186 = vmatprep.subr.mxu0 0.0
  %2187 = vmatpush1.msra.mxu0 0.0
  %2188 = vmatprep.subr.mxu0 0.0
  %2189 = vmatpush1.msra.mxu0 0.0
  %2190 = vmatprep.subr.mxu0 0.0
  %2191 = vmatpush1.msra.mxu0 0.0
  %2192 = vmatprep.subr.mxu0 0.0
  %2193 = vmatpush1.msra.mxu0 0.0
  %2194 = vmatprep.subr.mxu0 0.0
  %2195 = vmatpush1.msra.mxu0 0.0
  %2196 = vmatprep.subr.mxu0 0.0
  %2197 = vmatpush1.msra.mxu0 0.0
  %2198 = vmatprep.subr.mxu0 0.0
  %2199 = vmatpush1.msra.mxu0 0.0
  %2200 = vmatprep.subr.mxu0 0.0
  %2201 = vmatpush1.msra.mxu0 0.0
  %2202 = vmatprep.subr.mxu0 0.0
  %2203 = vmatpush1.msra.mxu0 0.0
  %2204 = vmatprep.subr.mxu0 0.0
  %2205 = vmatpush1.msra.mxu0 0.0
  %2206 = vmatprep.subr.mxu0 0.0
  %2207 = vmatpush1.msra.mxu0 0.0
  %2208 = vmatprep.subr.mxu0 0.0
  %2209 = vmatpush1.msra.mxu0 0.0
  %2210 = vmatprep.subr.mxu0 0.0
  %2211 = vmatpush1.msra.mxu0 0.0
  %2212 = vmatprep.mubr.f32.mxu0 0.0
  %2213 = vmatmul.mubr.f32.gmra.mrb[0].mxu0 %v2032
  %v2214 = vpop.f32.mrb[0].mxu0
  %v2215 = vadd.f32 %v2126, %v2214
  %v2216 = vpop.f32.mrb[0].mxu0
  %v2217 = vadd.f32 %v2130, %v2216
  %2218 = vmatprep.mubr.f32.mxu0 0.0
  %2219 = vmatmul.mubr.f32.gmra.mrb[0].mxu0 %v2034
  %v2220 = vpop.f32.mrb[0].mxu0
  %v2221 = vadd.f32 %v2126, %v2220
  %v2222 = vpop.f32.mrb[0].mxu0
  %v2223 = vadd.f32 %v2130, %v2222
  %2224 = vmatprep.mubr.f32.mxu0 0.0
  %2225 = vmatmul.mubr.f32.gmra.mrb[0].mxu0 %v2036
  %v2226 = vpop.f32.mrb[0].mxu0
  %v2227 = vadd.f32 %v2126, %v2226
  %v2228 = vpop.f32.mrb[0].mxu0
  %v2229 = vadd.f32 %v2130, %v2228
  %2230 = vmatprep.mubr.f32.mxu0 0.0
  %2231 = vmatmul.mubr.f32.gmra.mrb[0].mxu0 %v2038
  %v2232 = vpop.f32.mrb[0].mxu0
  %v2233 = vadd.f32 %v2126, %v2232
  %v2234 = vpop.f32.mrb[0].mxu0
  %v2235 = vadd.f32 %v2130, %v2234
  %2236 = vmatprep.mubr.f32.mxu0 0.0
  %2237 = vmatmul.mubr.f32.gmra.mrb[0].mxu0 %v2040
  %v2238 = vpop.f32.mrb[0].mxu0
  %v2239 = vadd.f32 %v2126, %v2238
  %v2240 = vpop.f32.mrb[0].mxu0
  %v2241 = vadd.f32 %v2130, %v2240
  %2242 = vdwg.mxu0
  %2243 = vmatprep.subr.mxu0 %v2044
  %2244 = vmatpush1.msra.mxu0 %v2043
  %2245 = vmatprep.subr.mxu0 %v2049
  %2246 = vmatpush1.msra.mxu0 %v2048
  %2247 = vmatprep.subr.mxu0 %v2054
  %2248 = vmatpush1.msra.mxu0 %v2053
  %2249 = vmatprep.subr.mxu0 %v2059
  %2250 = vmatpush1.msra.mxu0 %v2058
  %2251 = vmatprep.subr.mxu0 %v2064
  %2252 = vmatpush1.msra.mxu0 %v2063
  %2253 = vmatprep.subr.mxu0 %v2069
  %2254 = vmatpush1.msra.mxu0 %v2068
  %2255 = vmatprep.subr.mxu0 %v2074
  %2256 = vmatpush1.msra.mxu0 %v2073
  %2257 = vmatprep.subr.mxu0 %v2079
  %2258 = vmatpush1.msra.mxu0 %v2078
  %2259 = vmatprep.subr.mxu0 %v2084
  %2260 = vmatpush1.msra.mxu0 %v2083
  %2261 = vmatprep.subr.mxu0 %v2089
  %2262 = vmatpush1.msra.mxu0 %v2088
  %2263 = vmatprep.subr.mxu0 %v2094
  %2264 = vmatpush1.msra.mxu0 %v2093
  %2265 = vmatprep.subr.mxu0 %v2099
  %2266 = vmatpush1.msra.mxu0 %v2098
  %2267 = vmatprep.subr.mxu0 %v2104
  %2268 = vmatpush1.msra.mxu0 %v2103
  %2269 = vmatprep.subr.mxu0 %v2109
  %2270 = vmatpush1.msra.mxu0 %v2108
  %2271 = vmatprep.subr.mxu0 %v2114
  %2272 = vmatpush1.msra.mxu0 %v2113
  %2273 = vmatprep.subr.mxu0 %v2119
  %2274 = vmatpush1.msra.mxu0 %v2118
  %2275 = vmatprep.subr.mxu0 0.0
  %2276 = vmatpush1.msra.mxu0 0.0
  %2277 = vmatprep.subr.mxu0 0.0
  %2278 = vmatpush1.msra.mxu0 0.0
  %2279 = vmatprep.subr.mxu0 0.0
  %2280 = vmatpush1.msra.mxu0 0.0
  %2281 = vmatprep.subr.mxu0 0.0
  %2282 = vmatpush1.msra.mxu0 0.0
  %2283 = vmatprep.subr.mxu0 0.0
  %2284 = vmatpush1.msra.mxu0 0.0
  %2285 = vmatprep.subr.mxu0 0.0
  %2286 = vmatpush1.msra.mxu0 0.0
  %2287 = vmatprep.subr.mxu0 0.0
  %2288 = vmatpush1.msra.mxu0 0.0
  %2289 = vmatprep.subr.mxu0 0.0
  %2290 = vmatpush1.msra.mxu0 0.0
  %2291 = vmatprep.subr.mxu0 0.0
  %2292 = vmatpush1.msra.mxu0 0.0
  %2293 = vmatprep.subr.mxu0 0.0
  %2294 = vmatpush1.msra.mxu0 0.0
  %2295 = vmatprep.subr.mxu0 0.0
  %2296 = vmatpush1.msra.mxu0 0.0
  %2297 = vmatprep.subr.mxu0 0.0
  %2298 = vmatpush1.msra.mxu0 0.0
  %2299 = vmatprep.subr.mxu0 0.0
  %2300 = vmatpush1.msra.mxu0 0.0
  %2301 = vmatprep.subr.mxu0 0.0
  %2302 = vmatpush1.msra.mxu0 0.0
  %2303 = vmatprep.subr.mxu0 0.0
  %2304 = vmatpush1.msra.mxu0 0.0
  %2305 = vmatprep.subr.mxu0 0.0
  %2306 = vmatpush1.msra.mxu0 0.0
  %2307 = vmatprep.mubr.f32.mxu0 0.0
  %2308 = vmatmul.mubr.f32.gmra.mrb[0].mxu0 %v2032
  %v2309 = vpop.f32.mrb[0].mxu0
  %v2310 = vadd.f32 %v2134, %v2309
  %v2311 = vpop.f32.mrb[0].mxu0
  %v2312 = vadd.f32 %v2138, %v2311
  %2313 = vmatprep.mubr.f32.mxu0 0.0
  %2314 = vmatmul.mubr.f32.gmra.mrb[0].mxu0 %v2034
  %v2315 = vpop.f32.mrb[0].mxu0
  %v2316 = vadd.f32 %v2134, %v2315
  %v2317 = vpop.f32.mrb[0].mxu0
  %v2318 = vadd.f32 %v2138, %v2317
  %2319 = vmatprep.mubr.f32.mxu0 0.0
  %2320 = vmatmul.mubr.f32.gmra.mrb[0].mxu0 %v2036
  %v2321 = vpop.f32.mrb[0].mxu0
  %v2322 = vadd.f32 %v2134, %v2321
  %v2323 = vpop.f32.mrb[0].mxu0
  %v2324 = vadd.f32 %v2138, %v2323
  %2325 = vmatprep.mubr.f32.mxu0 0.0
  %2326 = vmatmul.mubr.f32.gmra.mrb[0].mxu0 %v2038
  %v2327 = vpop.f32.mrb[0].mxu0
  %v2328 = vadd.f32 %v2134, %v2327
  %v2329 = vpop.f32.mrb[0].mxu0
  %v2330 = vadd.f32 %v2138, %v2329
  %2331 = vmatprep.mubr.f32.mxu0 0.0
  %2332 = vmatmul.mubr.f32.gmra.mrb[0].mxu0 %v2040
  %v2333 = vpop.f32.mrb[0].mxu0
  %v2334 = vadd.f32 %v2134, %v2333
  %v2335 = vpop.f32.mrb[0].mxu0
  %v2336 = vadd.f32 %v2138, %v2335
  %2337 = vdwg.mxu0
  %2338 = vmatprep.subr.mxu0 0.0
  %2339 = vmatpush1.msra.mxu0 %v2045
  %2340 = vmatprep.subr.mxu0 0.0
  %2341 = vmatpush1.msra.mxu0 %v2050
  %2342 = vmatprep.subr.mxu0 0.0
  %2343 = vmatpush1.msra.mxu0 %v2055
  %2344 = vmatprep.subr.mxu0 0.0
  %2345 = vmatpush1.msra.mxu0 %v2060
  %2346 = vmatprep.subr.mxu0 0.0
  %2347 = vmatpush1.msra.mxu0 %v2065
  %2348 = vmatprep.subr.mxu0 0.0
  %2349 = vmatpush1.msra.mxu0 %v2070
  %2350 = vmatprep.subr.mxu0 0.0
  %2351 = vmatpush1.msra.mxu0 %v2075
  %2352 = vmatprep.subr.mxu0 0.0
  %2353 = vmatpush1.msra.mxu0 %v2080
  %2354 = vmatprep.subr.mxu0 0.0
  %2355 = vmatpush1.msra.mxu0 %v2085
  %2356 = vmatprep.subr.mxu0 0.0
  %2357 = vmatpush1.msra.mxu0 %v2090
  %2358 = vmatprep.subr.mxu0 0.0
  %2359 = vmatpush1.msra.mxu0 %v2095
  %2360 = vmatprep.subr.mxu0 0.0
  %2361 = vmatpush1.msra.mxu0 %v2100
  %2362 = vmatprep.subr.mxu0 0.0
  %2363 = vmatpush1.msra.mxu0 %v2105
  %2364 = vmatprep.subr.mxu0 0.0
  %2365 = vmatpush1.msra.mxu0 %v2110
  %2366 = vmatprep.subr.mxu0 0.0
  %2367 = vmatpush1.msra.mxu0 %v2115
  %2368 = vmatprep.subr.mxu0 0.0
  %2369 = vmatpush1.msra.mxu0 %v2120
  %2370 = vmatprep.subr.mxu0 0.0
  %2371 = vmatpush1.msra.mxu0 0.0
  %2372 = vmatprep.subr.mxu0 0.0
  %2373 = vmatpush1.msra.mxu0 0.0
  %2374 = vmatprep.subr.mxu0 0.0
  %2375 = vmatpush1.msra.mxu0 0.0
  %2376 = vmatprep.subr.mxu0 0.0
  %2377 = vmatpush1.msra.mxu0 0.0
  %2378 = vmatprep.subr.mxu0 0.0
  %2379 = vmatpush1.msra.mxu0 0.0
  %2380 = vmatprep.subr.mxu0 0.0
  %2381 = vmatpush1.msra.mxu0 0.0
  %2382 = vmatprep.subr.mxu0 0.0
  %2383 = vmatpush1.msra.mxu0 0.0
  %2384 = vmatprep.subr.mxu0 0.0
  %2385 = vmatpush1.msra.mxu0 0.0
  %2386 = vmatprep.subr.mxu0 0.0
  %2387 = vmatpush1.msra.mxu0 0.0
  %2388 = vmatprep.subr.mxu0 0.0
  %2389 = vmatpush1.msra.mxu0 0.0
  %2390 = vmatprep.subr.mxu0 0.0
  %2391 = vmatpush1.msra.mxu0 0.0
  %2392 = vmatprep.subr.mxu0 0.0
  %2393 = vmatpush1.msra.mxu0 0.0
  %2394 = vmatprep.subr.mxu0 0.0
  %2395 = vmatpush1.msra.mxu0 0.0
  %2396 = vmatprep.subr.mxu0 0.0
  %2397 = vmatpush1.msra.mxu0 0.0
  %2398 = vmatprep.subr.mxu0 0.0
  %2399 = vmatpush1.msra.mxu0 0.0
  %2400 = vmatprep.subr.mxu0 0.0
  %2401 = vmatpush1.msra.mxu0 0.0
  %2402 = vmatprep.mubr.f32.mxu0 0.0
  %2403 = vmatmul.mubr.f32.gmra.mrb[0].mxu0 %v2032
  %v2404 = vpop.f32.mrb[0].mxu0
  %v2405 = vadd.f32 %v2142, %v2404
  %v2406 = vpop.f32.mrb[0].mxu0
  %2407 = vmatprep.mubr.f32.mxu0 0.0
  %2408 = vmatmul.mubr.f32.gmra.mrb[0].mxu0 %v2034
  %v2409 = vpop.f32.mrb[0].mxu0
  %v2410 = vadd.f32 %v2142, %v2409
  %v2411 = vpop.f32.mrb[0].mxu0
  %2412 = vmatprep.mubr.f32.mxu0 0.0
  %2413 = vmatmul.mubr.f32.gmra.mrb[0].mxu0 %v2036
  %v2414 = vpop.f32.mrb[0].mxu0
  %v2415 = vadd.f32 %v2142, %v2414
  %v2416 = vpop.f32.mrb[0].mxu0
  %2417 = vmatprep.mubr.f32.mxu0 0.0
  %2418 = vmatmul.mubr.f32.gmra.mrb[0].mxu0 %v2038
  %v2419 = vpop.f32.mrb[0].mxu0
  %v2420 = vadd.f32 %v2142, %v2419
  %v2421 = vpop.f32.mrb[0].mxu0
  %2422 = vmatprep.mubr.f32.mxu0 0.0
  %2423 = vmatmul.mubr.f32.gmra.mrb[0].mxu0 %v2040
  %v2424 = vpop.f32.mrb[0].mxu0
  %v2425 = vadd.f32 %v2142, %v2424
  %v2426 = vpop.f32.mrb[0].mxu0
  %2427 = vdwg.mxu0
  %v2428 = vtanh.pop %v2215
  %v2429 = vtanh.pop %v2217
  %v2430 = vtanh.pop %v2310
  %v2431 = vtanh.pop %v2312
  %v2432 = vtanh.pop %v2405
  %v2433 = vtanh.pop %v2221
  %v2434 = vtanh.pop %v2223
  %v2435 = vtanh.pop %v2316
  %v2436 = vtanh.pop %v2318
  %v2437 = vtanh.pop %v2410
  %v2438 = vtanh.pop %v2227
  %v2439 = vtanh.pop %v2229
  %v2440 = vtanh.pop %v2322
  %v2441 = vtanh.pop %v2324
  %v2442 = vtanh.pop %v2415
  %v2443 = vtanh.pop %v2233
  %v2444 = vtanh.pop %v2235
  %v2445 = vtanh.pop %v2328
  %v2446 = vtanh.pop %v2330
  %v2447 = vtanh.pop %v2420
  %v2448 = vtanh.pop %v2239
  %v2449 = vtanh.pop %v2241
  %v2450 = vtanh.pop %v2334
  %v2451 = vtanh.pop %v2336
  %v2452 = vtanh.pop %v2425
  %v2453 = vld [vmem:[%s7] sm:$0xff]
  %v2454 = vld [vmem:[%s7 + $0x8] sm:$0xff]
  %v2455 = vld [vmem:[%s7 + $0x10] sm:$0xff]
  %v2456 = vld [vmem:[%s7 + $0x18] sm:$0xff]
  %v2457 = vld [vmem:[%s7 + $0x20] sm:$0xff]
  %v2458 = vld [vmem:[%s7 + $0x28] sm:$0xff]
  %v2459 = vld [vmem:[%s7 + $0x30] sm:$0xff]
  %v2460 = vld [vmem:[%s7 + $0x38] sm:$0xff]
  %v2461 = vld [vmem:[%s7 + $0x40] sm:$0xff]
  %v2462 = vld [vmem:[%s7 + $0x48] sm:$0xff]
  %v2463 = vld [vmem:[%s7 + $0x50] sm:$0xff]
  %v2464 = vld [vmem:[%s7 + $0x58] sm:$0xff]
  %v2465 = vld [vmem:[%s7 + $0x60] sm:$0xff]
  %v2466 = vld [vmem:[%s7 + $0x68] sm:$0xff]
  %v2467 = vld [vmem:[%s7 + $0x70] sm:$0xff]
  %v2468 = vld [vmem:[%s7 + $0x78] sm:$0xff]
  %v2469 = vld [vmem:[%s7 + $0x80] sm:$0xff]
  %v2470 = vld [vmem:[%s7 + $0x88] sm:$0xff]
  %v2471 = vld [vmem:[%s7 + $0x90] sm:$0xff]
  %v2472 = vld [vmem:[%s7 + $0x98] sm:$0xff]
  %v2473 = vld [vmem:[%s7 + $0xa0] sm:$0xff]
  %v2474 = vld [vmem:[%s7 + $0xa8] sm:$0xff]
  %v2475 = vld [vmem:[%s7 + $0xb0] sm:$0xff]
  %v2476 = vld [vmem:[%s7 + $0xb8] sm:$0xff]
  %v2477 = vld [vmem:[%s7 + $0xc0] sm:$0xff]
  %v2478 = vld [vmem:[%s7 + $0xc8] sm:$0xff]
  %v2479 = vld [vmem:[%s7 + $0xd0] sm:$0xff]
  %v2480 = vld [vmem:[%s7 + $0xd8] sm:$0xff]
  %v2481 = vld [vmem:[%s7 + $0xe0] sm:$0xff]
  %v2482 = vld [vmem:[%s7 + $0xe8] sm:$0xff]
  %v2483 = vld [vmem:[%s7 + $0xf0] sm:$0xff]
  %v2484 = vld [vmem:[%s7 + $0xf8] sm:$0xff]
  %v2485 = vld [vmem:[%s7 + $0x100] sm:$0xff]
  %v2486 = vld [vmem:[%s7 + $0x108] sm:$0xff]
  %v2487 = vld [vmem:[%s7 + $0x110] sm:$0xff]
  %v2488 = vld [vmem:[%s7 + $0x118] sm:$0xff]
  %v2489 = vld [vmem:[%s7 + $0x120] sm:$0xff]
  %v2490 = vld [vmem:[%s7 + $0x128] sm:$0xff]
  %v2491 = vld [vmem:[%s7 + $0x130] sm:$0xff]
  %v2492 = vld [vmem:[%s7 + $0x138] sm:$0xff]
  %v2493 = vld [vmem:[%s7 + $0x140] sm:$0xff]
  %v2494 = vld [vmem:[%s7 + $0x148] sm:$0xff]
  %v2495 = vld [vmem:[%s7 + $0x150] sm:$0xff]
  %v2496 = vld [vmem:[%s7 + $0x158] sm:$0xff]
  %v2497 = vld [vmem:[%s7 + $0x160] sm:$0xff]
  %v2498 = vld [vmem:[%s7 + $0x168] sm:$0xff]
  %v2499 = vld [vmem:[%s7 + $0x170] sm:$0xff]
  %v2500 = vld [vmem:[%s7 + $0x178] sm:$0xff]
  %v2501 = vld [vmem:[%s7 + $0x180] sm:$0xff]
  %v2502 = vld [vmem:[%s7 + $0x188] sm:$0xff]
  %v2503 = vld [vmem:[%s7 + $0x190] sm:$0xff]
  %v2504 = vld [vmem:[%s7 + $0x198] sm:$0xff]
  %v2505 = vld [vmem:[%s7 + $0x1a0] sm:$0xff]
  %v2506 = vld [vmem:[%s7 + $0x1a8] sm:$0xff]
  %v2507 = vld [vmem:[%s7 + $0x1b0] sm:$0xff]
  %v2508 = vld [vmem:[%s7 + $0x1b8] sm:$0xff]
  %v2509 = vld [vmem:[%s7 + $0x1c0] sm:$0xff]
  %v2510 = vld [vmem:[%s7 + $0x1c8] sm:$0xff]
  %v2511 = vld [vmem:[%s7 + $0x1d0] sm:$0xff]
  %v2512 = vld [vmem:[%s7 + $0x1d8] sm:$0xff]
  %v2513 = vld [vmem:[%s7 + $0x1e0] sm:$0xff]
  %v2514 = vld [vmem:[%s7 + $0x1e8] sm:$0xff]
  %v2515 = vld [vmem:[%s7 + $0x1f0] sm:$0xff]
  %v2516 = vld [vmem:[%s7 + $0x1f8] sm:$0xff]
  %v2517 = vld [vmem:[%s7 + $0x200] sm:$0xff]
  %v2518 = vld [vmem:[%s7 + $0x208] sm:$0xff]
  %v2519 = vld [vmem:[%s7 + $0x210] sm:$0xff]
  %v2520 = vld [vmem:[%s7 + $0x218] sm:$0xff]
  %v2521 = vld [vmem:[%s7 + $0x220] sm:$0xff]
  %v2522 = vld [vmem:[%s7 + $0x228] sm:$0xff]
  %v2523 = vld [vmem:[%s7 + $0x230] sm:$0xff]
  %v2524 = vld [vmem:[%s7 + $0x238] sm:$0xff]
  %v2525 = vld [vmem:[%s7 + $0x240] sm:$0xff]
  %v2526 = vld [vmem:[%s7 + $0x248] sm:$0xff]
  %v2527 = vld [vmem:[%s7 + $0x250] sm:$0xff]
  %v2528 = vld [vmem:[%s7 + $0x258] sm:$0xff]
  %v2529 = vld [vmem:[%s7 + $0x260] sm:$0xff]
  %v2530 = vld [vmem:[%s7 + $0x268] sm:$0xff]
  %v2531 = vld [vmem:[%s7 + $0x270] sm:$0xff]
  %v2532 = vld [vmem:[%s7 + $0x278] sm:$0xff]
  %v2533 = vld [vmem:[%s7 + $0x280] sm:$0xff]
  %v2534 = vld [vmem:[%s7 + $0x288] sm:$0xff]
  %v2535 = vld [vmem:[%s7 + $0x290] sm:$0xff]
  %v2536 = vld [vmem:[%s7 + $0x298] sm:$0xff]
  %v2537 = vld [vmem:[%s7 + $0x2a0] sm:$0xff]
  %v2538 = vld [vmem:[%s7 + $0x2a8] sm:$0xff]
  %v2539 = vld [vmem:[%s7 + $0x2b0] sm:$0xff]
  %v2540 = vld [vmem:[%s7 + $0x2b8] sm:$0xff]
  %v2541 = vld [vmem:[%s7 + $0x2c0] sm:$0xff]
  %v2542 = vld [vmem:[%s7 + $0x2c8] sm:$0xff]
  %v2543 = vld [vmem:[%s7 + $0x2d0] sm:$0xff]
  %v2544 = vld [vmem:[%s7 + $0x2d8] sm:$0xff]
  %v2545 = vld [vmem:[%s7 + $0x2e0] sm:$0xff]
  %v2546 = vld [vmem:[%s7 + $0x2e8] sm:$0xff]
  %v2547 = vld [vmem:[%s7 + $0x2f0] sm:$0xff]
  %v2548 = vld [vmem:[%s7 + $0x2f8] sm:$0xff]
  %v2549 = vld [vmem:[%s7 + $0x300] sm:$0xff]
  %v2550 = vld [vmem:[%s7 + $0x308] sm:$0xff]
  %v2551 = vld [vmem:[%s7 + $0x310] sm:$0xff]
  %v2552 = vld [vmem:[%s7 + $0x318] sm:$0xff]
  %v2553 = vld [vmem:[%s7 + $0x320] sm:$0xff]
  %v2554 = vld [vmem:[%s7 + $0x328] sm:$0xff]
  %v2555 = vld [vmem:[%s7 + $0x330] sm:$0xff]
  %v2556 = vld [vmem:[%s7 + $0x338] sm:$0xff]
  %v2557 = vld [vmem:[%s7 + $0x340] sm:$0xff]
  %v2558 = vld [vmem:[%s7 + $0x348] sm:$0xff]
  %v2559 = vld [vmem:[%s7 + $0x350] sm:$0xff]
  %v2560 = vld [vmem:[%s7 + $0x358] sm:$0xff]
  %v2561 = vld [vmem:[%s7 + $0x360] sm:$0xff]
  %v2562 = vld [vmem:[%s7 + $0x368] sm:$0xff]
  %v2563 = vld [vmem:[%s7 + $0x370] sm:$0xff]
  %v2564 = vld [vmem:[%s7 + $0x378] sm:$0xff]
  %v2565 = vld [vmem:[%s7 + $0x380] sm:$0xff]
  %v2566 = vld [vmem:[%s7 + $0x388] sm:$0xff]
  %v2567 = vld [vmem:[%s7 + $0x390] sm:$0xff]
  %v2568 = vld [vmem:[%s7 + $0x398] sm:$0xff]
  %v2569 = vld [vmem:[%s7 + $0x3a0] sm:$0xff]
  %v2570 = vld [vmem:[%s7 + $0x3a8] sm:$0xff]
  %v2571 = vld [vmem:[%s7 + $0x3b0] sm:$0xff]
  %v2572 = vld [vmem:[%s7 + $0x3b8] sm:$0xff]
  %v2573 = vld [vmem:[%s7 + $0x3c0] sm:$0xff]
  %v2574 = vld [vmem:[%s7 + $0x3c8] sm:$0xff]
  %v2575 = vld [vmem:[%s7 + $0x3d0] sm:$0xff]
  %v2576 = vld [vmem:[%s7 + $0x3d8] sm:$0xff]
  %v2577 = vld [vmem:[%s7 + $0x3e0] sm:$0xff]
  %v2578 = vld [vmem:[%s7 + $0x3e8] sm:$0xff]
  %v2579 = vld [vmem:[%s7 + $0x3f0] sm:$0xff]
  %v2580 = vld [vmem:[%s7 + $0x3f8] sm:$0xff]
  %v2581 = vld [vmem:[%s7 + $0x400] sm:$0xff]
  %v2582 = vld [vmem:[%s7 + $0x408] sm:$0xff]
  %v2583 = vld [vmem:[%s7 + $0x410] sm:$0xff]
  %v2584 = vld [vmem:[%s7 + $0x418] sm:$0xff]
  %v2585 = vld [vmem:[%s7 + $0x420] sm:$0xff]
  %v2586 = vld [vmem:[%s7 + $0x428] sm:$0xff]
  %v2587 = vld [vmem:[%s7 + $0x430] sm:$0xff]
  %v2588 = vld [vmem:[%s7 + $0x438] sm:$0xff]
  %v2589 = vld [vmem:[%s7 + $0x440] sm:$0xff]
  %v2590 = vld [vmem:[%s7 + $0x448] sm:$0xff]
  %v2591 = vld [vmem:[%s7 + $0x450] sm:$0xff]
  %v2592 = vld [vmem:[%s7 + $0x458] sm:$0xff]
  %v2593 = vld [vmem:[%s7 + $0x460] sm:$0xff]
  %v2594 = vld [vmem:[%s7 + $0x468] sm:$0xff]
  %v2595 = vld [vmem:[%s7 + $0x470] sm:$0xff]
  %v2596 = vld [vmem:[%s7 + $0x478] sm:$0xff]
  %v2597 = vld [vmem:[%s7 + $0x480] sm:$0xff]
  %v2598 = vld [vmem:[%s7 + $0x488] sm:$0xff]
  %v2599 = vld [vmem:[%s7 + $0x490] sm:$0xff]
  %v2600 = vld [vmem:[%s7 + $0x498] sm:$0xff]
  %v2601 = vld [vmem:[%s7 + $0x4a0] sm:$0xff]
  %v2602 = vld [vmem:[%s7 + $0x4a8] sm:$0xff]
  %v2603 = vld [vmem:[%s7 + $0x4b0] sm:$0xff]
  %v2604 = vld [vmem:[%s7 + $0x4b8] sm:$0xff]
  %v2605 = vld [vmem:[%s7 + $0x4c0] sm:$0xff]
  %v2606 = vld [vmem:[%s7 + $0x4c8] sm:$0xff]
  %v2607 = vld [vmem:[%s7 + $0x4d0] sm:$0xff]
  %v2608 = vld [vmem:[%s7 + $0x4d8] sm:$0xff]
  %v2609 = vld [vmem:[%s7 + $0x4e0] sm:$0xff]
  %v2610 = vld [vmem:[%s7 + $0x4e8] sm:$0xff]
  %v2611 = vld [vmem:[%s7 + $0x4f0] sm:$0xff]
  %v2612 = vld [vmem:[%s7 + $0x4f8] sm:$0xff]
  %v2613 = vld [vmem:[%s7 + $0x500] sm:$0xff]
  %v2614 = vld [vmem:[%s7 + $0x508] sm:$0xff]
  %v2615 = vld [vmem:[%s7 + $0x510] sm:$0xff]
  %v2616 = vld [vmem:[%s7 + $0x518] sm:$0xff]
  %v2617 = vld [vmem:[%s7 + $0x520] sm:$0xff]
  %v2618 = vld [vmem:[%s7 + $0x528] sm:$0xff]
  %v2619 = vld [vmem:[%s7 + $0x530] sm:$0xff]
  %v2620 = vld [vmem:[%s7 + $0x538] sm:$0xff]
  %v2621 = vld [vmem:[%s7 + $0x540] sm:$0xff]
  %v2622 = vld [vmem:[%s7 + $0x548] sm:$0xff]
  %v2623 = vld [vmem:[%s7 + $0x550] sm:$0xff]
  %v2624 = vld [vmem:[%s7 + $0x558] sm:$0xff]
  %v2625 = vld [vmem:[%s7 + $0x560] sm:$0xff]
  %v2626 = vld [vmem:[%s7 + $0x568] sm:$0xff]
  %v2627 = vld [vmem:[%s7 + $0x570] sm:$0xff]
  %v2628 = vld [vmem:[%s7 + $0x578] sm:$0xff]
  %v2629 = vld [vmem:[%s7 + $0x580] sm:$0xff]
  %v2630 = vld [vmem:[%s7 + $0x588] sm:$0xff]
  %v2631 = vld [vmem:[%s7 + $0x590] sm:$0xff]
  %v2632 = vld [vmem:[%s7 + $0x598] sm:$0xff]
  %v2633 = vld [vmem:[%s7 + $0x5a0] sm:$0xff]
  %v2634 = vld [vmem:[%s7 + $0x5a8] sm:$0xff]
  %v2635 = vld [vmem:[%s7 + $0x5b0] sm:$0xff]
  %v2636 = vld [vmem:[%s7 + $0x5b8] sm:$0xff]
  %v2637 = vld [vmem:[%s7 + $0x5c0] sm:$0xff]
  %v2638 = vld [vmem:[%s7 + $0x5c8] sm:$0xff]
  %v2639 = vld [vmem:[%s7 + $0x5d0] sm:$0xff]
  %v2640 = vld [vmem:[%s7 + $0x5d8] sm:$0xff]
  %v2641 = vld [vmem:[%s7 + $0x5e0] sm:$0xff]
  %v2642 = vld [vmem:[%s7 + $0x5e8] sm:$0xff]
  %v2643 = vld [vmem:[%s7 + $0x5f0] sm:$0xff]
  %v2644 = vld [vmem:[%s7 + $0x5f8] sm:$0xff]
  %v2645 = vld [vmem:[%s7 + $0x600] sm:$0xff]
  %v2646 = vld [vmem:[%s7 + $0x608] sm:$0xff]
  %v2647 = vld [vmem:[%s7 + $0x610] sm:$0xff]
  %v2648 = vld [vmem:[%s7 + $0x618] sm:$0xff]
  %v2649 = vld [vmem:[%s7 + $0x620] sm:$0xff]
  %v2650 = vld [vmem:[%s7 + $0x628] sm:$0xff]
  %v2651 = vld [vmem:[%s7 + $0x630] sm:$0xff]
  %v2652 = vld [vmem:[%s7 + $0x638] sm:$0xff]
  %v2653 = vld [vmem:[%s7 + $0x640] sm:$0xff]
  %v2654 = vld [vmem:[%s7 + $0x648] sm:$0xff]
  %v2655 = vld [vmem:[%s7 + $0x650] sm:$0xff]
  %v2656 = vld [vmem:[%s7 + $0x658] sm:$0xff]
  %v2657 = vld [vmem:[%s7 + $0x660] sm:$0xff]
  %v2658 = vld [vmem:[%s7 + $0x668] sm:$0xff]
  %v2659 = vld [vmem:[%s7 + $0x670] sm:$0xff]
  %v2660 = vld [vmem:[%s7 + $0x678] sm:$0xff]
  %v2661 = vld [vmem:[%s7 + $0x680] sm:$0xff]
  %v2662 = vld [vmem:[%s7 + $0x688] sm:$0xff]
  %v2663 = vld [vmem:[%s7 + $0x690] sm:$0xff]
  %v2664 = vld [vmem:[%s7 + $0x698] sm:$0xff]
  %v2665 = vld [vmem:[%s7 + $0x6a0] sm:$0xff]
  %v2666 = vld [vmem:[%s7 + $0x6a8] sm:$0xff]
  %v2667 = vld [vmem:[%s7 + $0x6b0] sm:$0xff]
  %v2668 = vld [vmem:[%s7 + $0x6b8] sm:$0xff]
  %v2669 = vld [vmem:[%s7 + $0x6c0] sm:$0xff]
  %v2670 = vld [vmem:[%s7 + $0x6c8] sm:$0xff]
  %v2671 = vld [vmem:[%s7 + $0x6d0] sm:$0xff]
  %v2672 = vld [vmem:[%s7 + $0x6d8] sm:$0xff]
  %v2673 = vld [vmem:[%s7 + $0x6e0] sm:$0xff]
  %v2674 = vld [vmem:[%s7 + $0x6e8] sm:$0xff]
  %v2675 = vld [vmem:[%s7 + $0x6f0] sm:$0xff]
  %v2676 = vld [vmem:[%s7 + $0x6f8] sm:$0xff]
  %v2677 = vld [vmem:[%s7 + $0x700] sm:$0xff]
  %v2678 = vld [vmem:[%s7 + $0x708] sm:$0xff]
  %v2679 = vld [vmem:[%s7 + $0x710] sm:$0xff]
  %v2680 = vld [vmem:[%s7 + $0x718] sm:$0xff]
  %v2681 = vld [vmem:[%s7 + $0x720] sm:$0xff]
  %v2682 = vld [vmem:[%s7 + $0x728] sm:$0xff]
  %v2683 = vld [vmem:[%s7 + $0x730] sm:$0xff]
  %v2684 = vld [vmem:[%s7 + $0x738] sm:$0xff]
  %v2685 = vld [vmem:[%s7 + $0x740] sm:$0xff]
  %v2686 = vld [vmem:[%s7 + $0x748] sm:$0xff]
  %v2687 = vld [vmem:[%s7 + $0x750] sm:$0xff]
  %v2688 = vld [vmem:[%s7 + $0x758] sm:$0xff]
  %v2689 = vld [vmem:[%s7 + $0x760] sm:$0xff]
  %v2690 = vld [vmem:[%s7 + $0x768] sm:$0xff]
  %v2691 = vld [vmem:[%s7 + $0x770] sm:$0xff]
  %v2692 = vld [vmem:[%s7 + $0x778] sm:$0xff]
  %v2693 = vld [vmem:[%s8] sm:$0x7]
  %v2695 = vlaneseq
  %v2696 = vshrl.u32 %v2695, 7
  %v2697 = vsub.s32 0, %v2696
  %v2698 = vrot.slane %v2693, %v2697
  %v2699 = vlaneseq
  %v2700 = vshrl.u32 %v2699, 7
  %v2701 = vsub.s32 1, %v2700
  %v2702 = vrot.slane %v2693, %v2701
  %v2703 = vlaneseq
  %v2704 = vshrl.u32 %v2703, 7
  %v2705 = vsub.s32 2, %v2704
  %v2706 = vrot.slane %v2693, %v2705
  %2710 = vmatprep.subr.mxu0 %v2454
  %2711 = vmatpush1.msra.mxu0 %v2453
  %2712 = vmatprep.subr.mxu0 %v2457
  %2713 = vmatpush1.msra.mxu0 %v2456
  %2714 = vmatprep.subr.mxu0 %v2460
  %2715 = vmatpush1.msra.mxu0 %v2459
  %2716 = vmatprep.subr.mxu0 %v2463
  %2717 = vmatpush1.msra.mxu0 %v2462
  %2718 = vmatprep.subr.mxu0 %v2466
  %2719 = vmatpush1.msra.mxu0 %v2465
  %2720 = vmatprep.subr.mxu0 %v2469
  %2721 = vmatpush1.msra.mxu0 %v2468
  %2722 = vmatprep.subr.mxu0 %v2472
  %2723 = vmatpush1.msra.mxu0 %v2471
  %2724 = vmatprep.subr.mxu0 %v2475
  %2725 = vmatpush1.msra.mxu0 %v2474
  %2726 = vmatprep.subr.mxu0 %v2478
  %2727 = vmatpush1.msra.mxu0 %v2477
  %2728 = vmatprep.subr.mxu0 %v2481
  %2729 = vmatpush1.msra.mxu0 %v2480
  %2730 = vmatprep.subr.mxu0 %v2484
  %2731 = vmatpush1.msra.mxu0 %v2483
  %2732 = vmatprep.subr.mxu0 %v2487
  %2733 = vmatpush1.msra.mxu0 %v2486
  %2734 = vmatprep.subr.mxu0 %v2490
  %2735 = vmatpush1.msra.mxu0 %v2489
  %2736 = vmatprep.subr.mxu0 %v2493
  %2737 = vmatpush1.msra.mxu0 %v2492
  %2738 = vmatprep.subr.mxu0 %v2496
  %2739 = vmatpush1.msra.mxu0 %v2495
  %2740 = vmatprep.subr.mxu0 %v2499
  %2741 = vmatpush1.msra.mxu0 %v2498
  %2742 = vmatprep.subr.mxu0 %v2502
  %2743 = vmatpush1.msra.mxu0 %v2501
  %2744 = vmatprep.subr.mxu0 %v2505
  %2745 = vmatpush1.msra.mxu0 %v2504
  %2746 = vmatprep.subr.mxu0 %v2508
  %2747 = vmatpush1.msra.mxu0 %v2507
  %2748 = vmatprep.subr.mxu0 %v2511
  %2749 = vmatpush1.msra.mxu0 %v2510
  %2750 = vmatprep.subr.mxu0 %v2514
  %2751 = vmatpush1.msra.mxu0 %v2513
  %2752 = vmatprep.subr.mxu0 %v2517
  %2753 = vmatpush1.msra.mxu0 %v2516
  %2754 = vmatprep.subr.mxu0 %v2520
  %2755 = vmatpush1.msra.mxu0 %v2519
  %2756 = vmatprep.subr.mxu0 %v2523
  %2757 = vmatpush1.msra.mxu0 %v2522
  %2758 = vmatprep.subr.mxu0 %v2526
  %2759 = vmatpush1.msra.mxu0 %v2525
  %2760 = vmatprep.subr.mxu0 %v2529
  %2761 = vmatpush1.msra.mxu0 %v2528
  %2762 = vmatprep.subr.mxu0 %v2532
  %2763 = vmatpush1.msra.mxu0 %v2531
  %2764 = vmatprep.subr.mxu0 %v2535
  %2765 = vmatpush1.msra.mxu0 %v2534
  %2766 = vmatprep.subr.mxu0 %v2538
  %2767 = vmatpush1.msra.mxu0 %v2537
  %2768 = vmatprep.subr.mxu0 %v2541
  %2769 = vmatpush1.msra.mxu0 %v2540
  %2770 = vmatprep.subr.mxu0 %v2544
  %2771 = vmatpush1.msra.mxu0 %v2543
  %2772 = vmatprep.subr.mxu0 %v2547
  %2773 = vmatpush1.msra.mxu0 %v2546
  %2774 = vmatprep.mubr.f32.mxu0 %v2429
  %2775 = vmatmul.mubr.f32.gmra.mrb[0].mxu0 %v2428
  %v2776 = vpop.f32.mrb[0].mxu0
  %v2777 = vadd.f32 %v2698, %v2776
  %v2778 = vpop.f32.mrb[0].mxu0
  %v2779 = vadd.f32 %v2702, %v2778
  %2780 = vmatprep.mubr.f32.mxu0 %v2434
  %2781 = vmatmul.mubr.f32.gmra.mrb[0].mxu0 %v2433
  %v2782 = vpop.f32.mrb[0].mxu0
  %v2783 = vadd.f32 %v2698, %v2782
  %v2784 = vpop.f32.mrb[0].mxu0
  %v2785 = vadd.f32 %v2702, %v2784
  %2786 = vmatprep.mubr.f32.mxu0 %v2439
  %2787 = vmatmul.mubr.f32.gmra.mrb[0].mxu0 %v2438
  %v2788 = vpop.f32.mrb[0].mxu0
  %v2789 = vadd.f32 %v2698, %v2788
  %v2790 = vpop.f32.mrb[0].mxu0
  %v2791 = vadd.f32 %v2702, %v2790
  %2792 = vmatprep.mubr.f32.mxu0 %v2444
  %2793 = vmatmul.mubr.f32.gmra.mrb[0].mxu0 %v2443
  %v2794 = vpop.f32.mrb[0].mxu0
  %v2795 = vadd.f32 %v2698, %v2794
  %v2796 = vpop.f32.mrb[0].mxu0
  %v2797 = vadd.f32 %v2702, %v2796
  %2798 = vmatprep.mubr.f32.mxu0 %v2449
  %2799 = vmatmul.mubr.f32.gmra.mrb[0].mxu0 %v2448
  %v2800 = vpop.f32.mrb[0].mxu0
  %v2801 = vadd.f32 %v2698, %v2800
  %v2802 = vpop.f32.mrb[0].mxu0
  %v2803 = vadd.f32 %v2702, %v2802
  %2804 = vdwg.mxu0
  %2805 = vmatprep.subr.mxu0 %v2550
  %2806 = vmatpush1.msra.mxu0 %v2549
  %2807 = vmatprep.subr.mxu0 %v2553
  %2808 = vmatpush1.msra.mxu0 %v2552
  %2809 = vmatprep.subr.mxu0 %v2556
  %2810 = vmatpush1.msra.mxu0 %v2555
  %2811 = vmatprep.subr.mxu0 %v2559
  %2812 = vmatpush1.msra.mxu0 %v2558
  %2813 = vmatprep.subr.mxu0 %v2562
  %2814 = vmatpush1.msra.mxu0 %v2561
  %2815 = vmatprep.subr.mxu0 %v2565
  %2816 = vmatpush1.msra.mxu0 %v2564
  %2817 = vmatprep.subr.mxu0 %v2568
  %2818 = vmatpush1.msra.mxu0 %v2567
  %2819 = vmatprep.subr.mxu0 %v2571
  %2820 = vmatpush1.msra.mxu0 %v2570
  %2821 = vmatprep.subr.mxu0 %v2574
  %2822 = vmatpush1.msra.mxu0 %v2573
  %2823 = vmatprep.subr.mxu0 %v2577
  %2824 = vmatpush1.msra.mxu0 %v2576
  %2825 = vmatprep.subr.mxu0 %v2580
  %2826 = vmatpush1.msra.mxu0 %v2579
  %2827 = vmatprep.subr.mxu0 %v2583
  %2828 = vmatpush1.msra.mxu0 %v2582
  %2829 = vmatprep.subr.mxu0 %v2586
  %2830 = vmatpush1.msra.mxu0 %v2585
  %2831 = vmatprep.subr.mxu0 %v2589
  %2832 = vmatpush1.msra.mxu0 %v2588
  %2833 = vmatprep.subr.mxu0 %v2592
  %2834 = vmatpush1.msra.mxu0 %v2591
  %2835 = vmatprep.subr.mxu0 %v2595
  %2836 = vmatpush1.msra.mxu0 %v2594
  %2837 = vmatprep.subr.mxu0 %v2598
  %2838 = vmatpush1.msra.mxu0 %v2597
  %2839 = vmatprep.subr.mxu0 %v2601
  %2840 = vmatpush1.msra.mxu0 %v2600
  %2841 = vmatprep.subr.mxu0 %v2604
  %2842 = vmatpush1.msra.mxu0 %v2603
  %2843 = vmatprep.subr.mxu0 %v2607
  %2844 = vmatpush1.msra.mxu0 %v2606
  %2845 = vmatprep.subr.mxu0 %v2610
  %2846 = vmatpush1.msra.mxu0 %v2609
  %2847 = vmatprep.subr.mxu0 %v2613
  %2848 = vmatpush1.msra.mxu0 %v2612
  %2849 = vmatprep.subr.mxu0 %v2616
  %2850 = vmatpush1.msra.mxu0 %v2615
  %2851 = vmatprep.subr.mxu0 %v2619
  %2852 = vmatpush1.msra.mxu0 %v2618
  %2853 = vmatprep.subr.mxu0 %v2622
  %2854 = vmatpush1.msra.mxu0 %v2621
  %2855 = vmatprep.subr.mxu0 %v2625
  %2856 = vmatpush1.msra.mxu0 %v2624
  %2857 = vmatprep.subr.mxu0 %v2628
  %2858 = vmatpush1.msra.mxu0 %v2627
  %2859 = vmatprep.subr.mxu0 %v2631
  %2860 = vmatpush1.msra.mxu0 %v2630
  %2861 = vmatprep.subr.mxu0 %v2634
  %2862 = vmatpush1.msra.mxu0 %v2633
  %2863 = vmatprep.subr.mxu0 %v2637
  %2864 = vmatpush1.msra.mxu0 %v2636
  %2865 = vmatprep.subr.mxu0 %v2640
  %2866 = vmatpush1.msra.mxu0 %v2639
  %2867 = vmatprep.subr.mxu0 %v2643
  %2868 = vmatpush1.msra.mxu0 %v2642
  %2869 = vmatprep.mubr.f32.mxu0 %v2431
  %2870 = vmatmul.mubr.f32.gmra.mrb[0].mxu0 %v2430
  %v2871 = vpop.f32.mrb[0].mxu0
  %v2872 = vadd.f32 %v2777, %v2871
  %v2873 = vpop.f32.mrb[0].mxu0
  %v2874 = vadd.f32 %v2779, %v2873
  %2875 = vmatprep.mubr.f32.mxu0 %v2436
  %2876 = vmatmul.mubr.f32.gmra.mrb[0].mxu0 %v2435
  %v2877 = vpop.f32.mrb[0].mxu0
  %v2878 = vadd.f32 %v2783, %v2877
  %v2879 = vpop.f32.mrb[0].mxu0
  %v2880 = vadd.f32 %v2785, %v2879
  %2881 = vmatprep.mubr.f32.mxu0 %v2441
  %2882 = vmatmul.mubr.f32.gmra.mrb[0].mxu0 %v2440
  %v2883 = vpop.f32.mrb[0].mxu0
  %v2884 = vadd.f32 %v2789, %v2883
  %v2885 = vpop.f32.mrb[0].mxu0
  %v2886 = vadd.f32 %v2791, %v2885
  %2887 = vmatprep.mubr.f32.mxu0 %v2446
  %2888 = vmatmul.mubr.f32.gmra.mrb[0].mxu0 %v2445
  %v2889 = vpop.f32.mrb[0].mxu0
  %v2890 = vadd.f32 %v2795, %v2889
  %v2891 = vpop.f32.mrb[0].mxu0
  %v2892 = vadd.f32 %v2797, %v2891
  %2893 = vmatprep.mubr.f32.mxu0 %v2451
  %2894 = vmatmul.mubr.f32.gmra.mrb[0].mxu0 %v2450
  %v2895 = vpop.f32.mrb[0].mxu0
  %v2896 = vadd.f32 %v2801, %v2895
  %v2897 = vpop.f32.mrb[0].mxu0
  %v2898 = vadd.f32 %v2803, %v2897
  %2899 = vdwg.mxu0
  %2900 = vmatprep.subr.mxu0 %v2646
  %2901 = vmatpush1.msra.mxu0 %v2645
  %2902 = vmatprep.subr.mxu0 %v2649
  %2903 = vmatpush1.msra.mxu0 %v2648
  %2904 = vmatprep.subr.mxu0 %v2652
  %2905 = vmatpush1.msra.mxu0 %v2651
  %2906 = vmatprep.subr.mxu0 %v2655
  %2907 = vmatpush1.msra.mxu0 %v2654
  %2908 = vmatprep.subr.mxu0 %v2658
  %2909 = vmatpush1.msra.mxu0 %v2657
  %2910 = vmatprep.subr.mxu0 %v2661
  %2911 = vmatpush1.msra.mxu0 %v2660
  %2912 = vmatprep.subr.mxu0 %v2664
  %2913 = vmatpush1.msra.mxu0 %v2663
  %2914 = vmatprep.subr.mxu0 %v2667
  %2915 = vmatpush1.msra.mxu0 %v2666
  %2916 = vmatprep.subr.mxu0 %v2670
  %2917 = vmatpush1.msra.mxu0 %v2669
  %2918 = vmatprep.subr.mxu0 %v2673
  %2919 = vmatpush1.msra.mxu0 %v2672
  %2920 = vmatprep.subr.mxu0 %v2676
  %2921 = vmatpush1.msra.mxu0 %v2675
  %2922 = vmatprep.subr.mxu0 %v2679
  %2923 = vmatpush1.msra.mxu0 %v2678
  %2924 = vmatprep.subr.mxu0 %v2682
  %2925 = vmatpush1.msra.mxu0 %v2681
  %2926 = vmatprep.subr.mxu0 %v2685
  %2927 = vmatpush1.msra.mxu0 %v2684
  %2928 = vmatprep.subr.mxu0 %v2688
  %2929 = vmatpush1.msra.mxu0 %v2687
  %2930 = vmatprep.subr.mxu0 %v2691
  %2931 = vmatpush1.msra.mxu0 %v2690
  %2932 = vmatprep.subr.mxu0 0.0
  %2933 = vmatpush1.msra.mxu0 0.0
  %2934 = vmatprep.subr.mxu0 0.0
  %2935 = vmatpush1.msra.mxu0 0.0
  %2936 = vmatprep.subr.mxu0 0.0
  %2937 = vmatpush1.msra.mxu0 0.0
  %2938 = vmatprep.subr.mxu0 0.0
  %2939 = vmatpush1.msra.mxu0 0.0
  %2940 = vmatprep.subr.mxu0 0.0
  %2941 = vmatpush1.msra.mxu0 0.0
  %2942 = vmatprep.subr.mxu0 0.0
  %2943 = vmatpush1.msra.mxu0 0.0
  %2944 = vmatprep.subr.mxu0 0.0
  %2945 = vmatpush1.msra.mxu0 0.0
  %2946 = vmatprep.subr.mxu0 0.0
  %2947 = vmatpush1.msra.mxu0 0.0
  %2948 = vmatprep.subr.mxu0 0.0
  %2949 = vmatpush1.msra.mxu0 0.0
  %2950 = vmatprep.subr.mxu0 0.0
  %2951 = vmatpush1.msra.mxu0 0.0
  %2952 = vmatprep.subr.mxu0 0.0
  %2953 = vmatpush1.msra.mxu0 0.0
  %2954 = vmatprep.subr.mxu0 0.0
  %2955 = vmatpush1.msra.mxu0 0.0
  %2956 = vmatprep.subr.mxu0 0.0
  %2957 = vmatpush1.msra.mxu0 0.0
  %2958 = vmatprep.subr.mxu0 0.0
  %2959 = vmatpush1.msra.mxu0 0.0
  %2960 = vmatprep.subr.mxu0 0.0
  %2961 = vmatpush1.msra.mxu0 0.0
  %2962 = vmatprep.subr.mxu0 0.0
  %2963 = vmatpush1.msra.mxu0 0.0
  %2964 = vmatprep.mubr.f32.mxu0 0.0
  %2965 = vmatmul.mubr.f32.gmra.mrb[0].mxu0 %v2432
  %v2966 = vpop.f32.mrb[0].mxu0
  %v2967 = vadd.f32 %v2872, %v2966
  %v2968 = vpop.f32.mrb[0].mxu0
  %v2969 = vadd.f32 %v2874, %v2968
  %2970 = vmatprep.mubr.f32.mxu0 0.0
  %2971 = vmatmul.mubr.f32.gmra.mrb[0].mxu0 %v2437
  %v2972 = vpop.f32.mrb[0].mxu0
  %v2973 = vadd.f32 %v2878, %v2972
  %v2974 = vpop.f32.mrb[0].mxu0
  %v2975 = vadd.f32 %v2880, %v2974
  %2976 = vmatprep.mubr.f32.mxu0 0.0
  %2977 = vmatmul.mubr.f32.gmra.mrb[0].mxu0 %v2442
  %v2978 = vpop.f32.mrb[0].mxu0
  %v2979 = vadd.f32 %v2884, %v2978
  %v2980 = vpop.f32.mrb[0].mxu0
  %v2981 = vadd.f32 %v2886, %v2980
  %2982 = vmatprep.mubr.f32.mxu0 0.0
  %2983 = vmatmul.mubr.f32.gmra.mrb[0].mxu0 %v2447
  %v2984 = vpop.f32.mrb[0].mxu0
  %v2985 = vadd.f32 %v2890, %v2984
  %v2986 = vpop.f32.mrb[0].mxu0
  %v2987 = vadd.f32 %v2892, %v2986
  %2988 = vmatprep.mubr.f32.mxu0 0.0
  %2989 = vmatmul.mubr.f32.gmra.mrb[0].mxu0 %v2452
  %v2990 = vpop.f32.mrb[0].mxu0
  %v2991 = vadd.f32 %v2896, %v2990
  %v2992 = vpop.f32.mrb[0].mxu0
  %v2993 = vadd.f32 %v2898, %v2992
  %2994 = vdwg.mxu0
  %2995 = vmatprep.subr.mxu0 0.0
  %2996 = vmatpush1.msra.mxu0 %v2455
  %2997 = vmatprep.subr.mxu0 0.0
  %2998 = vmatpush1.msra.mxu0 %v2458
  %2999 = vmatprep.subr.mxu0 0.0
  %3000 = vmatpush1.msra.mxu0 %v2461
  %3001 = vmatprep.subr.mxu0 0.0
  %3002 = vmatpush1.msra.mxu0 %v2464
  %3003 = vmatprep.subr.mxu0 0.0
  %3004 = vmatpush1.msra.mxu0 %v2467
  %3005 = vmatprep.subr.mxu0 0.0
  %3006 = vmatpush1.msra.mxu0 %v2470
  %3007 = vmatprep.subr.mxu0 0.0
  %3008 = vmatpush1.msra.mxu0 %v2473
  %3009 = vmatprep.subr.mxu0 0.0
  %3010 = vmatpush1.msra.mxu0 %v2476
  %3011 = vmatprep.subr.mxu0 0.0
  %3012 = vmatpush1.msra.mxu0 %v2479
  %3013 = vmatprep.subr.mxu0 0.0
  %3014 = vmatpush1.msra.mxu0 %v2482
  %3015 = vmatprep.subr.mxu0 0.0
  %3016 = vmatpush1.msra.mxu0 %v2485
  %3017 = vmatprep.subr.mxu0 0.0
  %3018 = vmatpush1.msra.mxu0 %v2488
  %3019 = vmatprep.subr.mxu0 0.0
  %3020 = vmatpush1.msra.mxu0 %v2491
  %3021 = vmatprep.subr.mxu0 0.0
  %3022 = vmatpush1.msra.mxu0 %v2494
  %3023 = vmatprep.subr.mxu0 0.0
  %3024 = vmatpush1.msra.mxu0 %v2497
  %3025 = vmatprep.subr.mxu0 0.0
  %3026 = vmatpush1.msra.mxu0 %v2500
  %3027 = vmatprep.subr.mxu0 0.0
  %3028 = vmatpush1.msra.mxu0 %v2503
  %3029 = vmatprep.subr.mxu0 0.0
  %3030 = vmatpush1.msra.mxu0 %v2506
  %3031 = vmatprep.subr.mxu0 0.0
  %3032 = vmatpush1.msra.mxu0 %v2509
  %3033 = vmatprep.subr.mxu0 0.0
  %3034 = vmatpush1.msra.mxu0 %v2512
  %3035 = vmatprep.subr.mxu0 0.0
  %3036 = vmatpush1.msra.mxu0 %v2515
  %3037 = vmatprep.subr.mxu0 0.0
  %3038 = vmatpush1.msra.mxu0 %v2518
  %3039 = vmatprep.subr.mxu0 0.0
  %3040 = vmatpush1.msra.mxu0 %v2521
  %3041 = vmatprep.subr.mxu0 0.0
  %3042 = vmatpush1.msra.mxu0 %v2524
  %3043 = vmatprep.subr.mxu0 0.0
  %3044 = vmatpush1.msra.mxu0 %v2527
  %3045 = vmatprep.subr.mxu0 0.0
  %3046 = vmatpush1.msra.mxu0 %v2530
  %3047 = vmatprep.subr.mxu0 0.0
  %3048 = vmatpush1.msra.mxu0 %v2533
  %3049 = vmatprep.subr.mxu0 0.0
  %3050 = vmatpush1.msra.mxu0 %v2536
  %3051 = vmatprep.subr.mxu0 0.0
  %3052 = vmatpush1.msra.mxu0 %v2539
  %3053 = vmatprep.subr.mxu0 0.0
  %3054 = vmatpush1.msra.mxu0 %v2542
  %3055 = vmatprep.subr.mxu0 0.0
  %3056 = vmatpush1.msra.mxu0 %v2545
  %3057 = vmatprep.subr.mxu0 0.0
  %3058 = vmatpush1.msra.mxu0 %v2548
  %3059 = vmatprep.mubr.f32.mxu0 %v2429
  %3060 = vmatmul.mubr.f32.gmra.mrb[0].mxu0 %v2428
  %v3061 = vpop.f32.mrb[0].mxu0
  %v3062 = vadd.f32 %v2706, %v3061
  %v3063 = vpop.f32.mrb[0].mxu0
  %3064 = vmatprep.mubr.f32.mxu0 %v2434
  %3065 = vmatmul.mubr.f32.gmra.mrb[0].mxu0 %v2433
  %v3066 = vpop.f32.mrb[0].mxu0
  %v3067 = vadd.f32 %v2706, %v3066
  %v3068 = vpop.f32.mrb[0].mxu0
  %3069 = vmatprep.mubr.f32.mxu0 %v2439
  %3070 = vmatmul.mubr.f32.gmra.mrb[0].mxu0 %v2438
  %v3071 = vpop.f32.mrb[0].mxu0
  %v3072 = vadd.f32 %v2706, %v3071
  %v3073 = vpop.f32.mrb[0].mxu0
  %3074 = vmatprep.mubr.f32.mxu0 %v2444
  %3075 = vmatmul.mubr.f32.gmra.mrb[0].mxu0 %v2443
  %v3076 = vpop.f32.mrb[0].mxu0
  %v3077 = vadd.f32 %v2706, %v3076
  %v3078 = vpop.f32.mrb[0].mxu0
  %3079 = vmatprep.mubr.f32.mxu0 %v2449
  %3080 = vmatmul.mubr.f32.gmra.mrb[0].mxu0 %v2448
  %v3081 = vpop.f32.mrb[0].mxu0
  %v3082 = vadd.f32 %v2706, %v3081
  %v3083 = vpop.f32.mrb[0].mxu0
  %3084 = vdwg.mxu0
  %3085 = vmatprep.subr.mxu0 0.0
  %3086 = vmatpush1.msra.mxu0 %v2551
  %3087 = vmatprep.subr.mxu0 0.0
  %3088 = vmatpush1.msra.mxu0 %v2554
  %3089 = vmatprep.subr.mxu0 0.0
  %3090 = vmatpush1.msra.mxu0 %v2557
  %3091 = vmatprep.subr.mxu0 0.0
  %3092 = vmatpush1.msra.mxu0 %v2560
  %3093 = vmatprep.subr.mxu0 0.0
  %3094 = vmatpush1.msra.mxu0 %v2563
  %3095 = vmatprep.subr.mxu0 0.0
  %3096 = vmatpush1.msra.mxu0 %v2566
  %3097 = vmatprep.subr.mxu0 0.0
  %3098 = vmatpush1.msra.mxu0 %v2569
  %3099 = vmatprep.subr.mxu0 0.0
  %3100 = vmatpush1.msra.mxu0 %v2572
  %3101 = vmatprep.subr.mxu0 0.0
  %3102 = vmatpush1.msra.mxu0 %v2575
  %3103 = vmatprep.subr.mxu0 0.0
  %3104 = vmatpush1.msra.mxu0 %v2578
  %3105 = vmatprep.subr.mxu0 0.0
  %3106 = vmatpush1.msra.mxu0 %v2581
  %3107 = vmatprep.subr.mxu0 0.0
  %3108 = vmatpush1.msra.mxu0 %v2584
  %3109 = vmatprep.subr.mxu0 0.0
  %3110 = vmatpush1.msra.mxu0 %v2587
  %3111 = vmatprep.subr.mxu0 0.0
  %3112 = vmatpush1.msra.mxu0 %v2590
  %3113 = vmatprep.subr.mxu0 0.0
  %3114 = vmatpush1.msra.mxu0 %v2593
  %3115 = vmatprep.subr.mxu0 0.0
  %3116 = vmatpush1.msra.mxu0 %v2596
  %3117 = vmatprep.subr.mxu0 0.0
  %3118 = vmatpush1.msra.mxu0 %v2599
  %3119 = vmatprep.subr.mxu0 0.0
  %3120 = vmatpush1.msra.mxu0 %v2602
  %3121 = vmatprep.subr.mxu0 0.0
  %3122 = vmatpush1.msra.mxu0 %v2605
  %3123 = vmatprep.subr.mxu0 0.0
  %3124 = vmatpush1.msra.mxu0 %v2608
  %3125 = vmatprep.subr.mxu0 0.0
  %3126 = vmatpush1.msra.mxu0 %v2611
  %3127 = vmatprep.subr.mxu0 0.0
  %3128 = vmatpush1.msra.mxu0 %v2614
  %3129 = vmatprep.subr.mxu0 0.0
  %3130 = vmatpush1.msra.mxu0 %v2617
  %3131 = vmatprep.subr.mxu0 0.0
  %3132 = vmatpush1.msra.mxu0 %v2620
  %3133 = vmatprep.subr.mxu0 0.0
  %3134 = vmatpush1.msra.mxu0 %v2623
  %3135 = vmatprep.subr.mxu0 0.0
  %3136 = vmatpush1.msra.mxu0 %v2626
  %3137 = vmatprep.subr.mxu0 0.0
  %3138 = vmatpush1.msra.mxu0 %v2629
  %3139 = vmatprep.subr.mxu0 0.0
  %3140 = vmatpush1.msra.mxu0 %v2632
  %3141 = vmatprep.subr.mxu0 0.0
  %3142 = vmatpush1.msra.mxu0 %v2635
  %3143 = vmatprep.subr.mxu0 0.0
  %3144 = vmatpush1.msra.mxu0 %v2638
  %3145 = vmatprep.subr.mxu0 0.0
  %3146 = vmatpush1.msra.mxu0 %v2641
  %3147 = vmatprep.subr.mxu0 0.0
  %3148 = vmatpush1.msra.mxu0 %v2644
  %3149 = vmatprep.mubr.f32.mxu0 %v2431
  %3150 = vmatmul.mubr.f32.gmra.mrb[0].mxu0 %v2430
  %v3151 = vpop.f32.mrb[0].mxu0
  %v3152 = vadd.f32 %v3062, %v3151
  %v3153 = vpop.f32.mrb[0].mxu0
  %3154 = vmatprep.mubr.f32.mxu0 %v2436
  %3155 = vmatmul.mubr.f32.gmra.mrb[0].mxu0 %v2435
  %v3156 = vpop.f32.mrb[0].mxu0
  %v3157 = vadd.f32 %v3067, %v3156
  %v3158 = vpop.f32.mrb[0].mxu0
  %3159 = vmatprep.mubr.f32.mxu0 %v2441
  %3160 = vmatmul.mubr.f32.gmra.mrb[0].mxu0 %v2440
  %v3161 = vpop.f32.mrb[0].mxu0
  %v3162 = vadd.f32 %v3072, %v3161
  %v3163 = vpop.f32.mrb[0].mxu0
  %3164 = vmatprep.mubr.f32.mxu0 %v2446
  %3165 = vmatmul.mubr.f32.gmra.mrb[0].mxu0 %v2445
  %v3166 = vpop.f32.mrb[0].mxu0
  %v3167 = vadd.f32 %v3077, %v3166
  %v3168 = vpop.f32.mrb[0].mxu0
  %3169 = vmatprep.mubr.f32.mxu0 %v2451
  %3170 = vmatmul.mubr.f32.gmra.mrb[0].mxu0 %v2450
  %v3171 = vpop.f32.mrb[0].mxu0
  %v3172 = vadd.f32 %v3082, %v3171
  %v3173 = vpop.f32.mrb[0].mxu0
  %3174 = vdwg.mxu0
  %3175 = vmatprep.subr.mxu0 0.0
  %3176 = vmatpush1.msra.mxu0 %v2647
  %3177 = vmatprep.subr.mxu0 0.0
  %3178 = vmatpush1.msra.mxu0 %v2650
  %3179 = vmatprep.subr.mxu0 0.0
  %3180 = vmatpush1.msra.mxu0 %v2653
  %3181 = vmatprep.subr.mxu0 0.0
  %3182 = vmatpush1.msra.mxu0 %v2656
  %3183 = vmatprep.subr.mxu0 0.0
  %3184 = vmatpush1.msra.mxu0 %v2659
  %3185 = vmatprep.subr.mxu0 0.0
  %3186 = vmatpush1.msra.mxu0 %v2662
  %3187 = vmatprep.subr.mxu0 0.0
  %3188 = vmatpush1.msra.mxu0 %v2665
  %3189 = vmatprep.subr.mxu0 0.0
  %3190 = vmatpush1.msra.mxu0 %v2668
  %3191 = vmatprep.subr.mxu0 0.0
  %3192 = vmatpush1.msra.mxu0 %v2671
  %3193 = vmatprep.subr.mxu0 0.0
  %3194 = vmatpush1.msra.mxu0 %v2674
  %3195 = vmatprep.subr.mxu0 0.0
  %3196 = vmatpush1.msra.mxu0 %v2677
  %3197 = vmatprep.subr.mxu0 0.0
  %3198 = vmatpush1.msra.mxu0 %v2680
  %3199 = vmatprep.subr.mxu0 0.0
  %3200 = vmatpush1.msra.mxu0 %v2683
  %3201 = vmatprep.subr.mxu0 0.0
  %3202 = vmatpush1.msra.mxu0 %v2686
  %3203 = vmatprep.subr.mxu0 0.0
  %3204 = vmatpush1.msra.mxu0 %v2689
  %3205 = vmatprep.subr.mxu0 0.0
  %3206 = vmatpush1.msra.mxu0 %v2692
  %3207 = vmatprep.subr.mxu0 0.0
  %3208 = vmatpush1.msra.mxu0 0.0
  %3209 = vmatprep.subr.mxu0 0.0
  %3210 = vmatpush1.msra.mxu0 0.0
  %3211 = vmatprep.subr.mxu0 0.0
  %3212 = vmatpush1.msra.mxu0 0.0
  %3213 = vmatprep.subr.mxu0 0.0
  %3214 = vmatpush1.msra.mxu0 0.0
  %3215 = vmatprep.subr.mxu0 0.0
  %3216 = vmatpush1.msra.mxu0 0.0
  %3217 = vmatprep.subr.mxu0 0.0
  %3218 = vmatpush1.msra.mxu0 0.0
  %3219 = vmatprep.subr.mxu0 0.0
  %3220 = vmatpush1.msra.mxu0 0.0
  %3221 = vmatprep.subr.mxu0 0.0
  %3222 = vmatpush1.msra.mxu0 0.0
  %3223 = vmatprep.subr.mxu0 0.0
  %3224 = vmatpush1.msra.mxu0 0.0
  %3225 = vmatprep.subr.mxu0 0.0
  %3226 = vmatpush1.msra.mxu0 0.0
  %3227 = vmatprep.subr.mxu0 0.0
  %3228 = vmatpush1.msra.mxu0 0.0
  %3229 = vmatprep.subr.mxu0 0.0
  %3230 = vmatpush1.msra.mxu0 0.0
  %3231 = vmatprep.subr.mxu0 0.0
  %3232 = vmatpush1.msra.mxu0 0.0
  %3233 = vmatprep.subr.mxu0 0.0
  %3234 = vmatpush1.msra.mxu0 0.0
  %3235 = vmatprep.subr.mxu0 0.0
  %3236 = vmatpush1.msra.mxu0 0.0
  %3237 = vmatprep.subr.mxu0 0.0
  %3238 = vmatpush1.msra.mxu0 0.0
  %3239 = vmatprep.mubr.f32.mxu0 0.0
  %3240 = vmatmul.mubr.f32.gmra.mrb[0].mxu0 %v2432
  %v3241 = vpop.f32.mrb[0].mxu0
  %v3242 = vadd.f32 %v3152, %v3241
  %v3243 = vpop.f32.mrb[0].mxu0
  %3244 = vmatprep.mubr.f32.mxu0 0.0
  %3245 = vmatmul.mubr.f32.gmra.mrb[0].mxu0 %v2437
  %v3246 = vpop.f32.mrb[0].mxu0
  %v3247 = vadd.f32 %v3157, %v3246
  %v3248 = vpop.f32.mrb[0].mxu0
  %3249 = vmatprep.mubr.f32.mxu0 0.0
  %3250 = vmatmul.mubr.f32.gmra.mrb[0].mxu0 %v2442
  %v3251 = vpop.f32.mrb[0].mxu0
  %v3252 = vadd.f32 %v3162, %v3251
  %v3253 = vpop.f32.mrb[0].mxu0
  %3254 = vmatprep.mubr.f32.mxu0 0.0
  %3255 = vmatmul.mubr.f32.gmra.mrb[0].mxu0 %v2447
  %v3256 = vpop.f32.mrb[0].mxu0
  %v3257 = vadd.f32 %v3167, %v3256
  %v3258 = vpop.f32.mrb[0].mxu0
  %3259 = vmatprep.mubr.f32.mxu0 0.0
  %3260 = vmatmul.mubr.f32.gmra.mrb[0].mxu0 %v2452
  %v3261 = vpop.f32.mrb[0].mxu0
  %v3262 = vadd.f32 %v3172, %v3261
  %v3263 = vpop.f32.mrb[0].mxu0
  %3264 = vdwg.mxu0
  %v3265 = vmax.f32 %v2967, 0.0
  %v3266 = vmax.f32 %v2969, 0.0
  %v3267 = vmax.f32 %v3242, 0.0
  %v3268 = vmax.f32 %v2973, 0.0
  %v3269 = vmax.f32 %v2975, 0.0
  %v3270 = vmax.f32 %v3247, 0.0
  %v3271 = vmax.f32 %v2979, 0.0
  %v3272 = vmax.f32 %v2981, 0.0
  %v3273 = vmax.f32 %v3252, 0.0
  %v3274 = vmax.f32 %v2985, 0.0
  %v3275 = vmax.f32 %v2987, 0.0
  %v3276 = vmax.f32 %v3257, 0.0
  %v3277 = vmax.f32 %v2991, 0.0
  %v3278 = vmax.f32 %v2993, 0.0
  %v3279 = vmax.f32 %v3262, 0.0
  %v3280 = vld [vmem:[%s9] sm:$0xff]
  %v3281 = vld [vmem:[%s9 + $0x8] sm:$0xff]
  %v3282 = vld [vmem:[%s9 + $0x10] sm:$0xff]
  %v3283 = vld [vmem:[%s9 + $0x18] sm:$0xff]
  %v3284 = vld [vmem:[%s9 + $0x20] sm:$0xff]
  %v3285 = vld [vmem:[%s9 + $0x28] sm:$0xff]
  %v3286 = vld [vmem:[%s9 + $0x30] sm:$0xff]
  %v3287 = vld [vmem:[%s9 + $0x38] sm:$0xff]
  %v3288 = vld [vmem:[%s9 + $0x40] sm:$0xff]
  %v3289 = vld [vmem:[%s9 + $0x48] sm:$0xff]
  %v3290 = vld [vmem:[%s9 + $0x50] sm:$0xff]
  %v3291 = vld [vmem:[%s9 + $0x58] sm:$0xff]
  %v3292 = vld [vmem:[%s9 + $0x60] sm:$0xff]
  %v3293 = vld [vmem:[%s9 + $0x68] sm:$0xff]
  %v3294 = vld [vmem:[%s9 + $0x70] sm:$0xff]
  %v3295 = vld [vmem:[%s9 + $0x78] sm:$0xff]
  %v3296 = vld [vmem:[%s9 + $0x80] sm:$0xff]
  %v3297 = vld [vmem:[%s9 + $0x88] sm:$0xff]
  %v3298 = vld [vmem:[%s9 + $0x90] sm:$0xff]
  %v3299 = vld [vmem:[%s9 + $0x98] sm:$0xff]
  %v3300 = vld [vmem:[%s9 + $0xa0] sm:$0xff]
  %v3301 = vld [vmem:[%s9 + $0xa8] sm:$0xff]
  %v3302 = vld [vmem:[%s9 + $0xb0] sm:$0xff]
  %v3303 = vld [vmem:[%s9 + $0xb8] sm:$0xff]
  %v3304 = vld [vmem:[%s9 + $0xc0] sm:$0xff]
  %v3305 = vld [vmem:[%s9 + $0xc8] sm:$0xff]
  %v3306 = vld [vmem:[%s9 + $0xd0] sm:$0xff]
  %v3307 = vld [vmem:[%s9 + $0xd8] sm:$0xff]
  %v3308 = vld [vmem:[%s9 + $0xe0] sm:$0xff]
  %v3309 = vld [vmem:[%s9 + $0xe8] sm:$0xff]
  %v3310 = vld [vmem:[%s9 + $0xf0] sm:$0xff]
  %v3311 = vld [vmem:[%s9 + $0xf8] sm:$0xff]
  %v3312 = vld [vmem:[%s9 + $0x100] sm:$0xff]
  %v3313 = vld [vmem:[%s9 + $0x108] sm:$0xff]
  %v3314 = vld [vmem:[%s9 + $0x110] sm:$0xff]
  %v3315 = vld [vmem:[%s9 + $0x118] sm:$0xff]
  %v3316 = vld [vmem:[%s9 + $0x120] sm:$0xff]
  %v3317 = vld [vmem:[%s9 + $0x128] sm:$0xff]
  %v3318 = vld [vmem:[%s9 + $0x130] sm:$0xff]
  %v3319 = vld [vmem:[%s9 + $0x138] sm:$0xff]
  %v3320 = vld [vmem:[#allocation2] sm:$0x1]
  %v3322 = vlaneseq
  %v3323 = vshrl.u32 %v3322, 7
  %v3324 = vsub.s32 0, %v3323
  %v3325 = vrot.slane %v3320, %v3324
  %v3328 = vsel %vm123, %v3267, 0
  %v3331 = vsel %vm123, %v3270, 0
  %v3334 = vsel %vm123, %v3273, 0
  %v3337 = vsel %vm123, %v3276, 0
  %v3340 = vsel %vm123, %v3279, 0
  %3342 = vmatprep.subr.mxu0 0.0
  %3343 = vmatpush1.msra.mxu0 %v3280
  %3344 = vmatprep.subr.mxu0 0.0
  %3345 = vmatpush1.msra.mxu0 %v3281
  %3346 = vmatprep.subr.mxu0 0.0
  %3347 = vmatpush1.msra.mxu0 %v3282
  %3348 = vmatprep.subr.mxu0 0.0
  %3349 = vmatpush1.msra.mxu0 %v3283
  %3350 = vmatprep.subr.mxu0 0.0
  %3351 = vmatpush1.msra.mxu0 %v3284
  %3352 = vmatprep.subr.mxu0 0.0
  %3353 = vmatpush1.msra.mxu0 %v3285
  %3354 = vmatprep.subr.mxu0 0.0
  %3355 = vmatpush1.msra.mxu0 %v3286
  %3356 = vmatprep.subr.mxu0 0.0
  %3357 = vmatpush1.msra.mxu0 %v3287
  %3358 = vmatprep.subr.mxu0 0.0
  %3359 = vmatpush1.msra.mxu0 %v3288
  %3360 = vmatprep.subr.mxu0 0.0
  %3361 = vmatpush1.msra.mxu0 %v3289
  %3362 = vmatprep.subr.mxu0 0.0
  %3363 = vmatpush1.msra.mxu0 %v3290
  %3364 = vmatprep.subr.mxu0 0.0
  %3365 = vmatpush1.msra.mxu0 %v3291
  %3366 = vmatprep.subr.mxu0 0.0
  %3367 = vmatpush1.msra.mxu0 %v3292
  %3368 = vmatprep.subr.mxu0 0.0
  %3369 = vmatpush1.msra.mxu0 %v3293
  %3370 = vmatprep.subr.mxu0 0.0
  %3371 = vmatpush1.msra.mxu0 %v3294
  %3372 = vmatprep.subr.mxu0 0.0
  %3373 = vmatpush1.msra.mxu0 %v3295
  %3374 = vmatprep.subr.mxu0 0.0
  %3375 = vmatpush1.msra.mxu0 %v3296
  %3376 = vmatprep.subr.mxu0 0.0
  %3377 = vmatpush1.msra.mxu0 %v3297
  %3378 = vmatprep.subr.mxu0 0.0
  %3379 = vmatpush1.msra.mxu0 %v3298
  %3380 = vmatprep.subr.mxu0 0.0
  %3381 = vmatpush1.msra.mxu0 %v3299
  %3382 = vmatprep.subr.mxu0 0.0
  %3383 = vmatpush1.msra.mxu0 %v3300
  %3384 = vmatprep.subr.mxu0 0.0
  %3385 = vmatpush1.msra.mxu0 %v3301
  %3386 = vmatprep.subr.mxu0 0.0
  %3387 = vmatpush1.msra.mxu0 %v3302
  %3388 = vmatprep.subr.mxu0 0.0
  %3389 = vmatpush1.msra.mxu0 %v3303
  %3390 = vmatprep.subr.mxu0 0.0
  %3391 = vmatpush1.msra.mxu0 %v3304
  %3392 = vmatprep.subr.mxu0 0.0
  %3393 = vmatpush1.msra.mxu0 %v3305
  %3394 = vmatprep.subr.mxu0 0.0
  %3395 = vmatpush1.msra.mxu0 %v3306
  %3396 = vmatprep.subr.mxu0 0.0
  %3397 = vmatpush1.msra.mxu0 %v3307
  %3398 = vmatprep.subr.mxu0 0.0
  %3399 = vmatpush1.msra.mxu0 %v3308
  %3400 = vmatprep.subr.mxu0 0.0
  %3401 = vmatpush1.msra.mxu0 %v3309
  %3402 = vmatprep.subr.mxu0 0.0
  %3403 = vmatpush1.msra.mxu0 %v3310
  %3404 = vmatprep.subr.mxu0 0.0
  %3405 = vmatpush1.msra.mxu0 %v3311
  %3406 = vmatprep.mubr.f32.mxu0 %v3266
  %3407 = vmatmul.mubr.f32.gmra.mrb[0].mxu0 %v3265
  %v3408 = vpop.f32.mrb[0].mxu0
  %v3409 = vadd.f32 %v3325, %v3408
  %v3410 = vpop.f32.mrb[0].mxu0
  %3411 = vmatprep.mubr.f32.mxu0 %v3269
  %3412 = vmatmul.mubr.f32.gmra.mrb[0].mxu0 %v3268
  %v3413 = vpop.f32.mrb[0].mxu0
  %v3414 = vadd.f32 %v3325, %v3413
  %v3415 = vpop.f32.mrb[0].mxu0
  %3416 = vmatprep.mubr.f32.mxu0 %v3272
  %3417 = vmatmul.mubr.f32.gmra.mrb[0].mxu0 %v3271
  %v3418 = vpop.f32.mrb[0].mxu0
  %v3419 = vadd.f32 %v3325, %v3418
  %v3420 = vpop.f32.mrb[0].mxu0
  %3421 = vmatprep.mubr.f32.mxu0 %v3275
  %3422 = vmatmul.mubr.f32.gmra.mrb[0].mxu0 %v3274
  %v3423 = vpop.f32.mrb[0].mxu0
  %v3424 = vadd.f32 %v3325, %v3423
  %v3425 = vpop.f32.mrb[0].mxu0
  %3426 = vmatprep.mubr.f32.mxu0 %v3278
  %3427 = vmatmul.mubr.f32.gmra.mrb[0].mxu0 %v3277
  %v3428 = vpop.f32.mrb[0].mxu0
  %v3429 = vadd.f32 %v3325, %v3428
  %v3430 = vpop.f32.mrb[0].mxu0
  %3431 = vdwg.mxu0
  %3432 = vmatprep.subr.mxu0 0.0
  %3433 = vmatpush1.msra.mxu0 %v3312
  %3434 = vmatprep.subr.mxu0 0.0
  %3435 = vmatpush1.msra.mxu0 %v3313
  %3436 = vmatprep.subr.mxu0 0.0
  %3437 = vmatpush1.msra.mxu0 %v3314
  %3438 = vmatprep.subr.mxu0 0.0
  %3439 = vmatpush1.msra.mxu0 %v3315
  %3440 = vmatprep.subr.mxu0 0.0
  %3441 = vmatpush1.msra.mxu0 %v3316
  %3442 = vmatprep.subr.mxu0 0.0
  %3443 = vmatpush1.msra.mxu0 %v3317
  %3444 = vmatprep.subr.mxu0 0.0
  %3445 = vmatpush1.msra.mxu0 %v3318
  %3446 = vmatprep.subr.mxu0 0.0
  %3447 = vmatpush1.msra.mxu0 %v3319
  %3448 = vmatprep.subr.mxu0 0.0
  %3449 = vmatpush1.msra.mxu0 0.0
  %3450 = vmatprep.subr.mxu0 0.0
  %3451 = vmatpush1.msra.mxu0 0.0
  %3452 = vmatprep.subr.mxu0 0.0
  %3453 = vmatpush1.msra.mxu0 0.0
  %3454 = vmatprep.subr.mxu0 0.0
  %3455 = vmatpush1.msra.mxu0 0.0
  %3456 = vmatprep.subr.mxu0 0.0
  %3457 = vmatpush1.msra.mxu0 0.0
  %3458 = vmatprep.subr.mxu0 0.0
  %3459 = vmatpush1.msra.mxu0 0.0
  %3460 = vmatprep.subr.mxu0 0.0
  %3461 = vmatpush1.msra.mxu0 0.0
  %3462 = vmatprep.subr.mxu0 0.0
  %3463 = vmatpush1.msra.mxu0 0.0
  %3464 = vmatprep.subr.mxu0 0.0
  %3465 = vmatpush1.msra.mxu0 0.0
  %3466 = vmatprep.subr.mxu0 0.0
  %3467 = vmatpush1.msra.mxu0 0.0
  %3468 = vmatprep.subr.mxu0 0.0
  %3469 = vmatpush1.msra.mxu0 0.0
  %3470 = vmatprep.subr.mxu0 0.0
  %3471 = vmatpush1.msra.mxu0 0.0
  %3472 = vmatprep.subr.mxu0 0.0
  %3473 = vmatpush1.msra.mxu0 0.0
  %3474 = vmatprep.subr.mxu0 0.0
  %3475 = vmatpush1.msra.mxu0 0.0
  %3476 = vmatprep.subr.mxu0 0.0
  %3477 = vmatpush1.msra.mxu0 0.0
  %3478 = vmatprep.subr.mxu0 0.0
  %3479 = vmatpush1.msra.mxu0 0.0
  %3480 = vmatprep.subr.mxu0 0.0
  %3481 = vmatpush1.msra.mxu0 0.0
  %3482 = vmatprep.subr.mxu0 0.0
  %3483 = vmatpush1.msra.mxu0 0.0
  %3484 = vmatprep.subr.mxu0 0.0
  %3485 = vmatpush1.msra.mxu0 0.0
  %3486 = vmatprep.subr.mxu0 0.0
  %3487 = vmatpush1.msra.mxu0 0.0
  %3488 = vmatprep.subr.mxu0 0.0
  %3489 = vmatpush1.msra.mxu0 0.0
  %3490 = vmatprep.subr.mxu0 0.0
  %3491 = vmatpush1.msra.mxu0 0.0
  %3492 = vmatprep.subr.mxu0 0.0
  %3493 = vmatpush1.msra.mxu0 0.0
  %3494 = vmatprep.subr.mxu0 0.0
  %3495 = vmatpush1.msra.mxu0 0.0
  %3496 = vmatprep.mubr.f32.mxu0 0.0
  %3497 = vmatmul.mubr.f32.gmra.mrb[0].mxu0 %v3328
  %v3498 = vpop.f32.mrb[0].mxu0
  %v3499 = vadd.f32 %v3409, %v3498
  %v3500 = vpop.f32.mrb[0].mxu0
  %3501 = vmatprep.mubr.f32.mxu0 0.0
  %3502 = vmatmul.mubr.f32.gmra.mrb[0].mxu0 %v3331
  %v3503 = vpop.f32.mrb[0].mxu0
  %v3504 = vadd.f32 %v3414, %v3503
  %v3505 = vpop.f32.mrb[0].mxu0
  %3506 = vmatprep.mubr.f32.mxu0 0.0
  %3507 = vmatmul.mubr.f32.gmra.mrb[0].mxu0 %v3334
  %v3508 = vpop.f32.mrb[0].mxu0
  %v3509 = vadd.f32 %v3419, %v3508
  %v3510 = vpop.f32.mrb[0].mxu0
  %3511 = vmatprep.mubr.f32.mxu0 0.0
  %3512 = vmatmul.mubr.f32.gmra.mrb[0].mxu0 %v3337
  %v3513 = vpop.f32.mrb[0].mxu0
  %v3514 = vadd.f32 %v3424, %v3513
  %v3515 = vpop.f32.mrb[0].mxu0
  %3516 = vmatprep.mubr.f32.mxu0 0.0
  %3517 = vmatmul.mubr.f32.gmra.mrb[0].mxu0 %v3340
  %v3518 = vpop.f32.mrb[0].mxu0
  %v3519 = vadd.f32 %v3429, %v3518
  %v3520 = vpop.f32.mrb[0].mxu0
  %3521 = vdwg.mxu0
  %3522 = vst.msk [vmem:[%s11 + $0x30] sm:$0xff] %vm1825, %v3499
  %3523 = vst.msk [vmem:[%s11 + $0x38] sm:$0xff] %vm1825, %v3504
  %3524 = vst.msk [vmem:[%s11 + $0x40] sm:$0xff] %vm1825, %v3509
  %3525 = vst.msk [vmem:[%s11 + $0x48] sm:$0xff] %vm1825, %v3514
  %3526 = vst.msk [vmem:[%s11 + $0x50] sm:$0xff] %vm1825, %v3519
  // Predicated region
  $region46: #{hz_model_forward.1} parent=0 // pred_check
    _
  $region47: #{hz_model_forward.1} parent=0 // pred_check_branch
    %3528 = sbr.rel (0) target = $region49
  $region48: #{hz_model_forward.1} parent=0 // pred_region
    _
  $region49: #{hz_model_forward.1} parent=0 // pred_fallthru
    _
  // Predicated region
  $region50: #{hz_model_forward.1} parent=0 // pred_check
    _
  $region51: #{hz_model_forward.1} parent=0 // pred_check_branch
    %3530 = sbr.rel (0) target = $region53
  $region52: #{hz_model_forward.1} parent=0 // pred_region
    _
  $region53: #{hz_model_forward.1} parent=0 // pred_fallthru
    _

</llo_original>
